<compile_context>
chip_gen: v7x
topology: tpu7x:2x2x1
jax: 0.10.0
libtpu: 0.0.40
codegen_flags: <defaults>
</compile_context>

<pallas_src>
import functools
import math

import jax
import jax.numpy as jnp
from jax.experimental import pallas as pl
from jax.experimental.pallas import tpu as pltpu


def _layer_norm(x, w, b, eps=1e-5):
    mean = jnp.mean(x, axis=-1, keepdims=True)
    var = jnp.mean((x - mean) ** 2, axis=-1, keepdims=True)
    return (x - mean) * jax.lax.rsqrt(var + eps) * w + b


def attention_kernel(a_ref, b_ref, m_ref, mt_ref,
                     wqkv_ref, bqkv_ref, wo_ref, bo_ref,
                     w1_ref, b1_ref, w2_ref, b2_ref,
                     ln1w_ref, ln1b_ref, ln2w_ref, ln2b_ref,
                     out_ref,
                     *, num_layers, d_model, a_weight, b_weight):
    D = d_model
    tm = a_ref.shape[0]                    # batch rows in this grid step
    w_dtype = wqkv_ref.dtype               # MXU (weight) dtype, e.g. bf16

    M = m_ref[...]                         # (D, H) head pooling, scale folded in
    Mt = mt_ref[...]                       # (H, D) exact 0/1 expansion

    xa = a_ref[...]
    if a_weight != 1.0:                    # compile-time constant: skip if 1.0
        xa = xa * a_weight
    xb = b_ref[...]
    if b_weight != 1.0:
        xb = xb * b_weight

    # Stack the two sequence positions along sublanes: x = [x0; x1], (2*tm, D).
    x = jnp.concatenate([xa, xb], axis=0)

    for layer in range(num_layers):        # static unroll (num_layers is small)
        # ---------------- self-attention (post-norm) ----------------
        qkv = jnp.dot(x.astype(w_dtype), wqkv_ref[layer],
                      preferred_element_type=jnp.float32) + bqkv_ref[layer]
        q = qkv[:, :D]
        k = qkv[:, D:2 * D]
        v = qkv[:, 2 * D:]
        q0, q1 = q[:tm], q[tm:]
        k0, k1 = k[:tm], k[tm:]
        v0, v1 = v[:tm], v[tm:]

        # Fused per-(batch, head) scores: one bf16 (4*tm, D) @ (D, H) dot.
        # Row order [q0k0; q1k0; q0k1; q1k1] makes the softmax delta a single
        # strided subtract below.
        qk = jnp.concatenate([q0 * k0, q1 * k0, q0 * k1, q1 * k1],
                             axis=0).astype(w_dtype)
        s = jnp.dot(qk, M, preferred_element_type=jnp.float32)       # (4tm, H)

        # Length-2 softmax over keys == sigmoid of the score delta:
        # one exp + one approx reciprocal on (2tm, H).
        delta = s[2 * tm:] - s[:2 * tm]            # [s01-s00 ; s11-s10]
        sig = pl.reciprocal(1.0 + jnp.exp(delta), approx=True)       # [a00; a10]
        att = jnp.concatenate([sig, 1.0 - sig], axis=0).astype(w_dtype)

        # Fused expansion of (B, H) weights back to (B, D): bf16 (4tm,H)@(H,D).
        wexp = jnp.dot(att, Mt, preferred_element_type=jnp.float32)  # (4tm, D)
        o0 = wexp[:tm] * v0 + wexp[2 * tm:3 * tm] * v1
        o1 = wexp[tm:2 * tm] * v0 + wexp[3 * tm:] * v1
        o = jnp.concatenate([o0, o1], axis=0)                         # (2tm, D)

        o = jnp.dot(o.astype(w_dtype), wo_ref[layer],
                    preferred_element_type=jnp.float32) + bo_ref[layer]

        x = _layer_norm(x + o, ln1w_ref[layer], ln1b_ref[layer])

        # ---------------- feed-forward block ----------------
        h = jnp.maximum(
            jnp.dot(x.astype(w_dtype), w1_ref[layer],
                    preferred_element_type=jnp.float32) + b1_ref[layer], 0.0)
        f = jnp.dot(h.astype(w_dtype), w2_ref[layer],
                    preferred_element_type=jnp.float32) + b2_ref[layer]

        x = _layer_norm(x + f, ln2w_ref[layer], ln2b_ref[layer])

    # encoded_sequence += a * a_weight (broadcast over seq); mean over seq(=2)
    out_ref[...] = (x[:tm] + x[tm:]) * 0.5 + xa


def _vmem_capacity_bytes():
    try:
        return int(pltpu.get_tpu_info().vmem_capacity_bytes)
    except Exception:
        return 64 * 2 ** 20        # conservative (v7x per-TC capacity)


def _pick_batch_tile(B, block_batch):
    """Largest tile <= block_batch that divides B, is a multiple of 8 sublanes,
    and (when B allows) leaves >= 2 grid steps so the parallel axis can shard
    across v7x's two TensorCores."""
    best = None
    for t in range(min(block_batch, B), 0, -1):
        if B % t != 0 or t % 8 != 0:
            continue
        if best is None:
            best = t
        if B // t >= 2:
            return t
    if best is not None:
        return best
    return B                        # tiny / odd batch: single whole-batch step


def attention_forward(a, b, params, *, num_heads, a_weight=1.0, b_weight=1.0,
                      weight_dtype=jnp.bfloat16, block_batch=256):
    B, D = a.shape
    L = params["wqkv_t"].shape[0]
    F = params["w1_t"].shape[2]
    assert D % num_heads == 0
    head_dim = D // num_heads
    scale = 1.0 / math.sqrt(head_dim)

    tm = _pick_batch_tile(B, block_batch)
    grid = (B // tm,)

    # Block-diagonal head pooling matrices in the MXU-native dtype. The
    # attention scale is folded into M (Mt stays an exact 0/1 matrix).
    head_mask = (jnp.arange(D)[:, None] // head_dim ==
                 jnp.arange(num_heads)[None, :])
    M = (head_mask.astype(jnp.float32) * scale).astype(weight_dtype)
    Mt = head_mask.T.astype(weight_dtype)

    # MXU-native weight dtype; biases / LN params / softmax math stay f32.
    wq = params["wqkv_t"].astype(weight_dtype)
    wo = params["wo_t"].astype(weight_dtype)
    w1 = params["w1_t"].astype(weight_dtype)
    w2 = params["w2_t"].astype(weight_dtype)

    inputs = (a, b, M, Mt,
              wq, params["bqkv"], wo, params["bo"],
              w1, params["b1"], w2, params["b2"],
              params["ln1w"], params["ln1b"], params["ln2w"], params["ln2b"])

    # Capacity-aware scoped-VMEM budget (v7x physical VMEM is only 64 MiB).
    param_bytes = sum(int(x.size) * x.dtype.itemsize for x in inputs[2:])
    # per-step f32 activation peak: qkv(2tm,3D) + qk/wexp(4tm,D each)
    # + x/o/residual (~3*2tm*D) + ffn hidden (2tm,F); 2x margin.
    act_elems = 2 * tm * 3 * D + 2 * (4 * tm * D) + 6 * tm * D + 2 * tm * F
    act_bytes = 4 * act_elems * 2
    io_bytes = 2 * 3 * tm * D * 4             # double-buffered a/b/out tiles
    vmem_cap = _vmem_capacity_bytes()
    vmem_limit = int(min(vmem_cap - 8 * 2 ** 20,
                         max(32 * 2 ** 20,
                             2 * param_bytes + act_bytes + io_bytes)))

    kernel = functools.partial(
        attention_kernel,
        num_layers=L, d_model=D,
        a_weight=float(a_weight), b_weight=float(b_weight))

    def batch_spec(arr):
        return pl.BlockSpec((tm, arr.shape[1]), lambda i: (i, 0))

    out_spec = pl.BlockSpec((tm, D), lambda i: (i, 0))

    def run(single_buffer_weights):
        def resident_spec(arr):
            # Constant block index => single DMA, stays VMEM-resident.
            idx = lambda i, _n=arr.ndim: (0,) * _n
            if single_buffer_weights:
                # One buffer is enough for a never-changing block: halves the
                # resident-weight VMEM footprint (matters most on v7x).
                return pl.BlockSpec(arr.shape, idx,
                                    pipeline_mode=pl.Buffered(1))
            return pl.BlockSpec(arr.shape, idx)

        in_specs = ([batch_spec(a), batch_spec(b)]
                    + [resident_spec(arr) for arr in inputs[2:]])
        return pl.pallas_call(
            kernel,
            out_shape=jax.ShapeDtypeStruct((B, D), jnp.float32),
            grid=grid,
            in_specs=in_specs,
            out_specs=out_spec,
            compiler_params=pltpu.CompilerParams(
                dimension_semantics=("parallel",),
                vmem_limit_bytes=vmem_limit),
        )(*inputs)

    try:
        return run(single_buffer_weights=True)
    except Exception:
        # pipeline_mode / Buffered(1) unsupported on this jax version:
        # fall back to the default double-buffered (known-good) spec layout.
        return run(single_buffer_weights=False)


def reference_forward(a, b, params, *, num_heads, a_weight=1.0, b_weight=1.0):
    """Pure-JAX f32 reference of the PyTorch module (eval mode)."""
    D = a.shape[-1]
    hd = D // num_heads
    L = params["wqkv_t"].shape[0]
    x = jnp.stack([a * a_weight, b * b_weight], axis=0)          # (2, B, D)
    for l in range(L):
        qkv = x @ params["wqkv_t"][l] + params["bqkv"][l]
        q, k, v = qkv[..., :D], qkv[..., D:2 * D], qkv[..., 2 * D:]
        split = lambda t: t.reshape(2, -1, num_heads, hd)
        qh, kh, vh = split(q), split(k), split(v)
        s = jnp.einsum('ibhd,jbhd->ijbh', qh, kh) / math.sqrt(hd)
        p = jax.nn.softmax(s, axis=1)
        o = jnp.einsum('ijbh,jbhd->ibhd', p, vh).reshape(2, -1, D)
        o = o @ params["wo_t"][l] + params["bo"][l]
        x = _layer_norm(x + o, params["ln1w"][l], params["ln1b"][l])
        h = jax.nn.relu(x @ params["w1_t"][l] + params["b1"][l])
        f = h @ params["w2_t"][l] + params["b2"][l]
        x = _layer_norm(x + f, params["ln2w"][l], params["ln2b"][l])
    return (x + a * a_weight).mean(axis=0)


def init_params(key, *, d_model, num_layers, feedforward_dim):
    D, L, F = d_model, num_layers, feedforward_dim
    ks = jax.random.split(key, 6)
    scale = 0.02
    # PyTorch-shaped weights (out_features, in_features), pre-transposed so the
    # kernel computes x @ W^T as a plain row-major matmul.
    wqkv = jax.random.normal(ks[0], (L, 3 * D, D), jnp.float32) * scale
    wo = jax.random.normal(ks[1], (L, D, D), jnp.float32) * scale
    w1 = jax.random.normal(ks[2], (L, F, D), jnp.float32) * scale
    w2 = jax.random.normal(ks[3], (L, D, F), jnp.float32) * scale
    bqkv = jax.random.normal(ks[4], (L, 1, 3 * D), jnp.float32) * scale
    bo = jnp.zeros((L, 1, D), jnp.float32)
    b1 = jax.random.normal(ks[5], (L, 1, F), jnp.float32) * scale
    b2 = jnp.zeros((L, 1, D), jnp.float32)
    return {
        "wqkv_t": jnp.transpose(wqkv, (0, 2, 1)),   # (L, D, 3D)
        "bqkv": bqkv,                               # (L, 1, 3D)
        "wo_t": jnp.transpose(wo, (0, 2, 1)),       # (L, D, D)
        "bo": bo,                                   # (L, 1, D)
        "w1_t": jnp.transpose(w1, (0, 2, 1)),       # (L, D, F)
        "b1": b1,                                   # (L, 1, F)
        "w2_t": jnp.transpose(w2, (0, 2, 1)),       # (L, F, D)
        "b2": b2,                                   # (L, 1, D)
        "ln1w": jnp.ones((L, 1, D), jnp.float32),
        "ln1b": jnp.zeros((L, 1, D), jnp.float32),
        "ln2w": jnp.ones((L, 1, D), jnp.float32),
        "ln2b": jnp.zeros((L, 1, D), jnp.float32),
    }


if __name__ == "__main__":
    # Small but lane-aligned shapes (D, F multiples of 128) per the perf review.
    B, D, H, L, F = 16, 128, 4, 2, 256
    a_weight, b_weight = 1.0, 1.0

    key = jax.random.PRNGKey(0)
    k_a, k_b, k_p = jax.random.split(key, 3)
    a = jax.random.normal(k_a, (B, D), jnp.float32)
    b = jax.random.normal(k_b, (B, D), jnp.float32)
    params = init_params(k_p, d_model=D, num_layers=L, feedforward_dim=F)

    out = attention_forward(a, b, params, num_heads=H,
                            a_weight=a_weight, b_weight=b_weight,
                            block_batch=8)   # 2 parallel grid steps (v7x 2 TCs)
    out = jax.block_until_ready(out)
    assert out.shape == (B, D) and out.dtype == jnp.float32

    ref = reference_forward(a, b, params, num_heads=H,
                            a_weight=a_weight, b_weight=b_weight)
    err = float(jnp.max(jnp.abs(out - ref)))
    assert err < 0.1, f"max abs error vs f32 reference: {err}"
    print("KERNEL_OK")
</pallas_src>

<mosaic_0001>
module attributes {stable_mosaic.version = 11 : i64} {
  func.func @attention_kernel(%arg0: i32, %arg1: memref<8x128xf32, #tpu.memory_space<vmem>>, %arg2: memref<8x128xf32, #tpu.memory_space<vmem>>, %arg3: memref<128x4xbf16, #tpu.memory_space<vmem>>, %arg4: memref<4x128xbf16, #tpu.memory_space<vmem>>, %arg5: memref<2x128x384xbf16, #tpu.memory_space<vmem>>, %arg6: memref<2x1x384xf32, #tpu.memory_space<vmem>>, %arg7: memref<2x128x128xbf16, #tpu.memory_space<vmem>>, %arg8: memref<2x1x128xf32, #tpu.memory_space<vmem>>, %arg9: memref<2x128x256xbf16, #tpu.memory_space<vmem>>, %arg10: memref<2x1x256xf32, #tpu.memory_space<vmem>>, %arg11: memref<2x256x128xbf16, #tpu.memory_space<vmem>>, %arg12: memref<2x1x128xf32, #tpu.memory_space<vmem>>, %arg13: memref<2x1x128xf32, #tpu.memory_space<vmem>>, %arg14: memref<2x1x128xf32, #tpu.memory_space<vmem>>, %arg15: memref<2x1x128xf32, #tpu.memory_space<vmem>>, %arg16: memref<2x1x128xf32, #tpu.memory_space<vmem>>, %arg17: memref<8x128xf32, #tpu.memory_space<vmem>>) attributes {dimension_semantics = [#tpu.dimension_semantics<parallel>], iteration_bounds = array<i64: 2>, scalar_prefetch = 0 : i64, scratch_operands = 0 : i64, tpu.core_type = #tpu.core_type<tc>, window_params = [{transform_indices = @transform_0, window_bounds = array<i64: 8, 128>}, {transform_indices = @transform_1, window_bounds = array<i64: 8, 128>}, {pipeline_mode = #tpu.pipeline_mode<synchronous>, transform_indices = @transform_2, window_bounds = array<i64: 128, 4>}, {pipeline_mode = #tpu.pipeline_mode<synchronous>, transform_indices = @transform_3, window_bounds = array<i64: 4, 128>}, {pipeline_mode = #tpu.pipeline_mode<synchronous>, transform_indices = @transform_4, window_bounds = array<i64: 2, 128, 384>}, {pipeline_mode = #tpu.pipeline_mode<synchronous>, transform_indices = @transform_5, window_bounds = array<i64: 2, 1, 384>}, {pipeline_mode = #tpu.pipeline_mode<synchronous>, transform_indices = @transform_6, window_bounds = array<i64: 2, 128, 128>}, {pipeline_mode = #tpu.pipeline_mode<synchronous>, transform_indices = @transform_7, window_bounds = array<i64: 2, 1, 128>}, {pipeline_mode = #tpu.pipeline_mode<synchronous>, transform_indices = @transform_8, window_bounds = array<i64: 2, 128, 256>}, {pipeline_mode = #tpu.pipeline_mode<synchronous>, transform_indices = @transform_9, window_bounds = array<i64: 2, 1, 256>}, {pipeline_mode = #tpu.pipeline_mode<synchronous>, transform_indices = @transform_10, window_bounds = array<i64: 2, 256, 128>}, {pipeline_mode = #tpu.pipeline_mode<synchronous>, transform_indices = @transform_11, window_bounds = array<i64: 2, 1, 128>}, {pipeline_mode = #tpu.pipeline_mode<synchronous>, transform_indices = @transform_12, window_bounds = array<i64: 2, 1, 128>}, {pipeline_mode = #tpu.pipeline_mode<synchronous>, transform_indices = @transform_13, window_bounds = array<i64: 2, 1, 128>}, {pipeline_mode = #tpu.pipeline_mode<synchronous>, transform_indices = @transform_14, window_bounds = array<i64: 2, 1, 128>}, {pipeline_mode = #tpu.pipeline_mode<synchronous>, transform_indices = @transform_15, window_bounds = array<i64: 2, 1, 128>}, {transform_indices = @transform_16, window_bounds = array<i64: 8, 128>}]} {
    %c0 = arith.constant 0 : index
    %c0_0 = arith.constant 0 : index
    %0 = vector.load %arg3[%c0, %c0_0] : memref<128x4xbf16, #tpu.memory_space<vmem>>, vector<128x4xbf16>
    %c0_1 = arith.constant 0 : index
    %c0_2 = arith.constant 0 : index
    %1 = vector.load %arg4[%c0_1, %c0_2] : memref<4x128xbf16, #tpu.memory_space<vmem>>, vector<4x128xbf16>
    %c0_3 = arith.constant 0 : index
    %c0_4 = arith.constant 0 : index
    %2 = vector.load %arg1[%c0_3, %c0_4] : memref<8x128xf32, #tpu.memory_space<vmem>>, vector<8x128xf32>
    %c0_5 = arith.constant 0 : index
    %c0_6 = arith.constant 0 : index
    %3 = vector.load %arg2[%c0_5, %c0_6] : memref<8x128xf32, #tpu.memory_space<vmem>>, vector<8x128xf32>
    %4 = tpu.concatenate %2, %3 in 0 : vector<8x128xf32>, vector<8x128xf32> -> vector<16x128xf32>
    %5 = arith.truncf %4 : vector<16x128xf32> to vector<16x128xbf16>
    %c0_7 = arith.constant 0 : index
    %c0_8 = arith.constant 0 : index
    %c0_9 = arith.constant 0 : index
    %6 = vector.load %arg5[%c0_7, %c0_8, %c0_9] : memref<2x128x384xbf16, #tpu.memory_space<vmem>>, vector<1x128x384xbf16>
    %7 = vector.shape_cast %6 : vector<1x128x384xbf16> to vector<128x384xbf16>
    %cst = arith.constant dense<0.000000e+00> : vector<16x384xf32>
    %8 = tpu.matmul %5, %7, %cst {dimension_numbers = #tpu.dot_dimension_numbers<[1], [0], [0], [1], [0, 0, 1, 1], [], []>} : vector<16x128xbf16>, vector<128x384xbf16>, vector<16x384xf32> -> vector<16x384xf32>
    %c0_10 = arith.constant 0 : index
    %c0_11 = arith.constant 0 : index
    %c0_12 = arith.constant 0 : index
    %9 = vector.load %arg6[%c0_10, %c0_11, %c0_12] : memref<2x1x384xf32, #tpu.memory_space<vmem>>, vector<1x1x384xf32>
    %10 = vector.shape_cast %9 : vector<1x1x384xf32> to vector<1x384xf32>
    %11 = vector.broadcast %10 : vector<1x384xf32> to vector<16x384xf32>
    %12 = arith.addf %8, %11 : vector<16x384xf32>
    %13 = vector.extract_strided_slice %12 {offsets = [0, 0], sizes = [16, 128], strides = [1, 1]} : vector<16x384xf32> to vector<16x128xf32>
    %14 = vector.extract_strided_slice %12 {offsets = [0, 128], sizes = [16, 128], strides = [1, 1]} : vector<16x384xf32> to vector<16x128xf32>
    %15 = vector.extract_strided_slice %12 {offsets = [0, 256], sizes = [16, 128], strides = [1, 1]} : vector<16x384xf32> to vector<16x128xf32>
    %16 = vector.extract_strided_slice %13 {offsets = [0, 0], sizes = [8, 128], strides = [1, 1]} : vector<16x128xf32> to vector<8x128xf32>
    %17 = vector.extract_strided_slice %13 {offsets = [8, 0], sizes = [8, 128], strides = [1, 1]} : vector<16x128xf32> to vector<8x128xf32>
    %18 = vector.extract_strided_slice %14 {offsets = [0, 0], sizes = [8, 128], strides = [1, 1]} : vector<16x128xf32> to vector<8x128xf32>
    %19 = vector.extract_strided_slice %14 {offsets = [8, 0], sizes = [8, 128], strides = [1, 1]} : vector<16x128xf32> to vector<8x128xf32>
    %20 = vector.extract_strided_slice %15 {offsets = [0, 0], sizes = [8, 128], strides = [1, 1]} : vector<16x128xf32> to vector<8x128xf32>
    %21 = vector.extract_strided_slice %15 {offsets = [8, 0], sizes = [8, 128], strides = [1, 1]} : vector<16x128xf32> to vector<8x128xf32>
    %22 = arith.mulf %16, %18 : vector<8x128xf32>
    %23 = arith.mulf %17, %18 : vector<8x128xf32>
    %24 = arith.mulf %16, %19 : vector<8x128xf32>
    %25 = arith.mulf %17, %19 : vector<8x128xf32>
    %26 = tpu.concatenate %22, %23, %24, %25 in 0 : vector<8x128xf32>, vector<8x128xf32>, vector<8x128xf32>, vector<8x128xf32> -> vector<32x128xf32>
    %27 = arith.truncf %26 : vector<32x128xf32> to vector<32x128xbf16>
    %cst_13 = arith.constant dense<0.000000e+00> : vector<32x4xf32>
    %28 = tpu.matmul %27, %0, %cst_13 {dimension_numbers = #tpu.dot_dimension_numbers<[1], [0], [0], [1], [0, 0, 1, 1], [], []>} : vector<32x128xbf16>, vector<128x4xbf16>, vector<32x4xf32> -> vector<32x4xf32>
    %29 = vector.extract_strided_slice %28 {offsets = [16, 0], sizes = [16, 4], strides = [1, 1]} : vector<32x4xf32> to vector<16x4xf32>
    %30 = vector.extract_strided_slice %28 {offsets = [0, 0], sizes = [16, 4], strides = [1, 1]} : vector<32x4xf32> to vector<16x4xf32>
    %31 = arith.subf %29, %30 : vector<16x4xf32>
    %32 = math.exp %31 : vector<16x4xf32>
    %cst_14 = arith.constant 1.000000e+00 : f32
    %33 = vector.broadcast %cst_14 : f32 to vector<16x4xf32>
    %34 = arith.addf %33, %32 : vector<16x4xf32>
    %35 = tpu.reciprocal %34 {approx = true} : vector<16x4xf32> -> vector<16x4xf32>
    %cst_15 = arith.constant 1.000000e+00 : f32
    %36 = vector.broadcast %cst_15 : f32 to vector<16x4xf32>
    %37 = arith.subf %36, %35 : vector<16x4xf32>
    %38 = tpu.concatenate %35, %37 in 0 : vector<16x4xf32>, vector<16x4xf32> -> vector<32x4xf32>
    %39 = arith.truncf %38 : vector<32x4xf32> to vector<32x4xbf16>
    %cst_16 = arith.constant dense<0.000000e+00> : vector<32x128xf32>
    %40 = tpu.matmul %39, %1, %cst_16 {dimension_numbers = #tpu.dot_dimension_numbers<[1], [0], [0], [1], [0, 0, 1, 1], [], []>} : vector<32x4xbf16>, vector<4x128xbf16>, vector<32x128xf32> -> vector<32x128xf32>
    %41 = vector.extract_strided_slice %40 {offsets = [0, 0], sizes = [8, 128], strides = [1, 1]} : vector<32x128xf32> to vector<8x128xf32>
    %42 = arith.mulf %41, %20 : vector<8x128xf32>
    %43 = vector.extract_strided_slice %40 {offsets = [16, 0], sizes = [8, 128], strides = [1, 1]} : vector<32x128xf32> to vector<8x128xf32>
    %44 = arith.mulf %43, %21 : vector<8x128xf32>
    %45 = arith.addf %42, %44 : vector<8x128xf32>
    %46 = vector.extract_strided_slice %40 {offsets = [8, 0], sizes = [8, 128], strides = [1, 1]} : vector<32x128xf32> to vector<8x128xf32>
    %47 = arith.mulf %46, %20 : vector<8x128xf32>
    %48 = vector.extract_strided_slice %40 {offsets = [24, 0], sizes = [8, 128], strides = [1, 1]} : vector<32x128xf32> to vector<8x128xf32>
    %49 = arith.mulf %48, %21 : vector<8x128xf32>
    %50 = arith.addf %47, %49 : vector<8x128xf32>
    %51 = tpu.concatenate %45, %50 in 0 : vector<8x128xf32>, vector<8x128xf32> -> vector<16x128xf32>
    %52 = arith.truncf %51 : vector<16x128xf32> to vector<16x128xbf16>
    %c0_17 = arith.constant 0 : index
    %c0_18 = arith.constant 0 : index
    %c0_19 = arith.constant 0 : index
    %53 = vector.load %arg7[%c0_17, %c0_18, %c0_19] : memref<2x128x128xbf16, #tpu.memory_space<vmem>>, vector<1x128x128xbf16>
    %54 = vector.shape_cast %53 : vector<1x128x128xbf16> to vector<128x128xbf16>
    %cst_20 = arith.constant dense<0.000000e+00> : vector<16x128xf32>
    %55 = tpu.matmul %52, %54, %cst_20 {dimension_numbers = #tpu.dot_dimension_numbers<[1], [0], [0], [1], [0, 0, 1, 1], [], []>} : vector<16x128xbf16>, vector<128x128xbf16>, vector<16x128xf32> -> vector<16x128xf32>
    %c0_21 = arith.constant 0 : index
    %c0_22 = arith.constant 0 : index
    %c0_23 = arith.constant 0 : index
    %56 = vector.load %arg8[%c0_21, %c0_22, %c0_23] : memref<2x1x128xf32, #tpu.memory_space<vmem>>, vector<1x1x128xf32>
    %57 = vector.shape_cast %56 : vector<1x1x128xf32> to vector<1x128xf32>
    %58 = vector.broadcast %57 : vector<1x128xf32> to vector<16x128xf32>
    %59 = arith.addf %55, %58 : vector<16x128xf32>
    %60 = arith.addf %4, %59 : vector<16x128xf32>
    %c0_24 = arith.constant 0 : index
    %c0_25 = arith.constant 0 : index
    %c0_26 = arith.constant 0 : index
    %61 = vector.load %arg13[%c0_24, %c0_25, %c0_26] : memref<2x1x128xf32, #tpu.memory_space<vmem>>, vector<1x1x128xf32>
    %62 = vector.shape_cast %61 : vector<1x1x128xf32> to vector<1x128xf32>
    %c0_27 = arith.constant 0 : index
    %c0_28 = arith.constant 0 : index
    %c0_29 = arith.constant 0 : index
    %63 = vector.load %arg14[%c0_27, %c0_28, %c0_29] : memref<2x1x128xf32, #tpu.memory_space<vmem>>, vector<1x1x128xf32>
    %64 = vector.shape_cast %63 : vector<1x1x128xf32> to vector<1x128xf32>
    %cst_30 = arith.constant dense<0.000000e+00> : vector<16xf32>
    %65 = vector.multi_reduction <add>, %60, %cst_30 [1] : vector<16x128xf32> to vector<16xf32>
    %66 = vector.shape_cast %65 : vector<16xf32> to vector<16x1xf32>
    %cst_31 = arith.constant 1.280000e+02 : f32
    %67 = vector.broadcast %cst_31 : f32 to vector<16x1xf32>
    %68 = arith.divf %66, %67 : vector<16x1xf32>
    %69 = vector.broadcast %68 : vector<16x1xf32> to vector<16x128xf32>
    %70 = arith.subf %60, %69 : vector<16x128xf32>
    %71 = arith.mulf %70, %70 : vector<16x128xf32>
    %cst_32 = arith.constant dense<0.000000e+00> : vector<16xf32>
    %72 = vector.multi_reduction <add>, %71, %cst_32 [1] : vector<16x128xf32> to vector<16xf32>
    %73 = vector.shape_cast %72 : vector<16xf32> to vector<16x1xf32>
    %cst_33 = arith.constant 1.280000e+02 : f32
    %74 = vector.broadcast %cst_33 : f32 to vector<16x1xf32>
    %75 = arith.divf %73, %74 : vector<16x1xf32>
    %76 = vector.broadcast %68 : vector<16x1xf32> to vector<16x128xf32>
    %77 = arith.subf %60, %76 : vector<16x128xf32>
    %cst_34 = arith.constant 9.99999974E-6 : f32
    %78 = vector.broadcast %cst_34 : f32 to vector<16x1xf32>
    %79 = arith.addf %75, %78 : vector<16x1xf32>
    %80 = math.rsqrt %79 : vector<16x1xf32>
    %81 = vector.broadcast %80 : vector<16x1xf32> to vector<16x128xf32>
    %82 = arith.mulf %77, %81 : vector<16x128xf32>
    %83 = vector.broadcast %62 : vector<1x128xf32> to vector<16x128xf32>
    %84 = arith.mulf %82, %83 : vector<16x128xf32>
    %85 = vector.broadcast %64 : vector<1x128xf32> to vector<16x128xf32>
    %86 = arith.addf %84, %85 : vector<16x128xf32>
    %87 = arith.truncf %86 : vector<16x128xf32> to vector<16x128xbf16>
    %c0_35 = arith.constant 0 : index
    %c0_36 = arith.constant 0 : index
    %c0_37 = arith.constant 0 : index
    %88 = vector.load %arg9[%c0_35, %c0_36, %c0_37] : memref<2x128x256xbf16, #tpu.memory_space<vmem>>, vector<1x128x256xbf16>
    %89 = vector.shape_cast %88 : vector<1x128x256xbf16> to vector<128x256xbf16>
    %cst_38 = arith.constant dense<0.000000e+00> : vector<16x256xf32>
    %90 = tpu.matmul %87, %89, %cst_38 {dimension_numbers = #tpu.dot_dimension_numbers<[1], [0], [0], [1], [0, 0, 1, 1], [], []>} : vector<16x128xbf16>, vector<128x256xbf16>, vector<16x256xf32> -> vector<16x256xf32>
    %c0_39 = arith.constant 0 : index
    %c0_40 = arith.constant 0 : index
    %c0_41 = arith.constant 0 : index
    %91 = vector.load %arg10[%c0_39, %c0_40, %c0_41] : memref<2x1x256xf32, #tpu.memory_space<vmem>>, vector<1x1x256xf32>
    %92 = vector.shape_cast %91 : vector<1x1x256xf32> to vector<1x256xf32>
    %93 = vector.broadcast %92 : vector<1x256xf32> to vector<16x256xf32>
    %94 = arith.addf %90, %93 : vector<16x256xf32>
    %cst_42 = arith.constant 0.000000e+00 : f32
    %95 = vector.broadcast %cst_42 : f32 to vector<16x256xf32>
    %96 = arith.maximumf %94, %95 : vector<16x256xf32>
    %97 = arith.truncf %96 : vector<16x256xf32> to vector<16x256xbf16>
    %c0_43 = arith.constant 0 : index
    %c0_44 = arith.constant 0 : index
    %c0_45 = arith.constant 0 : index
    %98 = vector.load %arg11[%c0_43, %c0_44, %c0_45] : memref<2x256x128xbf16, #tpu.memory_space<vmem>>, vector<1x256x128xbf16>
    %99 = vector.shape_cast %98 : vector<1x256x128xbf16> to vector<256x128xbf16>
    %cst_46 = arith.constant dense<0.000000e+00> : vector<16x128xf32>
    %100 = tpu.matmul %97, %99, %cst_46 {dimension_numbers = #tpu.dot_dimension_numbers<[1], [0], [0], [1], [0, 0, 1, 1], [], []>} : vector<16x256xbf16>, vector<256x128xbf16>, vector<16x128xf32> -> vector<16x128xf32>
    %c0_47 = arith.constant 0 : index
    %c0_48 = arith.constant 0 : index
    %c0_49 = arith.constant 0 : index
    %101 = vector.load %arg12[%c0_47, %c0_48, %c0_49] : memref<2x1x128xf32, #tpu.memory_space<vmem>>, vector<1x1x128xf32>
    %102 = vector.shape_cast %101 : vector<1x1x128xf32> to vector<1x128xf32>
    %103 = vector.broadcast %102 : vector<1x128xf32> to vector<16x128xf32>
    %104 = arith.addf %100, %103 : vector<16x128xf32>
    %105 = arith.addf %86, %104 : vector<16x128xf32>
    %c0_50 = arith.constant 0 : index
    %c0_51 = arith.constant 0 : index
    %c0_52 = arith.constant 0 : index
    %106 = vector.load %arg15[%c0_50, %c0_51, %c0_52] : memref<2x1x128xf32, #tpu.memory_space<vmem>>, vector<1x1x128xf32>
    %107 = vector.shape_cast %106 : vector<1x1x128xf32> to vector<1x128xf32>
    %c0_53 = arith.constant 0 : index
    %c0_54 = arith.constant 0 : index
    %c0_55 = arith.constant 0 : index
    %108 = vector.load %arg16[%c0_53, %c0_54, %c0_55] : memref<2x1x128xf32, #tpu.memory_space<vmem>>, vector<1x1x128xf32>
    %109 = vector.shape_cast %108 : vector<1x1x128xf32> to vector<1x128xf32>
    %cst_56 = arith.constant dense<0.000000e+00> : vector<16xf32>
    %110 = vector.multi_reduction <add>, %105, %cst_56 [1] : vector<16x128xf32> to vector<16xf32>
    %111 = vector.shape_cast %110 : vector<16xf32> to vector<16x1xf32>
    %cst_57 = arith.constant 1.280000e+02 : f32
    %112 = vector.broadcast %cst_57 : f32 to vector<16x1xf32>
    %113 = arith.divf %111, %112 : vector<16x1xf32>
    %114 = vector.broadcast %113 : vector<16x1xf32> to vector<16x128xf32>
    %115 = arith.subf %105, %114 : vector<16x128xf32>
    %116 = arith.mulf %115, %115 : vector<16x128xf32>
    %cst_58 = arith.constant dense<0.000000e+00> : vector<16xf32>
    %117 = vector.multi_reduction <add>, %116, %cst_58 [1] : vector<16x128xf32> to vector<16xf32>
    %118 = vector.shape_cast %117 : vector<16xf32> to vector<16x1xf32>
    %cst_59 = arith.constant 1.280000e+02 : f32
    %119 = vector.broadcast %cst_59 : f32 to vector<16x1xf32>
    %120 = arith.divf %118, %119 : vector<16x1xf32>
    %121 = vector.broadcast %113 : vector<16x1xf32> to vector<16x128xf32>
    %122 = arith.subf %105, %121 : vector<16x128xf32>
    %cst_60 = arith.constant 9.99999974E-6 : f32
    %123 = vector.broadcast %cst_60 : f32 to vector<16x1xf32>
    %124 = arith.addf %120, %123 : vector<16x1xf32>
    %125 = math.rsqrt %124 : vector<16x1xf32>
    %126 = vector.broadcast %125 : vector<16x1xf32> to vector<16x128xf32>
    %127 = arith.mulf %122, %126 : vector<16x128xf32>
    %128 = vector.broadcast %107 : vector<1x128xf32> to vector<16x128xf32>
    %129 = arith.mulf %127, %128 : vector<16x128xf32>
    %130 = vector.broadcast %109 : vector<1x128xf32> to vector<16x128xf32>
    %131 = arith.addf %129, %130 : vector<16x128xf32>
    %132 = arith.truncf %131 : vector<16x128xf32> to vector<16x128xbf16>
    %c1 = arith.constant 1 : index
    %c0_61 = arith.constant 0 : index
    %c0_62 = arith.constant 0 : index
    %133 = vector.load %arg5[%c1, %c0_61, %c0_62] : memref<2x128x384xbf16, #tpu.memory_space<vmem>>, vector<1x128x384xbf16>
    %134 = vector.shape_cast %133 : vector<1x128x384xbf16> to vector<128x384xbf16>
    %cst_63 = arith.constant dense<0.000000e+00> : vector<16x384xf32>
    %135 = tpu.matmul %132, %134, %cst_63 {dimension_numbers = #tpu.dot_dimension_numbers<[1], [0], [0], [1], [0, 0, 1, 1], [], []>} : vector<16x128xbf16>, vector<128x384xbf16>, vector<16x384xf32> -> vector<16x384xf32>
    %c1_64 = arith.constant 1 : index
    %c0_65 = arith.constant 0 : index
    %c0_66 = arith.constant 0 : index
    %136 = vector.load %arg6[%c1_64, %c0_65, %c0_66] : memref<2x1x384xf32, #tpu.memory_space<vmem>>, vector<1x1x384xf32>
    %137 = vector.shape_cast %136 : vector<1x1x384xf32> to vector<1x384xf32>
    %138 = vector.broadcast %137 : vector<1x384xf32> to vector<16x384xf32>
    %139 = arith.addf %135, %138 : vector<16x384xf32>
    %140 = vector.extract_strided_slice %139 {offsets = [0, 0], sizes = [16, 128], strides = [1, 1]} : vector<16x384xf32> to vector<16x128xf32>
    %141 = vector.extract_strided_slice %139 {offsets = [0, 128], sizes = [16, 128], strides = [1, 1]} : vector<16x384xf32> to vector<16x128xf32>
    %142 = vector.extract_strided_slice %139 {offsets = [0, 256], sizes = [16, 128], strides = [1, 1]} : vector<16x384xf32> to vector<16x128xf32>
    %143 = vector.extract_strided_slice %140 {offsets = [0, 0], sizes = [8, 128], strides = [1, 1]} : vector<16x128xf32> to vector<8x128xf32>
    %144 = vector.extract_strided_slice %140 {offsets = [8, 0], sizes = [8, 128], strides = [1, 1]} : vector<16x128xf32> to vector<8x128xf32>
    %145 = vector.extract_strided_slice %141 {offsets = [0, 0], sizes = [8, 128], strides = [1, 1]} : vector<16x128xf32> to vector<8x128xf32>
    %146 = vector.extract_strided_slice %141 {offsets = [8, 0], sizes = [8, 128], strides = [1, 1]} : vector<16x128xf32> to vector<8x128xf32>
    %147 = vector.extract_strided_slice %142 {offsets = [0, 0], sizes = [8, 128], strides = [1, 1]} : vector<16x128xf32> to vector<8x128xf32>
    %148 = vector.extract_strided_slice %142 {offsets = [8, 0], sizes = [8, 128], strides = [1, 1]} : vector<16x128xf32> to vector<8x128xf32>
    %149 = arith.mulf %143, %145 : vector<8x128xf32>
    %150 = arith.mulf %144, %145 : vector<8x128xf32>
    %151 = arith.mulf %143, %146 : vector<8x128xf32>
    %152 = arith.mulf %144, %146 : vector<8x128xf32>
    %153 = tpu.concatenate %149, %150, %151, %152 in 0 : vector<8x128xf32>, vector<8x128xf32>, vector<8x128xf32>, vector<8x128xf32> -> vector<32x128xf32>
    %154 = arith.truncf %153 : vector<32x128xf32> to vector<32x128xbf16>
    %cst_67 = arith.constant dense<0.000000e+00> : vector<32x4xf32>
    %155 = tpu.matmul %154, %0, %cst_67 {dimension_numbers = #tpu.dot_dimension_numbers<[1], [0], [0], [1], [0, 0, 1, 1], [], []>} : vector<32x128xbf16>, vector<128x4xbf16>, vector<32x4xf32> -> vector<32x4xf32>
    %156 = vector.extract_strided_slice %155 {offsets = [16, 0], sizes = [16, 4], strides = [1, 1]} : vector<32x4xf32> to vector<16x4xf32>
    %157 = vector.extract_strided_slice %155 {offsets = [0, 0], sizes = [16, 4], strides = [1, 1]} : vector<32x4xf32> to vector<16x4xf32>
    %158 = arith.subf %156, %157 : vector<16x4xf32>
    %159 = math.exp %158 : vector<16x4xf32>
    %cst_68 = arith.constant 1.000000e+00 : f32
    %160 = vector.broadcast %cst_68 : f32 to vector<16x4xf32>
    %161 = arith.addf %160, %159 : vector<16x4xf32>
    %162 = tpu.reciprocal %161 {approx = true} : vector<16x4xf32> -> vector<16x4xf32>
    %cst_69 = arith.constant 1.000000e+00 : f32
    %163 = vector.broadcast %cst_69 : f32 to vector<16x4xf32>
    %164 = arith.subf %163, %162 : vector<16x4xf32>
    %165 = tpu.concatenate %162, %164 in 0 : vector<16x4xf32>, vector<16x4xf32> -> vector<32x4xf32>
    %166 = arith.truncf %165 : vector<32x4xf32> to vector<32x4xbf16>
    %cst_70 = arith.constant dense<0.000000e+00> : vector<32x128xf32>
    %167 = tpu.matmul %166, %1, %cst_70 {dimension_numbers = #tpu.dot_dimension_numbers<[1], [0], [0], [1], [0, 0, 1, 1], [], []>} : vector<32x4xbf16>, vector<4x128xbf16>, vector<32x128xf32> -> vector<32x128xf32>
    %168 = vector.extract_strided_slice %167 {offsets = [0, 0], sizes = [8, 128], strides = [1, 1]} : vector<32x128xf32> to vector<8x128xf32>
    %169 = arith.mulf %168, %147 : vector<8x128xf32>
    %170 = vector.extract_strided_slice %167 {offsets = [16, 0], sizes = [8, 128], strides = [1, 1]} : vector<32x128xf32> to vector<8x128xf32>
    %171 = arith.mulf %170, %148 : vector<8x128xf32>
    %172 = arith.addf %169, %171 : vector<8x128xf32>
    %173 = vector.extract_strided_slice %167 {offsets = [8, 0], sizes = [8, 128], strides = [1, 1]} : vector<32x128xf32> to vector<8x128xf32>
    %174 = arith.mulf %173, %147 : vector<8x128xf32>
    %175 = vector.extract_strided_slice %167 {offsets = [24, 0], sizes = [8, 128], strides = [1, 1]} : vector<32x128xf32> to vector<8x128xf32>
    %176 = arith.mulf %175, %148 : vector<8x128xf32>
    %177 = arith.addf %174, %176 : vector<8x128xf32>
    %178 = tpu.concatenate %172, %177 in 0 : vector<8x128xf32>, vector<8x128xf32> -> vector<16x128xf32>
    %179 = arith.truncf %178 : vector<16x128xf32> to vector<16x128xbf16>
    %c1_71 = arith.constant 1 : index
    %c0_72 = arith.constant 0 : index
    %c0_73 = arith.constant 0 : index
    %180 = vector.load %arg7[%c1_71, %c0_72, %c0_73] : memref<2x128x128xbf16, #tpu.memory_space<vmem>>, vector<1x128x128xbf16>
    %181 = vector.shape_cast %180 : vector<1x128x128xbf16> to vector<128x128xbf16>
    %cst_74 = arith.constant dense<0.000000e+00> : vector<16x128xf32>
    %182 = tpu.matmul %179, %181, %cst_74 {dimension_numbers = #tpu.dot_dimension_numbers<[1], [0], [0], [1], [0, 0, 1, 1], [], []>} : vector<16x128xbf16>, vector<128x128xbf16>, vector<16x128xf32> -> vector<16x128xf32>
    %c1_75 = arith.constant 1 : index
    %c0_76 = arith.constant 0 : index
    %c0_77 = arith.constant 0 : index
    %183 = vector.load %arg8[%c1_75, %c0_76, %c0_77] : memref<2x1x128xf32, #tpu.memory_space<vmem>>, vector<1x1x128xf32>
    %184 = vector.shape_cast %183 : vector<1x1x128xf32> to vector<1x128xf32>
    %185 = vector.broadcast %184 : vector<1x128xf32> to vector<16x128xf32>
    %186 = arith.addf %182, %185 : vector<16x128xf32>
    %187 = arith.addf %131, %186 : vector<16x128xf32>
    %c1_78 = arith.constant 1 : index
    %c0_79 = arith.constant 0 : index
    %c0_80 = arith.constant 0 : index
    %188 = vector.load %arg13[%c1_78, %c0_79, %c0_80] : memref<2x1x128xf32, #tpu.memory_space<vmem>>, vector<1x1x128xf32>
    %189 = vector.shape_cast %188 : vector<1x1x128xf32> to vector<1x128xf32>
    %c1_81 = arith.constant 1 : index
    %c0_82 = arith.constant 0 : index
    %c0_83 = arith.constant 0 : index
    %190 = vector.load %arg14[%c1_81, %c0_82, %c0_83] : memref<2x1x128xf32, #tpu.memory_space<vmem>>, vector<1x1x128xf32>
    %191 = vector.shape_cast %190 : vector<1x1x128xf32> to vector<1x128xf32>
    %cst_84 = arith.constant dense<0.000000e+00> : vector<16xf32>
    %192 = vector.multi_reduction <add>, %187, %cst_84 [1] : vector<16x128xf32> to vector<16xf32>
    %193 = vector.shape_cast %192 : vector<16xf32> to vector<16x1xf32>
    %cst_85 = arith.constant 1.280000e+02 : f32
    %194 = vector.broadcast %cst_85 : f32 to vector<16x1xf32>
    %195 = arith.divf %193, %194 : vector<16x1xf32>
    %196 = vector.broadcast %195 : vector<16x1xf32> to vector<16x128xf32>
    %197 = arith.subf %187, %196 : vector<16x128xf32>
    %198 = arith.mulf %197, %197 : vector<16x128xf32>
    %cst_86 = arith.constant dense<0.000000e+00> : vector<16xf32>
    %199 = vector.multi_reduction <add>, %198, %cst_86 [1] : vector<16x128xf32> to vector<16xf32>
    %200 = vector.shape_cast %199 : vector<16xf32> to vector<16x1xf32>
    %cst_87 = arith.constant 1.280000e+02 : f32
    %201 = vector.broadcast %cst_87 : f32 to vector<16x1xf32>
    %202 = arith.divf %200, %201 : vector<16x1xf32>
    %203 = vector.broadcast %195 : vector<16x1xf32> to vector<16x128xf32>
    %204 = arith.subf %187, %203 : vector<16x128xf32>
    %cst_88 = arith.constant 9.99999974E-6 : f32
    %205 = vector.broadcast %cst_88 : f32 to vector<16x1xf32>
    %206 = arith.addf %202, %205 : vector<16x1xf32>
    %207 = math.rsqrt %206 : vector<16x1xf32>
    %208 = vector.broadcast %207 : vector<16x1xf32> to vector<16x128xf32>
    %209 = arith.mulf %204, %208 : vector<16x128xf32>
    %210 = vector.broadcast %189 : vector<1x128xf32> to vector<16x128xf32>
    %211 = arith.mulf %209, %210 : vector<16x128xf32>
    %212 = vector.broadcast %191 : vector<1x128xf32> to vector<16x128xf32>
    %213 = arith.addf %211, %212 : vector<16x128xf32>
    %214 = arith.truncf %213 : vector<16x128xf32> to vector<16x128xbf16>
    %c1_89 = arith.constant 1 : index
    %c0_90 = arith.constant 0 : index
    %c0_91 = arith.constant 0 : index
    %215 = vector.load %arg9[%c1_89, %c0_90, %c0_91] : memref<2x128x256xbf16, #tpu.memory_space<vmem>>, vector<1x128x256xbf16>
    %216 = vector.shape_cast %215 : vector<1x128x256xbf16> to vector<128x256xbf16>
    %cst_92 = arith.constant dense<0.000000e+00> : vector<16x256xf32>
    %217 = tpu.matmul %214, %216, %cst_92 {dimension_numbers = #tpu.dot_dimension_numbers<[1], [0], [0], [1], [0, 0, 1, 1], [], []>} : vector<16x128xbf16>, vector<128x256xbf16>, vector<16x256xf32> -> vector<16x256xf32>
    %c1_93 = arith.constant 1 : index
    %c0_94 = arith.constant 0 : index
    %c0_95 = arith.constant 0 : index
    %218 = vector.load %arg10[%c1_93, %c0_94, %c0_95] : memref<2x1x256xf32, #tpu.memory_space<vmem>>, vector<1x1x256xf32>
    %219 = vector.shape_cast %218 : vector<1x1x256xf32> to vector<1x256xf32>
    %220 = vector.broadcast %219 : vector<1x256xf32> to vector<16x256xf32>
    %221 = arith.addf %217, %220 : vector<16x256xf32>
    %cst_96 = arith.constant 0.000000e+00 : f32
    %222 = vector.broadcast %cst_96 : f32 to vector<16x256xf32>
    %223 = arith.maximumf %221, %222 : vector<16x256xf32>
    %224 = arith.truncf %223 : vector<16x256xf32> to vector<16x256xbf16>
    %c1_97 = arith.constant 1 : index
    %c0_98 = arith.constant 0 : index
    %c0_99 = arith.constant 0 : index
    %225 = vector.load %arg11[%c1_97, %c0_98, %c0_99] : memref<2x256x128xbf16, #tpu.memory_space<vmem>>, vector<1x256x128xbf16>
    %226 = vector.shape_cast %225 : vector<1x256x128xbf16> to vector<256x128xbf16>
    %cst_100 = arith.constant dense<0.000000e+00> : vector<16x128xf32>
    %227 = tpu.matmul %224, %226, %cst_100 {dimension_numbers = #tpu.dot_dimension_numbers<[1], [0], [0], [1], [0, 0, 1, 1], [], []>} : vector<16x256xbf16>, vector<256x128xbf16>, vector<16x128xf32> -> vector<16x128xf32>
    %c1_101 = arith.constant 1 : index
    %c0_102 = arith.constant 0 : index
    %c0_103 = arith.constant 0 : index
    %228 = vector.load %arg12[%c1_101, %c0_102, %c0_103] : memref<2x1x128xf32, #tpu.memory_space<vmem>>, vector<1x1x128xf32>
    %229 = vector.shape_cast %228 : vector<1x1x128xf32> to vector<1x128xf32>
    %230 = vector.broadcast %229 : vector<1x128xf32> to vector<16x128xf32>
    %231 = arith.addf %227, %230 : vector<16x128xf32>
    %232 = arith.addf %213, %231 : vector<16x128xf32>
    %c1_104 = arith.constant 1 : index
    %c0_105 = arith.constant 0 : index
    %c0_106 = arith.constant 0 : index
    %233 = vector.load %arg15[%c1_104, %c0_105, %c0_106] : memref<2x1x128xf32, #tpu.memory_space<vmem>>, vector<1x1x128xf32>
    %234 = vector.shape_cast %233 : vector<1x1x128xf32> to vector<1x128xf32>
    %c1_107 = arith.constant 1 : index
    %c0_108 = arith.constant 0 : index
    %c0_109 = arith.constant 0 : index
    %235 = vector.load %arg16[%c1_107, %c0_108, %c0_109] : memref<2x1x128xf32, #tpu.memory_space<vmem>>, vector<1x1x128xf32>
    %236 = vector.shape_cast %235 : vector<1x1x128xf32> to vector<1x128xf32>
    %cst_110 = arith.constant dense<0.000000e+00> : vector<16xf32>
    %237 = vector.multi_reduction <add>, %232, %cst_110 [1] : vector<16x128xf32> to vector<16xf32>
    %238 = vector.shape_cast %237 : vector<16xf32> to vector<16x1xf32>
    %cst_111 = arith.constant 1.280000e+02 : f32
    %239 = vector.broadcast %cst_111 : f32 to vector<16x1xf32>
    %240 = arith.divf %238, %239 : vector<16x1xf32>
    %241 = vector.broadcast %240 : vector<16x1xf32> to vector<16x128xf32>
    %242 = arith.subf %232, %241 : vector<16x128xf32>
    %243 = arith.mulf %242, %242 : vector<16x128xf32>
    %cst_112 = arith.constant dense<0.000000e+00> : vector<16xf32>
    %244 = vector.multi_reduction <add>, %243, %cst_112 [1] : vector<16x128xf32> to vector<16xf32>
    %245 = vector.shape_cast %244 : vector<16xf32> to vector<16x1xf32>
    %cst_113 = arith.constant 1.280000e+02 : f32
    %246 = vector.broadcast %cst_113 : f32 to vector<16x1xf32>
    %247 = arith.divf %245, %246 : vector<16x1xf32>
    %248 = vector.broadcast %240 : vector<16x1xf32> to vector<16x128xf32>
    %249 = arith.subf %232, %248 : vector<16x128xf32>
    %cst_114 = arith.constant 9.99999974E-6 : f32
    %250 = vector.broadcast %cst_114 : f32 to vector<16x1xf32>
    %251 = arith.addf %247, %250 : vector<16x1xf32>
    %252 = math.rsqrt %251 : vector<16x1xf32>
    %253 = vector.broadcast %252 : vector<16x1xf32> to vector<16x128xf32>
    %254 = arith.mulf %249, %253 : vector<16x128xf32>
    %255 = vector.broadcast %234 : vector<1x128xf32> to vector<16x128xf32>
    %256 = arith.mulf %254, %255 : vector<16x128xf32>
    %257 = vector.broadcast %236 : vector<1x128xf32> to vector<16x128xf32>
    %258 = arith.addf %256, %257 : vector<16x128xf32>
    %259 = vector.extract_strided_slice %258 {offsets = [0, 0], sizes = [8, 128], strides = [1, 1]} : vector<16x128xf32> to vector<8x128xf32>
    %260 = vector.extract_strided_slice %258 {offsets = [8, 0], sizes = [8, 128], strides = [1, 1]} : vector<16x128xf32> to vector<8x128xf32>
    %261 = arith.addf %259, %260 : vector<8x128xf32>
    %cst_115 = arith.constant 5.000000e-01 : f32
    %262 = vector.broadcast %cst_115 : f32 to vector<8x128xf32>
    %263 = arith.mulf %261, %262 : vector<8x128xf32>
    %264 = arith.addf %263, %2 : vector<8x128xf32>
    %c0_116 = arith.constant 0 : index
    %c0_117 = arith.constant 0 : index
    %265 = vector.load %arg17[%c0_116, %c0_117] : memref<8x128xf32, #tpu.memory_space<vmem>>, vector<8x128xf32>
    tpu.vector_store %arg17[%c0_116, %c0_117], %264 {strides = array<i32>} : memref<8x128xf32, #tpu.memory_space<vmem>>, vector<8x128xf32>,
    return
  }
  func.func @transform_0(%arg0: i32) -> (i32, i32) {
    %c0_i32 = arith.constant 0 : i32
    %c0_i32_0 = arith.constant 0 : i32
    return %arg0, %c0_i32 : i32, i32
  }
  func.func @transform_1(%arg0: i32) -> (i32, i32) {
    %c0_i32 = arith.constant 0 : i32
    %c0_i32_0 = arith.constant 0 : i32
    return %arg0, %c0_i32 : i32, i32
  }
  func.func @transform_2(%arg0: i32) -> (i32, i32) {
    %c0_i32 = arith.constant 0 : i32
    %c0_i32_0 = arith.constant 0 : i32
    %c0_i32_1 = arith.constant 0 : i32
    return %c0_i32, %c0_i32_0 : i32, i32
  }
  func.func @transform_3(%arg0: i32) -> (i32, i32) {
    %c0_i32 = arith.constant 0 : i32
    %c0_i32_0 = arith.constant 0 : i32
    %c0_i32_1 = arith.constant 0 : i32
    return %c0_i32, %c0_i32_0 : i32, i32
  }
  func.func @transform_4(%arg0: i32) -> (i32, i32, i32) {
    %c0_i32 = arith.constant 0 : i32
    %c0_i32_0 = arith.constant 0 : i32
    %c0_i32_1 = arith.constant 0 : i32
    %c0_i32_2 = arith.constant 0 : i32
    return %c0_i32, %c0_i32_0, %c0_i32_1 : i32, i32, i32
  }
  func.func @transform_5(%arg0: i32) -> (i32, i32, i32) {
    %c0_i32 = arith.constant 0 : i32
    %c0_i32_0 = arith.constant 0 : i32
    %c0_i32_1 = arith.constant 0 : i32
    %c0_i32_2 = arith.constant 0 : i32
    return %c0_i32, %c0_i32_0, %c0_i32_1 : i32, i32, i32
  }
  func.func @transform_6(%arg0: i32) -> (i32, i32, i32) {
    %c0_i32 = arith.constant 0 : i32
    %c0_i32_0 = arith.constant 0 : i32
    %c0_i32_1 = arith.constant 0 : i32
    %c0_i32_2 = arith.constant 0 : i32
    return %c0_i32, %c0_i32_0, %c0_i32_1 : i32, i32, i32
  }
  func.func @transform_7(%arg0: i32) -> (i32, i32, i32) {
    %c0_i32 = arith.constant 0 : i32
    %c0_i32_0 = arith.constant 0 : i32
    %c0_i32_1 = arith.constant 0 : i32
    %c0_i32_2 = arith.constant 0 : i32
    return %c0_i32, %c0_i32_0, %c0_i32_1 : i32, i32, i32
  }
  func.func @transform_8(%arg0: i32) -> (i32, i32, i32) {
    %c0_i32 = arith.constant 0 : i32
    %c0_i32_0 = arith.constant 0 : i32
    %c0_i32_1 = arith.constant 0 : i32
    %c0_i32_2 = arith.constant 0 : i32
    return %c0_i32, %c0_i32_0, %c0_i32_1 : i32, i32, i32
  }
  func.func @transform_9(%arg0: i32) -> (i32, i32, i32) {
    %c0_i32 = arith.constant 0 : i32
    %c0_i32_0 = arith.constant 0 : i32
    %c0_i32_1 = arith.constant 0 : i32
    %c0_i32_2 = arith.constant 0 : i32
    return %c0_i32, %c0_i32_0, %c0_i32_1 : i32, i32, i32
  }
  func.func @transform_10(%arg0: i32) -> (i32, i32, i32) {
    %c0_i32 = arith.constant 0 : i32
    %c0_i32_0 = arith.constant 0 : i32
    %c0_i32_1 = arith.constant 0 : i32
    %c0_i32_2 = arith.constant 0 : i32
    return %c0_i32, %c0_i32_0, %c0_i32_1 : i32, i32, i32
  }
  func.func @transform_11(%arg0: i32) -> (i32, i32, i32) {
    %c0_i32 = arith.constant 0 : i32
    %c0_i32_0 = arith.constant 0 : i32
    %c0_i32_1 = arith.constant 0 : i32
    %c0_i32_2 = arith.constant 0 : i32
    return %c0_i32, %c0_i32_0, %c0_i32_1 : i32, i32, i32
  }
  func.func @transform_12(%arg0: i32) -> (i32, i32, i32) {
    %c0_i32 = arith.constant 0 : i32
    %c0_i32_0 = arith.constant 0 : i32
    %c0_i32_1 = arith.constant 0 : i32
    %c0_i32_2 = arith.constant 0 : i32
    return %c0_i32, %c0_i32_0, %c0_i32_1 : i32, i32, i32
  }
  func.func @transform_13(%arg0: i32) -> (i32, i32, i32) {
    %c0_i32 = arith.constant 0 : i32
    %c0_i32_0 = arith.constant 0 : i32
    %c0_i32_1 = arith.constant 0 : i32
    %c0_i32_2 = arith.constant 0 : i32
    return %c0_i32, %c0_i32_0, %c0_i32_1 : i32, i32, i32
  }
  func.func @transform_14(%arg0: i32) -> (i32, i32, i32) {
    %c0_i32 = arith.constant 0 : i32
    %c0_i32_0 = arith.constant 0 : i32
    %c0_i32_1 = arith.constant 0 : i32
    %c0_i32_2 = arith.constant 0 : i32
    return %c0_i32, %c0_i32_0, %c0_i32_1 : i32, i32, i32
  }
  func.func @transform_15(%arg0: i32) -> (i32, i32, i32) {
    %c0_i32 = arith.constant 0 : i32
    %c0_i32_0 = arith.constant 0 : i32
    %c0_i32_1 = arith.constant 0 : i32
    %c0_i32_2 = arith.constant 0 : i32
    return %c0_i32, %c0_i32_0, %c0_i32_1 : i32, i32, i32
  }
  func.func @transform_16(%arg0: i32) -> (i32, i32) {
    %c0_i32 = arith.constant 0 : i32
    %c0_i32_0 = arith.constant 0 : i32
    return %arg0, %c0_i32 : i32, i32
  }
}

module attributes {stable_mosaic.version = 11 : i64} {
  func.func @attention_kernel(%arg0: i32, %arg1: memref<8x128xf32, #tpu.memory_space<vmem>>, %arg2: memref<8x128xf32, #tpu.memory_space<vmem>>, %arg3: memref<128x4xbf16, #tpu.memory_space<vmem>>, %arg4: memref<4x128xbf16, #tpu.memory_space<vmem>>, %arg5: memref<2x128x384xbf16, #tpu.memory_space<vmem>>, %arg6: memref<2x1x384xf32, #tpu.memory_space<vmem>>, %arg7: memref<2x128x128xbf16, #tpu.memory_space<vmem>>, %arg8: memref<2x1x128xf32, #tpu.memory_space<vmem>>, %arg9: memref<2x128x256xbf16, #tpu.memory_space<vmem>>, %arg10: memref<2x1x256xf32, #tpu.memory_space<vmem>>, %arg11: memref<2x256x128xbf16, #tpu.memory_space<vmem>>, %arg12: memref<2x1x128xf32, #tpu.memory_space<vmem>>, %arg13: memref<2x1x128xf32, #tpu.memory_space<vmem>>, %arg14: memref<2x1x128xf32, #tpu.memory_space<vmem>>, %arg15: memref<2x1x128xf32, #tpu.memory_space<vmem>>, %arg16: memref<2x1x128xf32, #tpu.memory_space<vmem>>, %arg17: memref<8x128xf32, #tpu.memory_space<vmem>>) attributes {dimension_semantics = [#tpu.dimension_semantics<parallel>], iteration_bounds = array<i64: 2>, scalar_prefetch = 0 : i64, scratch_operands = 0 : i64, tpu.core_type = #tpu.core_type<tc>, window_params = [{transform_indices = @transform_0, window_bounds = array<i64: 8, 128>}, {transform_indices = @transform_1, window_bounds = array<i64: 8, 128>}, {pipeline_mode = #tpu.pipeline_mode<synchronous>, transform_indices = @transform_2, window_bounds = array<i64: 128, 4>}, {pipeline_mode = #tpu.pipeline_mode<synchronous>, transform_indices = @transform_3, window_bounds = array<i64: 4, 128>}, {pipeline_mode = #tpu.pipeline_mode<synchronous>, transform_indices = @transform_4, window_bounds = array<i64: 2, 128, 384>}, {pipeline_mode = #tpu.pipeline_mode<synchronous>, transform_indices = @transform_5, window_bounds = array<i64: 2, 1, 384>}, {pipeline_mode = #tpu.pipeline_mode<synchronous>, transform_indices = @transform_6, window_bounds = array<i64: 2, 128, 128>}, {pipeline_mode = #tpu.pipeline_mode<synchronous>, transform_indices = @transform_7, window_bounds = array<i64: 2, 1, 128>}, {pipeline_mode = #tpu.pipeline_mode<synchronous>, transform_indices = @transform_8, window_bounds = array<i64: 2, 128, 256>}, {pipeline_mode = #tpu.pipeline_mode<synchronous>, transform_indices = @transform_9, window_bounds = array<i64: 2, 1, 256>}, {pipeline_mode = #tpu.pipeline_mode<synchronous>, transform_indices = @transform_10, window_bounds = array<i64: 2, 256, 128>}, {pipeline_mode = #tpu.pipeline_mode<synchronous>, transform_indices = @transform_11, window_bounds = array<i64: 2, 1, 128>}, {pipeline_mode = #tpu.pipeline_mode<synchronous>, transform_indices = @transform_12, window_bounds = array<i64: 2, 1, 128>}, {pipeline_mode = #tpu.pipeline_mode<synchronous>, transform_indices = @transform_13, window_bounds = array<i64: 2, 1, 128>}, {pipeline_mode = #tpu.pipeline_mode<synchronous>, transform_indices = @transform_14, window_bounds = array<i64: 2, 1, 128>}, {pipeline_mode = #tpu.pipeline_mode<synchronous>, transform_indices = @transform_15, window_bounds = array<i64: 2, 1, 128>}, {transform_indices = @transform_16, window_bounds = array<i64: 8, 128>}]} {
    %c0 = arith.constant 0 : index
    %c0_0 = arith.constant 0 : index
    %0 = vector.load %arg3[%c0, %c0_0] : memref<128x4xbf16, #tpu.memory_space<vmem>>, vector<128x4xbf16>
    %c0_1 = arith.constant 0 : index
    %c0_2 = arith.constant 0 : index
    %1 = vector.load %arg4[%c0_1, %c0_2] : memref<4x128xbf16, #tpu.memory_space<vmem>>, vector<4x128xbf16>
    %c0_3 = arith.constant 0 : index
    %c0_4 = arith.constant 0 : index
    %2 = vector.load %arg1[%c0_3, %c0_4] : memref<8x128xf32, #tpu.memory_space<vmem>>, vector<8x128xf32>
    %c0_5 = arith.constant 0 : index
    %c0_6 = arith.constant 0 : index
    %3 = vector.load %arg2[%c0_5, %c0_6] : memref<8x128xf32, #tpu.memory_space<vmem>>, vector<8x128xf32>
    %4 = tpu.concatenate %2, %3 in 0 : vector<8x128xf32>, vector<8x128xf32> -> vector<16x128xf32>
    %5 = arith.truncf %4 : vector<16x128xf32> to vector<16x128xbf16>
    %c0_7 = arith.constant 0 : index
    %c0_8 = arith.constant 0 : index
    %c0_9 = arith.constant 0 : index
    %6 = vector.load %arg5[%c0_7, %c0_8, %c0_9] : memref<2x128x384xbf16, #tpu.memory_space<vmem>>, vector<1x128x384xbf16>
    %7 = vector.shape_cast %6 : vector<1x128x384xbf16> to vector<128x384xbf16>
    %cst = arith.constant dense<0.000000e+00> : vector<16x384xf32>
    %8 = tpu.matmul %5, %7, %cst {dimension_numbers = #tpu.dot_dimension_numbers<[1], [0], [0], [1], [0, 0, 1, 1], [], []>} : vector<16x128xbf16>, vector<128x384xbf16>, vector<16x384xf32> -> vector<16x384xf32>
    %c0_10 = arith.constant 0 : index
    %c0_11 = arith.constant 0 : index
    %c0_12 = arith.constant 0 : index
    %9 = vector.load %arg6[%c0_10, %c0_11, %c0_12] : memref<2x1x384xf32, #tpu.memory_space<vmem>>, vector<1x1x384xf32>
    %10 = vector.shape_cast %9 : vector<1x1x384xf32> to vector<1x384xf32>
    %11 = vector.broadcast %10 : vector<1x384xf32> to vector<16x384xf32>
    %12 = arith.addf %8, %11 : vector<16x384xf32>
    %13 = vector.extract_strided_slice %12 {offsets = [0, 0], sizes = [16, 128], strides = [1, 1]} : vector<16x384xf32> to vector<16x128xf32>
    %14 = vector.extract_strided_slice %12 {offsets = [0, 128], sizes = [16, 128], strides = [1, 1]} : vector<16x384xf32> to vector<16x128xf32>
    %15 = vector.extract_strided_slice %12 {offsets = [0, 256], sizes = [16, 128], strides = [1, 1]} : vector<16x384xf32> to vector<16x128xf32>
    %16 = vector.extract_strided_slice %13 {offsets = [0, 0], sizes = [8, 128], strides = [1, 1]} : vector<16x128xf32> to vector<8x128xf32>
    %17 = vector.extract_strided_slice %13 {offsets = [8, 0], sizes = [8, 128], strides = [1, 1]} : vector<16x128xf32> to vector<8x128xf32>
    %18 = vector.extract_strided_slice %14 {offsets = [0, 0], sizes = [8, 128], strides = [1, 1]} : vector<16x128xf32> to vector<8x128xf32>
    %19 = vector.extract_strided_slice %14 {offsets = [8, 0], sizes = [8, 128], strides = [1, 1]} : vector<16x128xf32> to vector<8x128xf32>
    %20 = vector.extract_strided_slice %15 {offsets = [0, 0], sizes = [8, 128], strides = [1, 1]} : vector<16x128xf32> to vector<8x128xf32>
    %21 = vector.extract_strided_slice %15 {offsets = [8, 0], sizes = [8, 128], strides = [1, 1]} : vector<16x128xf32> to vector<8x128xf32>
    %22 = arith.mulf %16, %18 : vector<8x128xf32>
    %23 = arith.mulf %17, %18 : vector<8x128xf32>
    %24 = arith.mulf %16, %19 : vector<8x128xf32>
    %25 = arith.mulf %17, %19 : vector<8x128xf32>
    %26 = tpu.concatenate %22, %23, %24, %25 in 0 : vector<8x128xf32>, vector<8x128xf32>, vector<8x128xf32>, vector<8x128xf32> -> vector<32x128xf32>
    %27 = arith.truncf %26 : vector<32x128xf32> to vector<32x128xbf16>
    %cst_13 = arith.constant dense<0.000000e+00> : vector<32x4xf32>
    %28 = tpu.matmul %27, %0, %cst_13 {dimension_numbers = #tpu.dot_dimension_numbers<[1], [0], [0], [1], [0, 0, 1, 1], [], []>} : vector<32x128xbf16>, vector<128x4xbf16>, vector<32x4xf32> -> vector<32x4xf32>
    %29 = vector.extract_strided_slice %28 {offsets = [16, 0], sizes = [16, 4], strides = [1, 1]} : vector<32x4xf32> to vector<16x4xf32>
    %30 = vector.extract_strided_slice %28 {offsets = [0, 0], sizes = [16, 4], strides = [1, 1]} : vector<32x4xf32> to vector<16x4xf32>
    %31 = arith.subf %29, %30 : vector<16x4xf32>
    %32 = math.exp %31 : vector<16x4xf32>
    %cst_14 = arith.constant 1.000000e+00 : f32
    %33 = vector.broadcast %cst_14 : f32 to vector<16x4xf32>
    %34 = arith.addf %33, %32 : vector<16x4xf32>
    %35 = tpu.reciprocal %34 {approx = true} : vector<16x4xf32> -> vector<16x4xf32>
    %cst_15 = arith.constant 1.000000e+00 : f32
    %36 = vector.broadcast %cst_15 : f32 to vector<16x4xf32>
    %37 = arith.subf %36, %35 : vector<16x4xf32>
    %38 = tpu.concatenate %35, %37 in 0 : vector<16x4xf32>, vector<16x4xf32> -> vector<32x4xf32>
    %39 = arith.truncf %38 : vector<32x4xf32> to vector<32x4xbf16>
    %cst_16 = arith.constant dense<0.000000e+00> : vector<32x128xf32>
    %40 = tpu.matmul %39, %1, %cst_16 {dimension_numbers = #tpu.dot_dimension_numbers<[1], [0], [0], [1], [0, 0, 1, 1], [], []>} : vector<32x4xbf16>, vector<4x128xbf16>, vector<32x128xf32> -> vector<32x128xf32>
    %41 = vector.extract_strided_slice %40 {offsets = [0, 0], sizes = [8, 128], strides = [1, 1]} : vector<32x128xf32> to vector<8x128xf32>
    %42 = arith.mulf %41, %20 : vector<8x128xf32>
    %43 = vector.extract_strided_slice %40 {offsets = [16, 0], sizes = [8, 128], strides = [1, 1]} : vector<32x128xf32> to vector<8x128xf32>
    %44 = arith.mulf %43, %21 : vector<8x128xf32>
    %45 = arith.addf %42, %44 : vector<8x128xf32>
    %46 = vector.extract_strided_slice %40 {offsets = [8, 0], sizes = [8, 128], strides = [1, 1]} : vector<32x128xf32> to vector<8x128xf32>
    %47 = arith.mulf %46, %20 : vector<8x128xf32>
    %48 = vector.extract_strided_slice %40 {offsets = [24, 0], sizes = [8, 128], strides = [1, 1]} : vector<32x128xf32> to vector<8x128xf32>
    %49 = arith.mulf %48, %21 : vector<8x128xf32>
    %50 = arith.addf %47, %49 : vector<8x128xf32>
    %51 = tpu.concatenate %45, %50 in 0 : vector<8x128xf32>, vector<8x128xf32> -> vector<16x128xf32>
    %52 = arith.truncf %51 : vector<16x128xf32> to vector<16x128xbf16>
    %c0_17 = arith.constant 0 : index
    %c0_18 = arith.constant 0 : index
    %c0_19 = arith.constant 0 : index
    %53 = vector.load %arg7[%c0_17, %c0_18, %c0_19] : memref<2x128x128xbf16, #tpu.memory_space<vmem>>, vector<1x128x128xbf16>
    %54 = vector.shape_cast %53 : vector<1x128x128xbf16> to vector<128x128xbf16>
    %cst_20 = arith.constant dense<0.000000e+00> : vector<16x128xf32>
    %55 = tpu.matmul %52, %54, %cst_20 {dimension_numbers = #tpu.dot_dimension_numbers<[1], [0], [0], [1], [0, 0, 1, 1], [], []>} : vector<16x128xbf16>, vector<128x128xbf16>, vector<16x128xf32> -> vector<16x128xf32>
    %c0_21 = arith.constant 0 : index
    %c0_22 = arith.constant 0 : index
    %c0_23 = arith.constant 0 : index
    %56 = vector.load %arg8[%c0_21, %c0_22, %c0_23] : memref<2x1x128xf32, #tpu.memory_space<vmem>>, vector<1x1x128xf32>
    %57 = vector.shape_cast %56 : vector<1x1x128xf32> to vector<1x128xf32>
    %58 = vector.broadcast %57 : vector<1x128xf32> to vector<16x128xf32>
    %59 = arith.addf %55, %58 : vector<16x128xf32>
    %60 = arith.addf %4, %59 : vector<16x128xf32>
    %c0_24 = arith.constant 0 : index
    %c0_25 = arith.constant 0 : index
    %c0_26 = arith.constant 0 : index
    %61 = vector.load %arg13[%c0_24, %c0_25, %c0_26] : memref<2x1x128xf32, #tpu.memory_space<vmem>>, vector<1x1x128xf32>
    %62 = vector.shape_cast %61 : vector<1x1x128xf32> to vector<1x128xf32>
    %c0_27 = arith.constant 0 : index
    %c0_28 = arith.constant 0 : index
    %c0_29 = arith.constant 0 : index
    %63 = vector.load %arg14[%c0_27, %c0_28, %c0_29] : memref<2x1x128xf32, #tpu.memory_space<vmem>>, vector<1x1x128xf32>
    %64 = vector.shape_cast %63 : vector<1x1x128xf32> to vector<1x128xf32>
    %cst_30 = arith.constant dense<0.000000e+00> : vector<16xf32>
    %65 = vector.multi_reduction <add>, %60, %cst_30 [1] : vector<16x128xf32> to vector<16xf32>
    %66 = vector.shape_cast %65 : vector<16xf32> to vector<16x1xf32>
    %cst_31 = arith.constant 1.280000e+02 : f32
    %67 = vector.broadcast %cst_31 : f32 to vector<16x1xf32>
    %68 = arith.divf %66, %67 : vector<16x1xf32>
    %69 = vector.broadcast %68 : vector<16x1xf32> to vector<16x128xf32>
    %70 = arith.subf %60, %69 : vector<16x128xf32>
    %71 = arith.mulf %70, %70 : vector<16x128xf32>
    %cst_32 = arith.constant dense<0.000000e+00> : vector<16xf32>
    %72 = vector.multi_reduction <add>, %71, %cst_32 [1] : vector<16x128xf32> to vector<16xf32>
    %73 = vector.shape_cast %72 : vector<16xf32> to vector<16x1xf32>
    %cst_33 = arith.constant 1.280000e+02 : f32
    %74 = vector.broadcast %cst_33 : f32 to vector<16x1xf32>
    %75 = arith.divf %73, %74 : vector<16x1xf32>
    %76 = vector.broadcast %68 : vector<16x1xf32> to vector<16x128xf32>
    %77 = arith.subf %60, %76 : vector<16x128xf32>
    %cst_34 = arith.constant 9.99999974E-6 : f32
    %78 = vector.broadcast %cst_34 : f32 to vector<16x1xf32>
    %79 = arith.addf %75, %78 : vector<16x1xf32>
    %80 = math.rsqrt %79 : vector<16x1xf32>
    %81 = vector.broadcast %80 : vector<16x1xf32> to vector<16x128xf32>
    %82 = arith.mulf %77, %81 : vector<16x128xf32>
    %83 = vector.broadcast %62 : vector<1x128xf32> to vector<16x128xf32>
    %84 = arith.mulf %82, %83 : vector<16x128xf32>
    %85 = vector.broadcast %64 : vector<1x128xf32> to vector<16x128xf32>
    %86 = arith.addf %84, %85 : vector<16x128xf32>
    %87 = arith.truncf %86 : vector<16x128xf32> to vector<16x128xbf16>
    %c0_35 = arith.constant 0 : index
    %c0_36 = arith.constant 0 : index
    %c0_37 = arith.constant 0 : index
    %88 = vector.load %arg9[%c0_35, %c0_36, %c0_37] : memref<2x128x256xbf16, #tpu.memory_space<vmem>>, vector<1x128x256xbf16>
    %89 = vector.shape_cast %88 : vector<1x128x256xbf16> to vector<128x256xbf16>
    %cst_38 = arith.constant dense<0.000000e+00> : vector<16x256xf32>
    %90 = tpu.matmul %87, %89, %cst_38 {dimension_numbers = #tpu.dot_dimension_numbers<[1], [0], [0], [1], [0, 0, 1, 1], [], []>} : vector<16x128xbf16>, vector<128x256xbf16>, vector<16x256xf32> -> vector<16x256xf32>
    %c0_39 = arith.constant 0 : index
    %c0_40 = arith.constant 0 : index
    %c0_41 = arith.constant 0 : index
    %91 = vector.load %arg10[%c0_39, %c0_40, %c0_41] : memref<2x1x256xf32, #tpu.memory_space<vmem>>, vector<1x1x256xf32>
    %92 = vector.shape_cast %91 : vector<1x1x256xf32> to vector<1x256xf32>
    %93 = vector.broadcast %92 : vector<1x256xf32> to vector<16x256xf32>
    %94 = arith.addf %90, %93 : vector<16x256xf32>
    %cst_42 = arith.constant 0.000000e+00 : f32
    %95 = vector.broadcast %cst_42 : f32 to vector<16x256xf32>
    %96 = arith.maximumf %94, %95 : vector<16x256xf32>
    %97 = arith.truncf %96 : vector<16x256xf32> to vector<16x256xbf16>
    %c0_43 = arith.constant 0 : index
    %c0_44 = arith.constant 0 : index
    %c0_45 = arith.constant 0 : index
    %98 = vector.load %arg11[%c0_43, %c0_44, %c0_45] : memref<2x256x128xbf16, #tpu.memory_space<vmem>>, vector<1x256x128xbf16>
    %99 = vector.shape_cast %98 : vector<1x256x128xbf16> to vector<256x128xbf16>
    %cst_46 = arith.constant dense<0.000000e+00> : vector<16x128xf32>
    %100 = tpu.matmul %97, %99, %cst_46 {dimension_numbers = #tpu.dot_dimension_numbers<[1], [0], [0], [1], [0, 0, 1, 1], [], []>} : vector<16x256xbf16>, vector<256x128xbf16>, vector<16x128xf32> -> vector<16x128xf32>
    %c0_47 = arith.constant 0 : index
    %c0_48 = arith.constant 0 : index
    %c0_49 = arith.constant 0 : index
    %101 = vector.load %arg12[%c0_47, %c0_48, %c0_49] : memref<2x1x128xf32, #tpu.memory_space<vmem>>, vector<1x1x128xf32>
    %102 = vector.shape_cast %101 : vector<1x1x128xf32> to vector<1x128xf32>
    %103 = vector.broadcast %102 : vector<1x128xf32> to vector<16x128xf32>
    %104 = arith.addf %100, %103 : vector<16x128xf32>
    %105 = arith.addf %86, %104 : vector<16x128xf32>
    %c0_50 = arith.constant 0 : index
    %c0_51 = arith.constant 0 : index
    %c0_52 = arith.constant 0 : index
    %106 = vector.load %arg15[%c0_50, %c0_51, %c0_52] : memref<2x1x128xf32, #tpu.memory_space<vmem>>, vector<1x1x128xf32>
    %107 = vector.shape_cast %106 : vector<1x1x128xf32> to vector<1x128xf32>
    %c0_53 = arith.constant 0 : index
    %c0_54 = arith.constant 0 : index
    %c0_55 = arith.constant 0 : index
    %108 = vector.load %arg16[%c0_53, %c0_54, %c0_55] : memref<2x1x128xf32, #tpu.memory_space<vmem>>, vector<1x1x128xf32>
    %109 = vector.shape_cast %108 : vector<1x1x128xf32> to vector<1x128xf32>
    %cst_56 = arith.constant dense<0.000000e+00> : vector<16xf32>
    %110 = vector.multi_reduction <add>, %105, %cst_56 [1] : vector<16x128xf32> to vector<16xf32>
    %111 = vector.shape_cast %110 : vector<16xf32> to vector<16x1xf32>
    %cst_57 = arith.constant 1.280000e+02 : f32
    %112 = vector.broadcast %cst_57 : f32 to vector<16x1xf32>
    %113 = arith.divf %111, %112 : vector<16x1xf32>
    %114 = vector.broadcast %113 : vector<16x1xf32> to vector<16x128xf32>
    %115 = arith.subf %105, %114 : vector<16x128xf32>
    %116 = arith.mulf %115, %115 : vector<16x128xf32>
    %cst_58 = arith.constant dense<0.000000e+00> : vector<16xf32>
    %117 = vector.multi_reduction <add>, %116, %cst_58 [1] : vector<16x128xf32> to vector<16xf32>
    %118 = vector.shape_cast %117 : vector<16xf32> to vector<16x1xf32>
    %cst_59 = arith.constant 1.280000e+02 : f32
    %119 = vector.broadcast %cst_59 : f32 to vector<16x1xf32>
    %120 = arith.divf %118, %119 : vector<16x1xf32>
    %121 = vector.broadcast %113 : vector<16x1xf32> to vector<16x128xf32>
    %122 = arith.subf %105, %121 : vector<16x128xf32>
    %cst_60 = arith.constant 9.99999974E-6 : f32
    %123 = vector.broadcast %cst_60 : f32 to vector<16x1xf32>
    %124 = arith.addf %120, %123 : vector<16x1xf32>
    %125 = math.rsqrt %124 : vector<16x1xf32>
    %126 = vector.broadcast %125 : vector<16x1xf32> to vector<16x128xf32>
    %127 = arith.mulf %122, %126 : vector<16x128xf32>
    %128 = vector.broadcast %107 : vector<1x128xf32> to vector<16x128xf32>
    %129 = arith.mulf %127, %128 : vector<16x128xf32>
    %130 = vector.broadcast %109 : vector<1x128xf32> to vector<16x128xf32>
    %131 = arith.addf %129, %130 : vector<16x128xf32>
    %132 = arith.truncf %131 : vector<16x128xf32> to vector<16x128xbf16>
    %c1 = arith.constant 1 : index
    %c0_61 = arith.constant 0 : index
    %c0_62 = arith.constant 0 : index
    %133 = vector.load %arg5[%c1, %c0_61, %c0_62] : memref<2x128x384xbf16, #tpu.memory_space<vmem>>, vector<1x128x384xbf16>
    %134 = vector.shape_cast %133 : vector<1x128x384xbf16> to vector<128x384xbf16>
    %cst_63 = arith.constant dense<0.000000e+00> : vector<16x384xf32>
    %135 = tpu.matmul %132, %134, %cst_63 {dimension_numbers = #tpu.dot_dimension_numbers<[1], [0], [0], [1], [0, 0, 1, 1], [], []>} : vector<16x128xbf16>, vector<128x384xbf16>, vector<16x384xf32> -> vector<16x384xf32>
    %c1_64 = arith.constant 1 : index
    %c0_65 = arith.constant 0 : index
    %c0_66 = arith.constant 0 : index
    %136 = vector.load %arg6[%c1_64, %c0_65, %c0_66] : memref<2x1x384xf32, #tpu.memory_space<vmem>>, vector<1x1x384xf32>
    %137 = vector.shape_cast %136 : vector<1x1x384xf32> to vector<1x384xf32>
    %138 = vector.broadcast %137 : vector<1x384xf32> to vector<16x384xf32>
    %139 = arith.addf %135, %138 : vector<16x384xf32>
    %140 = vector.extract_strided_slice %139 {offsets = [0, 0], sizes = [16, 128], strides = [1, 1]} : vector<16x384xf32> to vector<16x128xf32>
    %141 = vector.extract_strided_slice %139 {offsets = [0, 128], sizes = [16, 128], strides = [1, 1]} : vector<16x384xf32> to vector<16x128xf32>
    %142 = vector.extract_strided_slice %139 {offsets = [0, 256], sizes = [16, 128], strides = [1, 1]} : vector<16x384xf32> to vector<16x128xf32>
    %143 = vector.extract_strided_slice %140 {offsets = [0, 0], sizes = [8, 128], strides = [1, 1]} : vector<16x128xf32> to vector<8x128xf32>
    %144 = vector.extract_strided_slice %140 {offsets = [8, 0], sizes = [8, 128], strides = [1, 1]} : vector<16x128xf32> to vector<8x128xf32>
    %145 = vector.extract_strided_slice %141 {offsets = [0, 0], sizes = [8, 128], strides = [1, 1]} : vector<16x128xf32> to vector<8x128xf32>
    %146 = vector.extract_strided_slice %141 {offsets = [8, 0], sizes = [8, 128], strides = [1, 1]} : vector<16x128xf32> to vector<8x128xf32>
    %147 = vector.extract_strided_slice %142 {offsets = [0, 0], sizes = [8, 128], strides = [1, 1]} : vector<16x128xf32> to vector<8x128xf32>
    %148 = vector.extract_strided_slice %142 {offsets = [8, 0], sizes = [8, 128], strides = [1, 1]} : vector<16x128xf32> to vector<8x128xf32>
    %149 = arith.mulf %143, %145 : vector<8x128xf32>
    %150 = arith.mulf %144, %145 : vector<8x128xf32>
    %151 = arith.mulf %143, %146 : vector<8x128xf32>
    %152 = arith.mulf %144, %146 : vector<8x128xf32>
    %153 = tpu.concatenate %149, %150, %151, %152 in 0 : vector<8x128xf32>, vector<8x128xf32>, vector<8x128xf32>, vector<8x128xf32> -> vector<32x128xf32>
    %154 = arith.truncf %153 : vector<32x128xf32> to vector<32x128xbf16>
    %cst_67 = arith.constant dense<0.000000e+00> : vector<32x4xf32>
    %155 = tpu.matmul %154, %0, %cst_67 {dimension_numbers = #tpu.dot_dimension_numbers<[1], [0], [0], [1], [0, 0, 1, 1], [], []>} : vector<32x128xbf16>, vector<128x4xbf16>, vector<32x4xf32> -> vector<32x4xf32>
    %156 = vector.extract_strided_slice %155 {offsets = [16, 0], sizes = [16, 4], strides = [1, 1]} : vector<32x4xf32> to vector<16x4xf32>
    %157 = vector.extract_strided_slice %155 {offsets = [0, 0], sizes = [16, 4], strides = [1, 1]} : vector<32x4xf32> to vector<16x4xf32>
    %158 = arith.subf %156, %157 : vector<16x4xf32>
    %159 = math.exp %158 : vector<16x4xf32>
    %cst_68 = arith.constant 1.000000e+00 : f32
    %160 = vector.broadcast %cst_68 : f32 to vector<16x4xf32>
    %161 = arith.addf %160, %159 : vector<16x4xf32>
    %162 = tpu.reciprocal %161 {approx = true} : vector<16x4xf32> -> vector<16x4xf32>
    %cst_69 = arith.constant 1.000000e+00 : f32
    %163 = vector.broadcast %cst_69 : f32 to vector<16x4xf32>
    %164 = arith.subf %163, %162 : vector<16x4xf32>
    %165 = tpu.concatenate %162, %164 in 0 : vector<16x4xf32>, vector<16x4xf32> -> vector<32x4xf32>
    %166 = arith.truncf %165 : vector<32x4xf32> to vector<32x4xbf16>
    %cst_70 = arith.constant dense<0.000000e+00> : vector<32x128xf32>
    %167 = tpu.matmul %166, %1, %cst_70 {dimension_numbers = #tpu.dot_dimension_numbers<[1], [0], [0], [1], [0, 0, 1, 1], [], []>} : vector<32x4xbf16>, vector<4x128xbf16>, vector<32x128xf32> -> vector<32x128xf32>
    %168 = vector.extract_strided_slice %167 {offsets = [0, 0], sizes = [8, 128], strides = [1, 1]} : vector<32x128xf32> to vector<8x128xf32>
    %169 = arith.mulf %168, %147 : vector<8x128xf32>
    %170 = vector.extract_strided_slice %167 {offsets = [16, 0], sizes = [8, 128], strides = [1, 1]} : vector<32x128xf32> to vector<8x128xf32>
    %171 = arith.mulf %170, %148 : vector<8x128xf32>
    %172 = arith.addf %169, %171 : vector<8x128xf32>
    %173 = vector.extract_strided_slice %167 {offsets = [8, 0], sizes = [8, 128], strides = [1, 1]} : vector<32x128xf32> to vector<8x128xf32>
    %174 = arith.mulf %173, %147 : vector<8x128xf32>
    %175 = vector.extract_strided_slice %167 {offsets = [24, 0], sizes = [8, 128], strides = [1, 1]} : vector<32x128xf32> to vector<8x128xf32>
    %176 = arith.mulf %175, %148 : vector<8x128xf32>
    %177 = arith.addf %174, %176 : vector<8x128xf32>
    %178 = tpu.concatenate %172, %177 in 0 : vector<8x128xf32>, vector<8x128xf32> -> vector<16x128xf32>
    %179 = arith.truncf %178 : vector<16x128xf32> to vector<16x128xbf16>
    %c1_71 = arith.constant 1 : index
    %c0_72 = arith.constant 0 : index
    %c0_73 = arith.constant 0 : index
    %180 = vector.load %arg7[%c1_71, %c0_72, %c0_73] : memref<2x128x128xbf16, #tpu.memory_space<vmem>>, vector<1x128x128xbf16>
    %181 = vector.shape_cast %180 : vector<1x128x128xbf16> to vector<128x128xbf16>
    %cst_74 = arith.constant dense<0.000000e+00> : vector<16x128xf32>
    %182 = tpu.matmul %179, %181, %cst_74 {dimension_numbers = #tpu.dot_dimension_numbers<[1], [0], [0], [1], [0, 0, 1, 1], [], []>} : vector<16x128xbf16>, vector<128x128xbf16>, vector<16x128xf32> -> vector<16x128xf32>
    %c1_75 = arith.constant 1 : index
    %c0_76 = arith.constant 0 : index
    %c0_77 = arith.constant 0 : index
    %183 = vector.load %arg8[%c1_75, %c0_76, %c0_77] : memref<2x1x128xf32, #tpu.memory_space<vmem>>, vector<1x1x128xf32>
    %184 = vector.shape_cast %183 : vector<1x1x128xf32> to vector<1x128xf32>
    %185 = vector.broadcast %184 : vector<1x128xf32> to vector<16x128xf32>
    %186 = arith.addf %182, %185 : vector<16x128xf32>
    %187 = arith.addf %131, %186 : vector<16x128xf32>
    %c1_78 = arith.constant 1 : index
    %c0_79 = arith.constant 0 : index
    %c0_80 = arith.constant 0 : index
    %188 = vector.load %arg13[%c1_78, %c0_79, %c0_80] : memref<2x1x128xf32, #tpu.memory_space<vmem>>, vector<1x1x128xf32>
    %189 = vector.shape_cast %188 : vector<1x1x128xf32> to vector<1x128xf32>
    %c1_81 = arith.constant 1 : index
    %c0_82 = arith.constant 0 : index
    %c0_83 = arith.constant 0 : index
    %190 = vector.load %arg14[%c1_81, %c0_82, %c0_83] : memref<2x1x128xf32, #tpu.memory_space<vmem>>, vector<1x1x128xf32>
    %191 = vector.shape_cast %190 : vector<1x1x128xf32> to vector<1x128xf32>
    %cst_84 = arith.constant dense<0.000000e+00> : vector<16xf32>
    %192 = vector.multi_reduction <add>, %187, %cst_84 [1] : vector<16x128xf32> to vector<16xf32>
    %193 = vector.shape_cast %192 : vector<16xf32> to vector<16x1xf32>
    %cst_85 = arith.constant 1.280000e+02 : f32
    %194 = vector.broadcast %cst_85 : f32 to vector<16x1xf32>
    %195 = arith.divf %193, %194 : vector<16x1xf32>
    %196 = vector.broadcast %195 : vector<16x1xf32> to vector<16x128xf32>
    %197 = arith.subf %187, %196 : vector<16x128xf32>
    %198 = arith.mulf %197, %197 : vector<16x128xf32>
    %cst_86 = arith.constant dense<0.000000e+00> : vector<16xf32>
    %199 = vector.multi_reduction <add>, %198, %cst_86 [1] : vector<16x128xf32> to vector<16xf32>
    %200 = vector.shape_cast %199 : vector<16xf32> to vector<16x1xf32>
    %cst_87 = arith.constant 1.280000e+02 : f32
    %201 = vector.broadcast %cst_87 : f32 to vector<16x1xf32>
    %202 = arith.divf %200, %201 : vector<16x1xf32>
    %203 = vector.broadcast %195 : vector<16x1xf32> to vector<16x128xf32>
    %204 = arith.subf %187, %203 : vector<16x128xf32>
    %cst_88 = arith.constant 9.99999974E-6 : f32
    %205 = vector.broadcast %cst_88 : f32 to vector<16x1xf32>
    %206 = arith.addf %202, %205 : vector<16x1xf32>
    %207 = math.rsqrt %206 : vector<16x1xf32>
    %208 = vector.broadcast %207 : vector<16x1xf32> to vector<16x128xf32>
    %209 = arith.mulf %204, %208 : vector<16x128xf32>
    %210 = vector.broadcast %189 : vector<1x128xf32> to vector<16x128xf32>
    %211 = arith.mulf %209, %210 : vector<16x128xf32>
    %212 = vector.broadcast %191 : vector<1x128xf32> to vector<16x128xf32>
    %213 = arith.addf %211, %212 : vector<16x128xf32>
    %214 = arith.truncf %213 : vector<16x128xf32> to vector<16x128xbf16>
    %c1_89 = arith.constant 1 : index
    %c0_90 = arith.constant 0 : index
    %c0_91 = arith.constant 0 : index
    %215 = vector.load %arg9[%c1_89, %c0_90, %c0_91] : memref<2x128x256xbf16, #tpu.memory_space<vmem>>, vector<1x128x256xbf16>
    %216 = vector.shape_cast %215 : vector<1x128x256xbf16> to vector<128x256xbf16>
    %cst_92 = arith.constant dense<0.000000e+00> : vector<16x256xf32>
    %217 = tpu.matmul %214, %216, %cst_92 {dimension_numbers = #tpu.dot_dimension_numbers<[1], [0], [0], [1], [0, 0, 1, 1], [], []>} : vector<16x128xbf16>, vector<128x256xbf16>, vector<16x256xf32> -> vector<16x256xf32>
    %c1_93 = arith.constant 1 : index
    %c0_94 = arith.constant 0 : index
    %c0_95 = arith.constant 0 : index
    %218 = vector.load %arg10[%c1_93, %c0_94, %c0_95] : memref<2x1x256xf32, #tpu.memory_space<vmem>>, vector<1x1x256xf32>
    %219 = vector.shape_cast %218 : vector<1x1x256xf32> to vector<1x256xf32>
    %220 = vector.broadcast %219 : vector<1x256xf32> to vector<16x256xf32>
    %221 = arith.addf %217, %220 : vector<16x256xf32>
    %cst_96 = arith.constant 0.000000e+00 : f32
    %222 = vector.broadcast %cst_96 : f32 to vector<16x256xf32>
    %223 = arith.maximumf %221, %222 : vector<16x256xf32>
    %224 = arith.truncf %223 : vector<16x256xf32> to vector<16x256xbf16>
    %c1_97 = arith.constant 1 : index
    %c0_98 = arith.constant 0 : index
    %c0_99 = arith.constant 0 : index
    %225 = vector.load %arg11[%c1_97, %c0_98, %c0_99] : memref<2x256x128xbf16, #tpu.memory_space<vmem>>, vector<1x256x128xbf16>
    %226 = vector.shape_cast %225 : vector<1x256x128xbf16> to vector<256x128xbf16>
    %cst_100 = arith.constant dense<0.000000e+00> : vector<16x128xf32>
    %227 = tpu.matmul %224, %226, %cst_100 {dimension_numbers = #tpu.dot_dimension_numbers<[1], [0], [0], [1], [0, 0, 1, 1], [], []>} : vector<16x256xbf16>, vector<256x128xbf16>, vector<16x128xf32> -> vector<16x128xf32>
    %c1_101 = arith.constant 1 : index
    %c0_102 = arith.constant 0 : index
    %c0_103 = arith.constant 0 : index
    %228 = vector.load %arg12[%c1_101, %c0_102, %c0_103] : memref<2x1x128xf32, #tpu.memory_space<vmem>>, vector<1x1x128xf32>
    %229 = vector.shape_cast %228 : vector<1x1x128xf32> to vector<1x128xf32>
    %230 = vector.broadcast %229 : vector<1x128xf32> to vector<16x128xf32>
    %231 = arith.addf %227, %230 : vector<16x128xf32>
    %232 = arith.addf %213, %231 : vector<16x128xf32>
    %c1_104 = arith.constant 1 : index
    %c0_105 = arith.constant 0 : index
    %c0_106 = arith.constant 0 : index
    %233 = vector.load %arg15[%c1_104, %c0_105, %c0_106] : memref<2x1x128xf32, #tpu.memory_space<vmem>>, vector<1x1x128xf32>
    %234 = vector.shape_cast %233 : vector<1x1x128xf32> to vector<1x128xf32>
    %c1_107 = arith.constant 1 : index
    %c0_108 = arith.constant 0 : index
    %c0_109 = arith.constant 0 : index
    %235 = vector.load %arg16[%c1_107, %c0_108, %c0_109] : memref<2x1x128xf32, #tpu.memory_space<vmem>>, vector<1x1x128xf32>
    %236 = vector.shape_cast %235 : vector<1x1x128xf32> to vector<1x128xf32>
    %cst_110 = arith.constant dense<0.000000e+00> : vector<16xf32>
    %237 = vector.multi_reduction <add>, %232, %cst_110 [1] : vector<16x128xf32> to vector<16xf32>
    %238 = vector.shape_cast %237 : vector<16xf32> to vector<16x1xf32>
    %cst_111 = arith.constant 1.280000e+02 : f32
    %239 = vector.broadcast %cst_111 : f32 to vector<16x1xf32>
    %240 = arith.divf %238, %239 : vector<16x1xf32>
    %241 = vector.broadcast %240 : vector<16x1xf32> to vector<16x128xf32>
    %242 = arith.subf %232, %241 : vector<16x128xf32>
    %243 = arith.mulf %242, %242 : vector<16x128xf32>
    %cst_112 = arith.constant dense<0.000000e+00> : vector<16xf32>
    %244 = vector.multi_reduction <add>, %243, %cst_112 [1] : vector<16x128xf32> to vector<16xf32>
    %245 = vector.shape_cast %244 : vector<16xf32> to vector<16x1xf32>
    %cst_113 = arith.constant 1.280000e+02 : f32
    %246 = vector.broadcast %cst_113 : f32 to vector<16x1xf32>
    %247 = arith.divf %245, %246 : vector<16x1xf32>
    %248 = vector.broadcast %240 : vector<16x1xf32> to vector<16x128xf32>
    %249 = arith.subf %232, %248 : vector<16x128xf32>
    %cst_114 = arith.constant 9.99999974E-6 : f32
    %250 = vector.broadcast %cst_114 : f32 to vector<16x1xf32>
    %251 = arith.addf %247, %250 : vector<16x1xf32>
    %252 = math.rsqrt %251 : vector<16x1xf32>
    %253 = vector.broadcast %252 : vector<16x1xf32> to vector<16x128xf32>
    %254 = arith.mulf %249, %253 : vector<16x128xf32>
    %255 = vector.broadcast %234 : vector<1x128xf32> to vector<16x128xf32>
    %256 = arith.mulf %254, %255 : vector<16x128xf32>
    %257 = vector.broadcast %236 : vector<1x128xf32> to vector<16x128xf32>
    %258 = arith.addf %256, %257 : vector<16x128xf32>
    %259 = vector.extract_strided_slice %258 {offsets = [0, 0], sizes = [8, 128], strides = [1, 1]} : vector<16x128xf32> to vector<8x128xf32>
    %260 = vector.extract_strided_slice %258 {offsets = [8, 0], sizes = [8, 128], strides = [1, 1]} : vector<16x128xf32> to vector<8x128xf32>
    %261 = arith.addf %259, %260 : vector<8x128xf32>
    %cst_115 = arith.constant 5.000000e-01 : f32
    %262 = vector.broadcast %cst_115 : f32 to vector<8x128xf32>
    %263 = arith.mulf %261, %262 : vector<8x128xf32>
    %264 = arith.addf %263, %2 : vector<8x128xf32>
    %c0_116 = arith.constant 0 : index
    %c0_117 = arith.constant 0 : index
    %265 = vector.load %arg17[%c0_116, %c0_117] : memref<8x128xf32, #tpu.memory_space<vmem>>, vector<8x128xf32>
    tpu.vector_store %arg17[%c0_116, %c0_117], %264 {strides = array<i32>} : memref<8x128xf32, #tpu.memory_space<vmem>>, vector<8x128xf32>,
    return
  }
  func.func @transform_0(%arg0: i32) -> (i32, i32) {
    %c0_i32 = arith.constant 0 : i32
    %c0_i32_0 = arith.constant 0 : i32
    return %arg0, %c0_i32 : i32, i32
  }
  func.func @transform_1(%arg0: i32) -> (i32, i32) {
    %c0_i32 = arith.constant 0 : i32
    %c0_i32_0 = arith.constant 0 : i32
    return %arg0, %c0_i32 : i32, i32
  }
  func.func @transform_2(%arg0: i32) -> (i32, i32) {
    %c0_i32 = arith.constant 0 : i32
    %c0_i32_0 = arith.constant 0 : i32
    %c0_i32_1 = arith.constant 0 : i32
    return %c0_i32, %c0_i32_0 : i32, i32
  }
  func.func @transform_3(%arg0: i32) -> (i32, i32) {
    %c0_i32 = arith.constant 0 : i32
    %c0_i32_0 = arith.constant 0 : i32
    %c0_i32_1 = arith.constant 0 : i32
    return %c0_i32, %c0_i32_0 : i32, i32
  }
  func.func @transform_4(%arg0: i32) -> (i32, i32, i32) {
    %c0_i32 = arith.constant 0 : i32
    %c0_i32_0 = arith.constant 0 : i32
    %c0_i32_1 = arith.constant 0 : i32
    %c0_i32_2 = arith.constant 0 : i32
    return %c0_i32, %c0_i32_0, %c0_i32_1 : i32, i32, i32
  }
  func.func @transform_5(%arg0: i32) -> (i32, i32, i32) {
    %c0_i32 = arith.constant 0 : i32
    %c0_i32_0 = arith.constant 0 : i32
    %c0_i32_1 = arith.constant 0 : i32
    %c0_i32_2 = arith.constant 0 : i32
    return %c0_i32, %c0_i32_0, %c0_i32_1 : i32, i32, i32
  }
  func.func @transform_6(%arg0: i32) -> (i32, i32, i32) {
    %c0_i32 = arith.constant 0 : i32
    %c0_i32_0 = arith.constant 0 : i32
    %c0_i32_1 = arith.constant 0 : i32
    %c0_i32_2 = arith.constant 0 : i32
    return %c0_i32, %c0_i32_0, %c0_i32_1 : i32, i32, i32
  }
  func.func @transform_7(%arg0: i32) -> (i32, i32, i32) {
    %c0_i32 = arith.constant 0 : i32
    %c0_i32_0 = arith.constant 0 : i32
    %c0_i32_1 = arith.constant 0 : i32
    %c0_i32_2 = arith.constant 0 : i32
    return %c0_i32, %c0_i32_0, %c0_i32_1 : i32, i32, i32
  }
  func.func @transform_8(%arg0: i32) -> (i32, i32, i32) {
    %c0_i32 = arith.constant 0 : i32
    %c0_i32_0 = arith.constant 0 : i32
    %c0_i32_1 = arith.constant 0 : i32
    %c0_i32_2 = arith.constant 0 : i32
    return %c0_i32, %c0_i32_0, %c0_i32_1 : i32, i32, i32
  }
  func.func @transform_9(%arg0: i32) -> (i32, i32, i32) {
    %c0_i32 = arith.constant 0 : i32
    %c0_i32_0 = arith.constant 0 : i32
    %c0_i32_1 = arith.constant 0 : i32
    %c0_i32_2 = arith.constant 0 : i32
    return %c0_i32, %c0_i32_0, %c0_i32_1 : i32, i32, i32
  }
  func.func @transform_10(%arg0: i32) -> (i32, i32, i32) {
    %c0_i32 = arith.constant 0 : i32
    %c0_i32_0 = arith.constant 0 : i32
    %c0_i32_1 = arith.constant 0 : i32
    %c0_i32_2 = arith.constant 0 : i32
    return %c0_i32, %c0_i32_0, %c0_i32_1 : i32, i32, i32
  }
  func.func @transform_11(%arg0: i32) -> (i32, i32, i32) {
    %c0_i32 = arith.constant 0 : i32
    %c0_i32_0 = arith.constant 0 : i32
    %c0_i32_1 = arith.constant 0 : i32
    %c0_i32_2 = arith.constant 0 : i32
    return %c0_i32, %c0_i32_0, %c0_i32_1 : i32, i32, i32
  }
  func.func @transform_12(%arg0: i32) -> (i32, i32, i32) {
    %c0_i32 = arith.constant 0 : i32
    %c0_i32_0 = arith.constant 0 : i32
    %c0_i32_1 = arith.constant 0 : i32
    %c0_i32_2 = arith.constant 0 : i32
    return %c0_i32, %c0_i32_0, %c0_i32_1 : i32, i32, i32
  }
  func.func @transform_13(%arg0: i32) -> (i32, i32, i32) {
    %c0_i32 = arith.constant 0 : i32
    %c0_i32_0 = arith.constant 0 : i32
    %c0_i32_1 = arith.constant 0 : i32
    %c0_i32_2 = arith.constant 0 : i32
    return %c0_i32, %c0_i32_0, %c0_i32_1 : i32, i32, i32
  }
  func.func @transform_14(%arg0: i32) -> (i32, i32, i32) {
    %c0_i32 = arith.constant 0 : i32
    %c0_i32_0 = arith.constant 0 : i32
    %c0_i32_1 = arith.constant 0 : i32
    %c0_i32_2 = arith.constant 0 : i32
    return %c0_i32, %c0_i32_0, %c0_i32_1 : i32, i32, i32
  }
  func.func @transform_15(%arg0: i32) -> (i32, i32, i32) {
    %c0_i32 = arith.constant 0 : i32
    %c0_i32_0 = arith.constant 0 : i32
    %c0_i32_1 = arith.constant 0 : i32
    %c0_i32_2 = arith.constant 0 : i32
    return %c0_i32, %c0_i32_0, %c0_i32_1 : i32, i32, i32
  }
  func.func @transform_16(%arg0: i32) -> (i32, i32) {
    %c0_i32 = arith.constant 0 : i32
    %c0_i32_0 = arith.constant 0 : i32
    return %arg0, %c0_i32 : i32, i32
  }
}

</mosaic_0001>

<llo_original>
// kernel: tpu_custom_call.1
$region0: #{tpu_custom_call.1}
  #allocation0 [shape = 'u32[]', space=smem, size = 0x4, offset = 0x4, fixed_abs, tag = 'smem constant byte address 0x4 - core index']
  #allocation1 [shape = 'u32[144,128]{1,0:T(1,128)}', space=vmem, size = 0x12000, scoped, tag = 'internal scratch']
  %s0 = inlined_call_operand.vmem [shape: f32[16,128], index: 0, kind: input, shape index: {}]
  %s1 = inlined_call_operand.vmem [shape: f32[16,128], index: 1, kind: input, shape index: {}]
  %s2 = inlined_call_operand.vmem [shape: bf16[128,4], index: 2, kind: input, shape index: {}]
  %s3 = inlined_call_operand.vmem [shape: bf16[4,128], index: 3, kind: input, shape index: {}]
  %s4 = inlined_call_operand.hbm [shape: bf16[2,128,384], index: 4, kind: input, shape index: {}]
  %s5 = inlined_call_operand.vmem [shape: f32[2,1,384], index: 5, kind: input, shape index: {}]
  %s6 = inlined_call_operand.hbm [shape: bf16[2,128,128], index: 6, kind: input, shape index: {}]
  %s7 = inlined_call_operand.vmem [shape: f32[2,1,128], index: 7, kind: input, shape index: {}]
  %s8 = inlined_call_operand.hbm [shape: bf16[2,128,256], index: 8, kind: input, shape index: {}]
  %s9 = inlined_call_operand.vmem [shape: f32[2,1,256], index: 9, kind: input, shape index: {}]
  %s10 = inlined_call_operand.hbm [shape: bf16[2,256,128], index: 10, kind: input, shape index: {}]
  %s11 = inlined_call_operand.vmem [shape: f32[2,1,128], index: 11, kind: input, shape index: {}]
  %s12 = inlined_call_operand.vmem [shape: f32[2,1,128], index: 12, kind: input, shape index: {}]
  %s13 = inlined_call_operand.vmem [shape: f32[2,1,128], index: 13, kind: input, shape index: {}]
  %s14 = inlined_call_operand.vmem [shape: f32[2,1,128], index: 14, kind: input, shape index: {}]
  %s15 = inlined_call_operand.vmem [shape: f32[2,1,128], index: 15, kind: input, shape index: {}]
  %s16 = inlined_call_operand.hbm [shape: f32[16,128], index: 16, kind: output, shape index: {}]
  %s17 = sld [smem:[#allocation0]]
  $region113: #{tpu_custom_call.1} parent=0
    _
  %s19 = ssub.s32 1, %s17
  %s20 = scalar_select 0, %s19, %s17
  $region1: #{tpu_custom_call.1} parent=0
    #allocation2 [shape = 'u8[196608]{0}', space=vmem, size = 0x30000, scoped, tag = 'input window, operand 4, single buffered']
    #allocation3 [shape = 's32[2]{0}', space=sflag, size = 0x8, scoped, tag = 'scoped memory for tpu_custom_call.1']
    #allocation4 [shape = 's32[2]{0}', space=sflag, size = 0x8, scoped, tag = 'scoped memory for tpu_custom_call.1']
    #allocation5 [shape = 'u8[65536]{0}', space=vmem, size = 0x10000, scoped, tag = 'input window, operand 6, single buffered']
    #allocation6 [shape = 's32[1]{0}', space=sflag, size = 0x4, scoped, tag = 'scoped memory for tpu_custom_call.1']
    #allocation7 [shape = 'u8[131072]{0}', space=vmem, size = 0x20000, scoped, tag = 'input window, operand 8, single buffered']
    #allocation8 [shape = 'u8[131072]{0}', space=vmem, size = 0x20000, scoped, tag = 'input window, operand 10, single buffered']
    #allocation9 [shape = 's32[1]{0}', space=sflag, size = 0x4, scoped, tag = 'scoped memory for tpu_custom_call.1']
    #allocation10 [shape = 'u8[8192]{0}', space=vmem, size = 0x2000, scoped, tag = 'output window, operand 0']
    %21 = vsyncpa [#allocation3], 0
    %22 = vsyncpa [#allocation6], 0
    %23 = vsyncpa [#allocation9], 0
    %24 = vsyncpa [#allocation4], 0
    %s25 = scalar_lea.sflag [#allocation4], 1
    %26 = vsyncpa %s25, 0
    loop: start=0, step=1, limit=4
    $region2: #{tpu_custom_call.1} parent=1 // loop_pre_header
      _
    $region3: #{tpu_custom_call.1} parent=1 // loop_header
      %s28 = sphi 0, %s32
      %p29 = scmp.ge.s32.totalorder %s28, 4
      %s38 = sphi 0, %s40
      %s41 = sphi 0, %s38
      %s42 = sphi 0, %s41
      %s58 = sphi 0, %s42
      %s64 = sphi 0, %s66
      %s67 = sphi 0, %s64
      %s68 = sphi 0, %s67
      %s84 = sphi 0, %s68
      %s88 = sphi 0, %s88
      %s90 = sphi 0, %s88
      %s91 = sphi 0, %s90
      %s105 = sphi 0, %s91
      %s109 = sphi 0, %s109
      %s111 = sphi 0, %s109
      %s112 = sphi 0, %s111
      %s126 = sphi 0, %s112
      %s130 = sphi 0, %s130
      %s132 = sphi 0, %s130
      %s133 = sphi 0, %s132
      %s147 = sphi 0, %s133
      %s151 = sphi 0, %s151
      %s153 = sphi 0, %s151
      %s154 = sphi 0, %s153
      %s168 = sphi 0, %s154
      %s172 = sphi 0, %s172
      %s174 = sphi 0, %s172
      %s175 = sphi 0, %s174
      %s189 = sphi 0, %s175
      %s193 = sphi 0, %s193
      %s195 = sphi 0, %s193
      %s196 = sphi 0, %s195
      %s210 = sphi 0, %s196
      %s214 = sphi 0, %s214
      %s216 = sphi 0, %s214
      %s217 = sphi 0, %s216
      %s231 = sphi 0, %s217
      %s235 = sphi 0, %s235
      %s237 = sphi 0, %s235
      %s238 = sphi 0, %s237
      %s252 = sphi 0, %s238
      %s256 = sphi 0, %s256
      %s258 = sphi 0, %s256
      %s259 = sphi 0, %s258
      %s273 = sphi 0, %s259
      %s277 = sphi 0, %s277
      %s279 = sphi 0, %s277
      %s280 = sphi 0, %s279
      %s294 = sphi 0, %s280
      %s298 = sphi 0, %s298
      %s300 = sphi 0, %s298
      %s301 = sphi 0, %s300
      %s315 = sphi 0, %s301
      %s319 = sphi 0, %s319
      %s321 = sphi 0, %s319
      %s322 = sphi 0, %s321
      %s336 = sphi 0, %s322
      %s340 = sphi 0, %s340
      %s342 = sphi 0, %s340
      %s343 = sphi 0, %s342
      %s357 = sphi 0, %s343
      %s361 = sphi 0, %s361
      %s363 = sphi 0, %s361
      %s364 = sphi 0, %s363
      %s378 = sphi 0, %s364
      %s384 = sphi 0, %s386
      %s387 = sphi 0, %s384
      %s388 = sphi 0, %s387
      %s404 = sphi 0, %s388
    $region4: #{tpu_custom_call.1} parent=1 // loop_header_branch
      %31 = sbr.rel (%p29) target = $region8
    $region5: #{tpu_custom_call.1} parent=1 // loop_body
      %s33 = ssub.s32 %s28, 1
      %s34 = ssub.s32 %s28, 2
      %s35 = sadd.s32 %s28, 1
      %s36 = ssub.s32 %s28, %s35
      %p37 = scmp.eq.s32.totalorder %s36, 0
      %s39 = sadd.s32 %s38, 1
      %s40 = scalar_select %p37, %s38, %s39
      %p43 = pneg %p37
      %p44 = scmp.eq.s32.totalorder %s28, 1
      %p45 = por %p43, %p44
      %p46 = scmp.ne.s32.totalorder %s38, %s41
      %p47 = scmp.eq.s32.totalorder %s28, 0
      %p48 = por %p46, %p47
      %p49 = scmp.ne.s32.totalorder %s38, %s41
      %p50 = scmp.eq.s32.totalorder %s33, 1
      %p51 = por %p49, %p50
      %p52 = scmp.ne.s32.totalorder %s41, %s42
      %p53 = scmp.eq.s32.totalorder %s33, 0
      %p54 = por %p52, %p53
      %p55 = scmp.ne.s32.totalorder %s41, %s42
      %p56 = scmp.eq.s32.totalorder %s34, 1
      %p57 = por %p55, %p56
      %p59 = scmp.ne.s32.totalorder %s42, %s58
      %p60 = scmp.eq.s32.totalorder %s34, 0
      %p61 = por %p59, %p60
      %s62 = ssub.s32 %s28, %s35
      %p63 = scmp.eq.s32.totalorder %s62, 0
      %s65 = sadd.s32 %s64, 1
      %s66 = scalar_select %p63, %s64, %s65
      %p69 = pneg %p63
      %p70 = scmp.eq.s32.totalorder %s28, 1
      %p71 = por %p69, %p70
      %p72 = scmp.ne.s32.totalorder %s64, %s67
      %p73 = scmp.eq.s32.totalorder %s28, 0
      %p74 = por %p72, %p73
      %p75 = scmp.ne.s32.totalorder %s64, %s67
      %p76 = scmp.eq.s32.totalorder %s33, 1
      %p77 = por %p75, %p76
      %p78 = scmp.ne.s32.totalorder %s67, %s68
      %p79 = scmp.eq.s32.totalorder %s33, 0
      %p80 = por %p78, %p79
      %p81 = scmp.ne.s32.totalorder %s67, %s68
      %p82 = scmp.eq.s32.totalorder %s34, 1
      %p83 = por %p81, %p82
      %p85 = scmp.ne.s32.totalorder %s68, %s84
      %p86 = scmp.eq.s32.totalorder %s34, 0
      %p87 = por %p85, %p86
      %s89 = sadd.s32 %s88, 1
      %p92 = scmp.eq.s32.totalorder %s28, 1
      %p93 = scmp.ne.s32.totalorder %s88, %s90
      %p94 = scmp.eq.s32.totalorder %s28, 0
      %p95 = por %p93, %p94
      %p96 = scmp.ne.s32.totalorder %s88, %s90
      %p97 = scmp.eq.s32.totalorder %s33, 1
      %p98 = por %p96, %p97
      %p99 = scmp.ne.s32.totalorder %s90, %s91
      %p100 = scmp.eq.s32.totalorder %s33, 0
      %p101 = por %p99, %p100
      %p102 = scmp.ne.s32.totalorder %s90, %s91
      %p103 = scmp.eq.s32.totalorder %s34, 1
      %p104 = por %p102, %p103
      %p106 = scmp.ne.s32.totalorder %s91, %s105
      %p107 = scmp.eq.s32.totalorder %s34, 0
      %p108 = por %p106, %p107
      %s110 = sadd.s32 %s109, 1
      %p113 = scmp.eq.s32.totalorder %s28, 1
      %p114 = scmp.ne.s32.totalorder %s109, %s111
      %p115 = scmp.eq.s32.totalorder %s28, 0
      %p116 = por %p114, %p115
      %p117 = scmp.ne.s32.totalorder %s109, %s111
      %p118 = scmp.eq.s32.totalorder %s33, 1
      %p119 = por %p117, %p118
      %p120 = scmp.ne.s32.totalorder %s111, %s112
      %p121 = scmp.eq.s32.totalorder %s33, 0
      %p122 = por %p120, %p121
      %p123 = scmp.ne.s32.totalorder %s111, %s112
      %p124 = scmp.eq.s32.totalorder %s34, 1
      %p125 = por %p123, %p124
      %p127 = scmp.ne.s32.totalorder %s112, %s126
      %p128 = scmp.eq.s32.totalorder %s34, 0
      %p129 = por %p127, %p128
      %s131 = sadd.s32 %s130, 1
      %p134 = scmp.eq.s32.totalorder %s28, 1
      %p135 = scmp.ne.s32.totalorder %s130, %s132
      %p136 = scmp.eq.s32.totalorder %s28, 0
      %p137 = por %p135, %p136
      %p138 = scmp.ne.s32.totalorder %s130, %s132
      %p139 = scmp.eq.s32.totalorder %s33, 1
      %p140 = por %p138, %p139
      %p141 = scmp.ne.s32.totalorder %s132, %s133
      %p142 = scmp.eq.s32.totalorder %s33, 0
      %p143 = por %p141, %p142
      %p144 = scmp.ne.s32.totalorder %s132, %s133
      %p145 = scmp.eq.s32.totalorder %s34, 1
      %p146 = por %p144, %p145
      %p148 = scmp.ne.s32.totalorder %s133, %s147
      %p149 = scmp.eq.s32.totalorder %s34, 0
      %p150 = por %p148, %p149
      %s152 = sadd.s32 %s151, 1
      %p155 = scmp.eq.s32.totalorder %s28, 1
      %p156 = scmp.ne.s32.totalorder %s151, %s153
      %p157 = scmp.eq.s32.totalorder %s28, 0
      %p158 = por %p156, %p157
      %p159 = scmp.ne.s32.totalorder %s151, %s153
      %p160 = scmp.eq.s32.totalorder %s33, 1
      %p161 = por %p159, %p160
      %p162 = scmp.ne.s32.totalorder %s153, %s154
      %p163 = scmp.eq.s32.totalorder %s33, 0
      %p164 = por %p162, %p163
      %p165 = scmp.ne.s32.totalorder %s153, %s154
      %p166 = scmp.eq.s32.totalorder %s34, 1
      %p167 = por %p165, %p166
      %p169 = scmp.ne.s32.totalorder %s154, %s168
      %p170 = scmp.eq.s32.totalorder %s34, 0
      %p171 = por %p169, %p170
      %s173 = sadd.s32 %s172, 1
      %p176 = scmp.eq.s32.totalorder %s28, 1
      %p177 = scmp.ne.s32.totalorder %s172, %s174
      %p178 = scmp.eq.s32.totalorder %s28, 0
      %p179 = por %p177, %p178
      %p180 = scmp.ne.s32.totalorder %s172, %s174
      %p181 = scmp.eq.s32.totalorder %s33, 1
      %p182 = por %p180, %p181
      %p183 = scmp.ne.s32.totalorder %s174, %s175
      %p184 = scmp.eq.s32.totalorder %s33, 0
      %p185 = por %p183, %p184
      %p186 = scmp.ne.s32.totalorder %s174, %s175
      %p187 = scmp.eq.s32.totalorder %s34, 1
      %p188 = por %p186, %p187
      %p190 = scmp.ne.s32.totalorder %s175, %s189
      %p191 = scmp.eq.s32.totalorder %s34, 0
      %p192 = por %p190, %p191
      %s194 = sadd.s32 %s193, 1
      %p197 = scmp.eq.s32.totalorder %s28, 1
      %p198 = scmp.ne.s32.totalorder %s193, %s195
      %p199 = scmp.eq.s32.totalorder %s28, 0
      %p200 = por %p198, %p199
      %p201 = scmp.ne.s32.totalorder %s193, %s195
      %p202 = scmp.eq.s32.totalorder %s33, 1
      %p203 = por %p201, %p202
      %p204 = scmp.ne.s32.totalorder %s195, %s196
      %p205 = scmp.eq.s32.totalorder %s33, 0
      %p206 = por %p204, %p205
      %p207 = scmp.ne.s32.totalorder %s195, %s196
      %p208 = scmp.eq.s32.totalorder %s34, 1
      %p209 = por %p207, %p208
      %p211 = scmp.ne.s32.totalorder %s196, %s210
      %p212 = scmp.eq.s32.totalorder %s34, 0
      %p213 = por %p211, %p212
      %s215 = sadd.s32 %s214, 1
      %p218 = scmp.eq.s32.totalorder %s28, 1
      %p219 = scmp.ne.s32.totalorder %s214, %s216
      %p220 = scmp.eq.s32.totalorder %s28, 0
      %p221 = por %p219, %p220
      %p222 = scmp.ne.s32.totalorder %s214, %s216
      %p223 = scmp.eq.s32.totalorder %s33, 1
      %p224 = por %p222, %p223
      %p225 = scmp.ne.s32.totalorder %s216, %s217
      %p226 = scmp.eq.s32.totalorder %s33, 0
      %p227 = por %p225, %p226
      %p228 = scmp.ne.s32.totalorder %s216, %s217
      %p229 = scmp.eq.s32.totalorder %s34, 1
      %p230 = por %p228, %p229
      %p232 = scmp.ne.s32.totalorder %s217, %s231
      %p233 = scmp.eq.s32.totalorder %s34, 0
      %p234 = por %p232, %p233
      %s236 = sadd.s32 %s235, 1
      %p239 = scmp.eq.s32.totalorder %s28, 1
      %p240 = scmp.ne.s32.totalorder %s235, %s237
      %p241 = scmp.eq.s32.totalorder %s28, 0
      %p242 = por %p240, %p241
      %p243 = scmp.ne.s32.totalorder %s235, %s237
      %p244 = scmp.eq.s32.totalorder %s33, 1
      %p245 = por %p243, %p244
      %p246 = scmp.ne.s32.totalorder %s237, %s238
      %p247 = scmp.eq.s32.totalorder %s33, 0
      %p248 = por %p246, %p247
      %p249 = scmp.ne.s32.totalorder %s237, %s238
      %p250 = scmp.eq.s32.totalorder %s34, 1
      %p251 = por %p249, %p250
      %p253 = scmp.ne.s32.totalorder %s238, %s252
      %p254 = scmp.eq.s32.totalorder %s34, 0
      %p255 = por %p253, %p254
      %s257 = sadd.s32 %s256, 1
      %p260 = scmp.eq.s32.totalorder %s28, 1
      %p261 = scmp.ne.s32.totalorder %s256, %s258
      %p262 = scmp.eq.s32.totalorder %s28, 0
      %p263 = por %p261, %p262
      %p264 = scmp.ne.s32.totalorder %s256, %s258
      %p265 = scmp.eq.s32.totalorder %s33, 1
      %p266 = por %p264, %p265
      %p267 = scmp.ne.s32.totalorder %s258, %s259
      %p268 = scmp.eq.s32.totalorder %s33, 0
      %p269 = por %p267, %p268
      %p270 = scmp.ne.s32.totalorder %s258, %s259
      %p271 = scmp.eq.s32.totalorder %s34, 1
      %p272 = por %p270, %p271
      %p274 = scmp.ne.s32.totalorder %s259, %s273
      %p275 = scmp.eq.s32.totalorder %s34, 0
      %p276 = por %p274, %p275
      %s278 = sadd.s32 %s277, 1
      %p281 = scmp.eq.s32.totalorder %s28, 1
      %p282 = scmp.ne.s32.totalorder %s277, %s279
      %p283 = scmp.eq.s32.totalorder %s28, 0
      %p284 = por %p282, %p283
      %p285 = scmp.ne.s32.totalorder %s277, %s279
      %p286 = scmp.eq.s32.totalorder %s33, 1
      %p287 = por %p285, %p286
      %p288 = scmp.ne.s32.totalorder %s279, %s280
      %p289 = scmp.eq.s32.totalorder %s33, 0
      %p290 = por %p288, %p289
      %p291 = scmp.ne.s32.totalorder %s279, %s280
      %p292 = scmp.eq.s32.totalorder %s34, 1
      %p293 = por %p291, %p292
      %p295 = scmp.ne.s32.totalorder %s280, %s294
      %p296 = scmp.eq.s32.totalorder %s34, 0
      %p297 = por %p295, %p296
      %s299 = sadd.s32 %s298, 1
      %p302 = scmp.eq.s32.totalorder %s28, 1
      %p303 = scmp.ne.s32.totalorder %s298, %s300
      %p304 = scmp.eq.s32.totalorder %s28, 0
      %p305 = por %p303, %p304
      %p306 = scmp.ne.s32.totalorder %s298, %s300
      %p307 = scmp.eq.s32.totalorder %s33, 1
      %p308 = por %p306, %p307
      %p309 = scmp.ne.s32.totalorder %s300, %s301
      %p310 = scmp.eq.s32.totalorder %s33, 0
      %p311 = por %p309, %p310
      %p312 = scmp.ne.s32.totalorder %s300, %s301
      %p313 = scmp.eq.s32.totalorder %s34, 1
      %p314 = por %p312, %p313
      %p316 = scmp.ne.s32.totalorder %s301, %s315
      %p317 = scmp.eq.s32.totalorder %s34, 0
      %p318 = por %p316, %p317
      %s320 = sadd.s32 %s319, 1
      %p323 = scmp.eq.s32.totalorder %s28, 1
      %p324 = scmp.ne.s32.totalorder %s319, %s321
      %p325 = scmp.eq.s32.totalorder %s28, 0
      %p326 = por %p324, %p325
      %p327 = scmp.ne.s32.totalorder %s319, %s321
      %p328 = scmp.eq.s32.totalorder %s33, 1
      %p329 = por %p327, %p328
      %p330 = scmp.ne.s32.totalorder %s321, %s322
      %p331 = scmp.eq.s32.totalorder %s33, 0
      %p332 = por %p330, %p331
      %p333 = scmp.ne.s32.totalorder %s321, %s322
      %p334 = scmp.eq.s32.totalorder %s34, 1
      %p335 = por %p333, %p334
      %p337 = scmp.ne.s32.totalorder %s322, %s336
      %p338 = scmp.eq.s32.totalorder %s34, 0
      %p339 = por %p337, %p338
      %s341 = sadd.s32 %s340, 1
      %p344 = scmp.eq.s32.totalorder %s28, 1
      %p345 = scmp.ne.s32.totalorder %s340, %s342
      %p346 = scmp.eq.s32.totalorder %s28, 0
      %p347 = por %p345, %p346
      %p348 = scmp.ne.s32.totalorder %s340, %s342
      %p349 = scmp.eq.s32.totalorder %s33, 1
      %p350 = por %p348, %p349
      %p351 = scmp.ne.s32.totalorder %s342, %s343
      %p352 = scmp.eq.s32.totalorder %s33, 0
      %p353 = por %p351, %p352
      %p354 = scmp.ne.s32.totalorder %s342, %s343
      %p355 = scmp.eq.s32.totalorder %s34, 1
      %p356 = por %p354, %p355
      %p358 = scmp.ne.s32.totalorder %s343, %s357
      %p359 = scmp.eq.s32.totalorder %s34, 0
      %p360 = por %p358, %p359
      %s362 = sadd.s32 %s361, 1
      %p365 = scmp.eq.s32.totalorder %s28, 1
      %p366 = scmp.ne.s32.totalorder %s361, %s363
      %p367 = scmp.eq.s32.totalorder %s28, 0
      %p368 = por %p366, %p367
      %p369 = scmp.ne.s32.totalorder %s361, %s363
      %p370 = scmp.eq.s32.totalorder %s33, 1
      %p371 = por %p369, %p370
      %p372 = scmp.ne.s32.totalorder %s363, %s364
      %p373 = scmp.eq.s32.totalorder %s33, 0
      %p374 = por %p372, %p373
      %p375 = scmp.ne.s32.totalorder %s363, %s364
      %p376 = scmp.eq.s32.totalorder %s34, 1
      %p377 = por %p375, %p376
      %p379 = scmp.ne.s32.totalorder %s364, %s378
      %p380 = scmp.eq.s32.totalorder %s34, 0
      %p381 = por %p379, %p380
      %s382 = ssub.s32 %s28, %s35
      %p383 = scmp.eq.s32.totalorder %s382, 0
      %s385 = sadd.s32 %s384, 1
      %s386 = scalar_select %p383, %s384, %s385
      %p389 = pneg %p383
      %p390 = scmp.eq.s32.totalorder %s28, 1
      %p391 = por %p389, %p390
      %p392 = scmp.ne.s32.totalorder %s384, %s387
      %p393 = scmp.eq.s32.totalorder %s28, 0
      %p394 = por %p392, %p393
      %p395 = scmp.ne.s32.totalorder %s384, %s387
      %p396 = scmp.eq.s32.totalorder %s33, 1
      %p397 = por %p395, %p396
      %p398 = scmp.ne.s32.totalorder %s387, %s388
      %p399 = scmp.eq.s32.totalorder %s33, 0
      %p400 = por %p398, %p399
      %p401 = scmp.ne.s32.totalorder %s387, %s388
      %p402 = scmp.eq.s32.totalorder %s34, 1
      %p403 = por %p401, %p402
      %p405 = scmp.ne.s32.totalorder %s388, %s404
      %p406 = scmp.eq.s32.totalorder %s34, 0
      %p407 = por %p405, %p406
      %p408 = scmp.le.s32.totalorder 1, %s28
      %p409 = scmp.lt.s32.totalorder %s28, 3
      %p410 = pnand %p408, %p409
      %p411 = pneg %p410
      // Predicated region
      $region9: #{tpu_custom_call.1} parent=5 // pred_check
        _
      $region10: #{tpu_custom_call.1} parent=5 // pred_check_branch
        %413 = sbr.rel (%p410) target = $region12
      $region11: #{tpu_custom_call.1} parent=5 // pred_region
        %s414 = ssub.s32 %s28, 1
        // Predicated region
        $region13: #{tpu_custom_call.1} parent=11 // pred_check
          %p415 = pneg %p101
        $region14: #{tpu_custom_call.1} parent=11 // pred_check_branch
          %417 = sbr.rel (%p415) target = $region16
        $region15: #{tpu_custom_call.1} parent=11 // pred_region
          _
        $region16: #{tpu_custom_call.1} parent=11 // pred_fallthru
          _
        // Predicated region
        $region17: #{tpu_custom_call.1} parent=11 // pred_check
          %p418 = pneg %p122
        $region18: #{tpu_custom_call.1} parent=11 // pred_check_branch
          %420 = sbr.rel (%p418) target = $region20
        $region19: #{tpu_custom_call.1} parent=11 // pred_region
          _
        $region20: #{tpu_custom_call.1} parent=11 // pred_fallthru
          _
        // Predicated region
        $region21: #{tpu_custom_call.1} parent=11 // pred_check
          %p421 = pneg %p143
        $region22: #{tpu_custom_call.1} parent=11 // pred_check_branch
          %423 = sbr.rel (%p421) target = $region24
        $region23: #{tpu_custom_call.1} parent=11 // pred_region
          %s425 = ssub.s32 6144, 6144
          %426 = vsyncadd [#allocation3], %s425
          %s427 = sshll.u32 [#allocation2], 4
          %s428 = int_to_ptr.vmem [resolvable:$true] %s427
          %433 = dma.hbm_to_vmem [thread:$0]  %s4, 6144, %s428, [#allocation3], 192, 192, 12
        $region24: #{tpu_custom_call.1} parent=11 // pred_fallthru
          _
        // Predicated region
        $region25: #{tpu_custom_call.1} parent=11 // pred_check
          %p434 = pneg %p164
        $region26: #{tpu_custom_call.1} parent=11 // pred_check_branch
          %436 = sbr.rel (%p434) target = $region28
        $region27: #{tpu_custom_call.1} parent=11 // pred_region
          _
        $region28: #{tpu_custom_call.1} parent=11 // pred_fallthru
          _
        // Predicated region
        $region29: #{tpu_custom_call.1} parent=11 // pred_check
          %p437 = pneg %p185
        $region30: #{tpu_custom_call.1} parent=11 // pred_check_branch
          %439 = sbr.rel (%p437) target = $region32
        $region31: #{tpu_custom_call.1} parent=11 // pred_region
          %s441 = ssub.s32 2048, 2048
          %442 = vsyncadd [#allocation6], %s441
          %s443 = sshll.u32 [#allocation5], 4
          %s444 = int_to_ptr.vmem [resolvable:$true] %s443
          %449 = dma.hbm_to_vmem [thread:$0]  %s6, 2048, %s444, [#allocation6], 64, 64, 4
        $region32: #{tpu_custom_call.1} parent=11 // pred_fallthru
          _
        // Predicated region
        $region33: #{tpu_custom_call.1} parent=11 // pred_check
          %p450 = pneg %p206
        $region34: #{tpu_custom_call.1} parent=11 // pred_check_branch
          %452 = sbr.rel (%p450) target = $region36
        $region35: #{tpu_custom_call.1} parent=11 // pred_region
          _
        $region36: #{tpu_custom_call.1} parent=11 // pred_fallthru
          _
        // Predicated region
        $region37: #{tpu_custom_call.1} parent=11 // pred_check
          %p453 = pneg %p227
        $region38: #{tpu_custom_call.1} parent=11 // pred_check_branch
          %455 = sbr.rel (%p453) target = $region40
        $region39: #{tpu_custom_call.1} parent=11 // pred_region
          %s457 = ssub.s32 4096, 4096
          %458 = vsyncadd [#allocation6], %s457
          %s459 = sshll.u32 [#allocation7], 4
          %s460 = int_to_ptr.vmem [resolvable:$true] %s459
          %465 = dma.hbm_to_vmem [thread:$0]  %s8, 4096, %s460, [#allocation6], 128, 128, 8
        $region40: #{tpu_custom_call.1} parent=11 // pred_fallthru
          _
        // Predicated region
        $region41: #{tpu_custom_call.1} parent=11 // pred_check
          %p466 = pneg %p248
        $region42: #{tpu_custom_call.1} parent=11 // pred_check_branch
          %468 = sbr.rel (%p466) target = $region44
        $region43: #{tpu_custom_call.1} parent=11 // pred_region
          _
        $region44: #{tpu_custom_call.1} parent=11 // pred_fallthru
          _
        // Predicated region
        $region45: #{tpu_custom_call.1} parent=11 // pred_check
          %p469 = pneg %p269
        $region46: #{tpu_custom_call.1} parent=11 // pred_check_branch
          %471 = sbr.rel (%p469) target = $region48
        $region47: #{tpu_custom_call.1} parent=11 // pred_region
          %s473 = ssub.s32 4096, 4096
          %474 = vsyncadd [#allocation9], %s473
          %s475 = sshll.u32 [#allocation8], 4
          %s476 = int_to_ptr.vmem [resolvable:$true] %s475
          %481 = dma.hbm_to_vmem [thread:$0]  %s10, 4096, %s476, [#allocation9], 64, 64, 4
        $region48: #{tpu_custom_call.1} parent=11 // pred_fallthru
          _
        // Predicated region
        $region49: #{tpu_custom_call.1} parent=11 // pred_check
          %p482 = pneg %p290
        $region50: #{tpu_custom_call.1} parent=11 // pred_check_branch
          %484 = sbr.rel (%p482) target = $region52
        $region51: #{tpu_custom_call.1} parent=11 // pred_region
          _
        $region52: #{tpu_custom_call.1} parent=11 // pred_fallthru
          _
        // Predicated region
        $region53: #{tpu_custom_call.1} parent=11 // pred_check
          %p485 = pneg %p311
        $region54: #{tpu_custom_call.1} parent=11 // pred_check_branch
          %487 = sbr.rel (%p485) target = $region56
        $region55: #{tpu_custom_call.1} parent=11 // pred_region
          _
        $region56: #{tpu_custom_call.1} parent=11 // pred_fallthru
          _
        // Predicated region
        $region57: #{tpu_custom_call.1} parent=11 // pred_check
          %p488 = pneg %p332
        $region58: #{tpu_custom_call.1} parent=11 // pred_check_branch
          %490 = sbr.rel (%p488) target = $region60
        $region59: #{tpu_custom_call.1} parent=11 // pred_region
          _
        $region60: #{tpu_custom_call.1} parent=11 // pred_fallthru
          _
        // Predicated region
        $region61: #{tpu_custom_call.1} parent=11 // pred_check
          %p491 = pneg %p353
        $region62: #{tpu_custom_call.1} parent=11 // pred_check_branch
          %493 = sbr.rel (%p491) target = $region64
        $region63: #{tpu_custom_call.1} parent=11 // pred_region
          _
        $region64: #{tpu_custom_call.1} parent=11 // pred_fallthru
          _
        // Predicated region
        $region65: #{tpu_custom_call.1} parent=11 // pred_check
          %p494 = pneg %p374
        $region66: #{tpu_custom_call.1} parent=11 // pred_check_branch
          %496 = sbr.rel (%p494) target = $region68
        $region67: #{tpu_custom_call.1} parent=11 // pred_region
          _
        $region68: #{tpu_custom_call.1} parent=11 // pred_fallthru
          _
      $region12: #{tpu_custom_call.1} parent=5 // pred_fallthru
        _
      %p497 = scmp.lt.s32.totalorder %s28, 2
      // Predicated region
      $region69: #{tpu_custom_call.1} parent=5 // pred_check
        %p498 = pneg %p497
      $region70: #{tpu_custom_call.1} parent=5 // pred_check_branch
        %500 = sbr.rel (%p498) target = $region72
      $region71: #{tpu_custom_call.1} parent=5 // pred_region
        // Predicated region
        $region73: #{tpu_custom_call.1} parent=71 // pred_check
          %p501 = pneg %p48
        $region74: #{tpu_custom_call.1} parent=71 // pred_check_branch
          %503 = sbr.rel (%p501) target = $region76
        $region75: #{tpu_custom_call.1} parent=71 // pred_region
          %p504 = scmp.lt.s32.totalorder %s28, 1
          %s505 = scalar_select %p504, %s28, 1
          %s506 = smul.addr %s505, 8
          %s507 = scalar_lea.vmem %s0, %s506
        $region76: #{tpu_custom_call.1} parent=71 // pred_fallthru
          _
        // Predicated region
        $region77: #{tpu_custom_call.1} parent=71 // pred_check
          %p508 = pneg %p74
        $region78: #{tpu_custom_call.1} parent=71 // pred_check_branch
          %510 = sbr.rel (%p508) target = $region80
        $region79: #{tpu_custom_call.1} parent=71 // pred_region
          %p511 = scmp.lt.s32.totalorder %s28, 1
          %s512 = scalar_select %p511, %s28, 1
          %s513 = smul.addr %s512, 8
          %s514 = scalar_lea.vmem %s1, %s513
        $region80: #{tpu_custom_call.1} parent=71 // pred_fallthru
          _
      $region72: #{tpu_custom_call.1} parent=5 // pred_fallthru
        _
      %p515 = scmp.le.s32.totalorder 1, %s28
      %p516 = scmp.lt.s32.totalorder %s28, 3
      %p517 = pnand %p515, %p516
      %p518 = pneg %p517
      // Predicated region
      $region81: #{tpu_custom_call.1} parent=5 // pred_check
        _
      $region82: #{tpu_custom_call.1} parent=5 // pred_check_branch
        %520 = sbr.rel (%p517) target = $region84
      $region83: #{tpu_custom_call.1} parent=5 // pred_region
        %s521 = ssub.s32 %s28, 1
        // Predicated region
        $region85: #{tpu_custom_call.1} parent=83 // pred_check
          %p522 = pneg %p143
        $region86: #{tpu_custom_call.1} parent=83 // pred_check_branch
          %524 = sbr.rel (%p522) target = $region88
        $region87: #{tpu_custom_call.1} parent=83 // pred_region
          %525 = dma.done [#allocation3], 6144
        $region88: #{tpu_custom_call.1} parent=83 // pred_fallthru
          _
        // Predicated region
        $region89: #{tpu_custom_call.1} parent=83 // pred_check
          %p526 = pneg %p185
        $region90: #{tpu_custom_call.1} parent=83 // pred_check_branch
          %528 = sbr.rel (%p526) target = $region92
        $region91: #{tpu_custom_call.1} parent=83 // pred_region
          %529 = dma.done [#allocation6], 2048
        $region92: #{tpu_custom_call.1} parent=83 // pred_fallthru
          _
        // Predicated region
        $region93: #{tpu_custom_call.1} parent=83 // pred_check
          %p530 = pneg %p227
        $region94: #{tpu_custom_call.1} parent=83 // pred_check_branch
          %532 = sbr.rel (%p530) target = $region96
        $region95: #{tpu_custom_call.1} parent=83 // pred_region
          %533 = dma.done [#allocation6], 4096
        $region96: #{tpu_custom_call.1} parent=83 // pred_fallthru
          _
        // Predicated region
        $region97: #{tpu_custom_call.1} parent=83 // pred_check
          %p534 = pneg %p269
        $region98: #{tpu_custom_call.1} parent=83 // pred_check_branch
          %536 = sbr.rel (%p534) target = $region100
        $region99: #{tpu_custom_call.1} parent=83 // pred_region
          %537 = dma.done [#allocation9], 4096
        $region100: #{tpu_custom_call.1} parent=83 // pred_fallthru
          _
        %p538 = scmp.lt.s32.totalorder %s33, 1
        %s539 = scalar_select %p538, %s33, 1
        %s540 = smul.addr %s539, 8
        %s541 = scalar_lea.vmem %s0, %s540
        %p542 = pneg %p54
        %p543 = pneg %p51
        %p544 = scmp.lt.s32.totalorder %s33, 1
        %s545 = scalar_select %p544, %s33, 1
        %s546 = smul.addr %s545, 8
        %s547 = scalar_lea.vmem %s1, %s546
        %p548 = pneg %p80
        %p549 = pneg %p77
        %p550 = pneg %p101
        %p551 = pneg %p98
        %p552 = pneg %p122
        %p553 = pneg %p119
        %p554 = pneg %p143
        %p555 = pneg %p140
        %p556 = pneg %p164
        %p557 = pneg %p161
        %p558 = pneg %p185
        %p559 = pneg %p182
        %p560 = pneg %p206
        %p561 = pneg %p203
        %p562 = pneg %p227
        %p563 = pneg %p224
        %p564 = pneg %p248
        %p565 = pneg %p245
        %p566 = pneg %p269
        %p567 = pneg %p266
        %p568 = pneg %p290
        %p569 = pneg %p287
        %p570 = pneg %p311
        %p571 = pneg %p308
        %p572 = pneg %p332
        %p573 = pneg %p329
        %p574 = pneg %p353
        %p575 = pneg %p350
        %p576 = pneg %p374
        %p577 = pneg %p371
        %p578 = pneg %p400
        %p579 = pneg %p397
        %s580 = sand.u32 %s387, 1
        %s581 = scalar_lea.sflag [#allocation4], %s580
        %s582 = sand.u32 %s387, 1
        %s583 = smul.addr %s582, 8
        %s584 = scalar_lea.vmem [#allocation10], %s583
        %p585 = scmp.lt.s32.totalorder %s33, 1
        %s586 = scalar_select %p585, %s33, 1
        %s587 = smul.addr %s586, 8
        %s588 = scalar_lea.vmem %s0, %s587
        %p589 = scmp.lt.s32.totalorder %s33, 1
        %s590 = scalar_select %p589, %s33, 1
        %s591 = smul.addr %s590, 8
        %s592 = scalar_lea.vmem %s1, %s591
        %v594 = vld [vmem:[%s2] sm:$0xf]
        %v595 = vld [vmem:[%s2 + $0x4] sm:$0xf]
        %v596 = vld [vmem:[%s2 + $0x8] sm:$0xf]
        %v597 = vld [vmem:[%s2 + $0xc] sm:$0xf]
        %v598 = vld [vmem:[%s2 + $0x10] sm:$0xf]
        %v599 = vld [vmem:[%s2 + $0x14] sm:$0xf]
        %v600 = vld [vmem:[%s2 + $0x18] sm:$0xf]
        %v601 = vld [vmem:[%s2 + $0x1c] sm:$0xf]
        %v602 = vld [vmem:[%s2 + $0x20] sm:$0xf]
        %v603 = vld [vmem:[%s2 + $0x24] sm:$0xf]
        %v604 = vld [vmem:[%s2 + $0x28] sm:$0xf]
        %v605 = vld [vmem:[%s2 + $0x2c] sm:$0xf]
        %v606 = vld [vmem:[%s2 + $0x30] sm:$0xf]
        %v607 = vld [vmem:[%s2 + $0x34] sm:$0xf]
        %v608 = vld [vmem:[%s2 + $0x38] sm:$0xf]
        %v609 = vld [vmem:[%s2 + $0x3c] sm:$0xf]
        %v610 = vld [vmem:[%s3] sm:$0x3]
        %v611 = vld [vmem:[%s588] sm:$0xff]
        %v612 = vld [vmem:[%s592] sm:$0xff]
        %v613 = vpack.c.bf16 %v612, %v611
        %v614 = vld [vmem:[#allocation2] sm:$0xff]
        %v615 = vld [vmem:[#allocation2 + $0x8] sm:$0xf]
        %v616 = vld [vmem:[#allocation2 + $0xc] sm:$0xff]
        %v617 = vld [vmem:[#allocation2 + $0x14] sm:$0xf]
        %v618 = vld [vmem:[#allocation2 + $0x18] sm:$0xff]
        %v619 = vld [vmem:[#allocation2 + $0x20] sm:$0xf]
        %v620 = vld [vmem:[#allocation2 + $0x24] sm:$0xff]
        %v621 = vld [vmem:[#allocation2 + $0x2c] sm:$0xf]
        %v622 = vld [vmem:[#allocation2 + $0x30] sm:$0xff]
        %v623 = vld [vmem:[#allocation2 + $0x38] sm:$0xf]
        %v624 = vld [vmem:[#allocation2 + $0x3c] sm:$0xff]
        %v625 = vld [vmem:[#allocation2 + $0x44] sm:$0xf]
        %v626 = vld [vmem:[#allocation2 + $0x48] sm:$0xff]
        %v627 = vld [vmem:[#allocation2 + $0x50] sm:$0xf]
        %v628 = vld [vmem:[#allocation2 + $0x54] sm:$0xff]
        %v629 = vld [vmem:[#allocation2 + $0x5c] sm:$0xf]
        %v630 = vld [vmem:[#allocation2 + $0x60] sm:$0xff]
        %v631 = vld [vmem:[#allocation2 + $0x68] sm:$0xf]
        %v632 = vld [vmem:[#allocation2 + $0x6c] sm:$0xff]
        %v633 = vld [vmem:[#allocation2 + $0x74] sm:$0xf]
        %v634 = vld [vmem:[#allocation2 + $0x78] sm:$0xff]
        %v635 = vld [vmem:[#allocation2 + $0x80] sm:$0xf]
        %v636 = vld [vmem:[#allocation2 + $0x84] sm:$0xff]
        %v637 = vld [vmem:[#allocation2 + $0x8c] sm:$0xf]
        %v638 = vld [vmem:[#allocation2 + $0x90] sm:$0xff]
        %v639 = vld [vmem:[#allocation2 + $0x98] sm:$0xf]
        %v640 = vld [vmem:[#allocation2 + $0x9c] sm:$0xff]
        %v641 = vld [vmem:[#allocation2 + $0xa4] sm:$0xf]
        %v642 = vld [vmem:[#allocation2 + $0xa8] sm:$0xff]
        %v643 = vld [vmem:[#allocation2 + $0xb0] sm:$0xf]
        %v644 = vld [vmem:[#allocation2 + $0xb4] sm:$0xff]
        %v645 = vld [vmem:[#allocation2 + $0xbc] sm:$0xf]
        %v646 = vld [vmem:[%s5] sm:$0x7]
        %v648 = vlaneseq
        %v649 = vshrl.u32 %v648, 7
        %v650 = vsub.s32 0, %v649
        %v651 = vrot.slane %v646, %v650
        %v652 = vlaneseq
        %v653 = vshrl.u32 %v652, 7
        %v654 = vsub.s32 1, %v653
        %v655 = vrot.slane %v646, %v654
        %v656 = vlaneseq
        %v657 = vshrl.u32 %v656, 7
        %v658 = vsub.s32 2, %v657
        %v659 = vrot.slane %v646, %v658
        %v695 = vunpack.c.l.b16 %v614
        %v696 = vunpack.c.h.b16 %v614
        %v697 = vunpack.c.l.b16 %v615
        %v698 = vunpack.c.l.b16 %v616
        %v699 = vunpack.c.h.b16 %v616
        %v700 = vunpack.c.l.b16 %v617
        %v701 = vunpack.c.l.b16 %v618
        %v702 = vunpack.c.h.b16 %v618
        %v703 = vunpack.c.l.b16 %v619
        %v704 = vunpack.c.l.b16 %v620
        %v705 = vunpack.c.h.b16 %v620
        %v706 = vunpack.c.l.b16 %v621
        %v707 = vunpack.c.l.b16 %v622
        %v708 = vunpack.c.h.b16 %v622
        %v709 = vunpack.c.l.b16 %v623
        %v710 = vunpack.c.l.b16 %v624
        %v711 = vunpack.c.h.b16 %v624
        %v712 = vunpack.c.l.b16 %v625
        %v713 = vunpack.c.l.b16 %v626
        %v714 = vunpack.c.h.b16 %v626
        %v715 = vunpack.c.l.b16 %v627
        %v716 = vunpack.c.l.b16 %v628
        %v717 = vunpack.c.h.b16 %v628
        %v718 = vunpack.c.l.b16 %v629
        %v719 = vunpack.c.l.b16 %v630
        %v720 = vunpack.c.h.b16 %v630
        %v721 = vunpack.c.l.b16 %v631
        %v722 = vunpack.c.l.b16 %v632
        %v723 = vunpack.c.h.b16 %v632
        %v724 = vunpack.c.l.b16 %v633
        %v725 = vunpack.c.l.b16 %v634
        %v726 = vunpack.c.h.b16 %v634
        %v727 = vunpack.c.l.b16 %v635
        %v728 = vunpack.c.l.b16 %v636
        %v729 = vunpack.c.h.b16 %v636
        %v730 = vunpack.c.l.b16 %v637
        %v731 = vunpack.c.l.b16 %v638
        %v732 = vunpack.c.h.b16 %v638
        %v733 = vunpack.c.l.b16 %v639
        %v734 = vunpack.c.l.b16 %v640
        %v735 = vunpack.c.h.b16 %v640
        %v736 = vunpack.c.l.b16 %v641
        %v737 = vunpack.c.l.b16 %v642
        %v738 = vunpack.c.h.b16 %v642
        %v739 = vunpack.c.l.b16 %v643
        %v740 = vunpack.c.l.b16 %v644
        %v741 = vunpack.c.h.b16 %v644
        %v742 = vunpack.c.l.b16 %v645
        %v743 = vpack.c.b16 %v698, %v695
        %v744 = vpack.c.b16 %v699, %v696
        %v745 = vpack.c.b16 %v700, %v697
        %v746 = vpack.c.b16 %v704, %v701
        %v747 = vpack.c.b16 %v705, %v702
        %v748 = vpack.c.b16 %v706, %v703
        %v749 = vpack.c.b16 %v710, %v707
        %v750 = vpack.c.b16 %v711, %v708
        %v751 = vpack.c.b16 %v712, %v709
        %v752 = vpack.c.b16 %v716, %v713
        %v753 = vpack.c.b16 %v717, %v714
        %v754 = vpack.c.b16 %v718, %v715
        %v755 = vpack.c.b16 %v722, %v719
        %v756 = vpack.c.b16 %v723, %v720
        %v757 = vpack.c.b16 %v724, %v721
        %v758 = vpack.c.b16 %v728, %v725
        %v759 = vpack.c.b16 %v729, %v726
        %v760 = vpack.c.b16 %v730, %v727
        %v761 = vpack.c.b16 %v734, %v731
        %v762 = vpack.c.b16 %v735, %v732
        %v763 = vpack.c.b16 %v736, %v733
        %v764 = vpack.c.b16 %v740, %v737
        %v765 = vpack.c.b16 %v741, %v738
        %v766 = vpack.c.b16 %v742, %v739
        %791 = vmatprep.subr.bf16.mxu0 %v744
        %792 = vmatpush1.bf16.msra.mxu0 %v743
        %793 = vmatprep.subr.bf16.mxu0 %v747
        %794 = vmatpush1.bf16.msra.mxu0 %v746
        %795 = vmatprep.subr.bf16.mxu0 %v750
        %796 = vmatpush1.bf16.msra.mxu0 %v749
        %797 = vmatprep.subr.bf16.mxu0 %v753
        %798 = vmatpush1.bf16.msra.mxu0 %v752
        %799 = vmatprep.subr.bf16.mxu0 %v756
        %800 = vmatpush1.bf16.msra.mxu0 %v755
        %801 = vmatprep.subr.bf16.mxu0 %v759
        %802 = vmatpush1.bf16.msra.mxu0 %v758
        %803 = vmatprep.subr.bf16.mxu0 %v762
        %804 = vmatpush1.bf16.msra.mxu0 %v761
        %805 = vmatprep.subr.bf16.mxu0 %v765
        %806 = vmatpush1.bf16.msra.mxu0 %v764
        %807 = vmatprep.subr.bf16.mxu0 0
        %808 = vmatpush1.bf16.msra.mxu0 0
        %809 = vmatprep.subr.bf16.mxu0 0
        %810 = vmatpush1.bf16.msra.mxu0 0
        %811 = vmatprep.subr.bf16.mxu0 0
        %812 = vmatpush1.bf16.msra.mxu0 0
        %813 = vmatprep.subr.bf16.mxu0 0
        %814 = vmatpush1.bf16.msra.mxu0 0
        %815 = vmatprep.subr.bf16.mxu0 0
        %816 = vmatpush1.bf16.msra.mxu0 0
        %817 = vmatprep.subr.bf16.mxu0 0
        %818 = vmatpush1.bf16.msra.mxu0 0
        %819 = vmatprep.subr.bf16.mxu0 0
        %820 = vmatpush1.bf16.msra.mxu0 0
        %821 = vmatprep.subr.bf16.mxu0 0
        %822 = vmatpush1.bf16.msra.mxu0 0
        %823 = vmatprep.mubr.bf16.mxu0 0
        %824 = vmatmul.mubr.bf16.gmra.mrb[0].mxu0 %v613
        %v825 = vpop.f32.mrb[0].mxu0
        %v826 = vadd.f32 %v651, %v825
        %v827 = vpop.f32.mrb[0].mxu0
        %v828 = vadd.f32 %v655, %v827
        %v829 = vpop.f32.mrb[0].mxu0
        %v830 = vadd.f32 %v651, %v829
        %v831 = vpop.f32.mrb[0].mxu0
        %v832 = vadd.f32 %v655, %v831
        %833 = vdwg.mxu0
        %834 = vmatprep.subr.bf16.mxu0 0
        %835 = vmatpush1.bf16.msra.mxu0 %v745
        %836 = vmatprep.subr.bf16.mxu0 0
        %837 = vmatpush1.bf16.msra.mxu0 %v748
        %838 = vmatprep.subr.bf16.mxu0 0
        %839 = vmatpush1.bf16.msra.mxu0 %v751
        %840 = vmatprep.subr.bf16.mxu0 0
        %841 = vmatpush1.bf16.msra.mxu0 %v754
        %842 = vmatprep.subr.bf16.mxu0 0
        %843 = vmatpush1.bf16.msra.mxu0 %v757
        %844 = vmatprep.subr.bf16.mxu0 0
        %845 = vmatpush1.bf16.msra.mxu0 %v760
        %846 = vmatprep.subr.bf16.mxu0 0
        %847 = vmatpush1.bf16.msra.mxu0 %v763
        %848 = vmatprep.subr.bf16.mxu0 0
        %849 = vmatpush1.bf16.msra.mxu0 %v766
        %850 = vmatprep.subr.bf16.mxu0 0
        %851 = vmatpush1.bf16.msra.mxu0 0
        %852 = vmatprep.subr.bf16.mxu0 0
        %853 = vmatpush1.bf16.msra.mxu0 0
        %854 = vmatprep.subr.bf16.mxu0 0
        %855 = vmatpush1.bf16.msra.mxu0 0
        %856 = vmatprep.subr.bf16.mxu0 0
        %857 = vmatpush1.bf16.msra.mxu0 0
        %858 = vmatprep.subr.bf16.mxu0 0
        %859 = vmatpush1.bf16.msra.mxu0 0
        %860 = vmatprep.subr.bf16.mxu0 0
        %861 = vmatpush1.bf16.msra.mxu0 0
        %862 = vmatprep.subr.bf16.mxu0 0
        %863 = vmatpush1.bf16.msra.mxu0 0
        %864 = vmatprep.subr.bf16.mxu0 0
        %865 = vmatpush1.bf16.msra.mxu0 0
        %866 = vmatprep.mubr.bf16.mxu0 0
        %867 = vmatmul.mubr.bf16.gmra.mrb[0].mxu0 %v613
        %v868 = vpop.f32.mrb[0].mxu0
        %v869 = vadd.f32 %v659, %v868
        %v870 = vpop.f32.mrb[0].mxu0
        %v871 = vpop.f32.mrb[0].mxu0
        %v872 = vadd.f32 %v659, %v871
        %v873 = vpop.f32.mrb[0].mxu0
        %874 = vdwg.mxu0
        %v875 = vmul.f32 %v826, %v828
        %v876 = vmul.f32 %v830, %v828
        %v877 = vmul.f32 %v826, %v832
        %v878 = vmul.f32 %v830, %v832
        %v879 = vpack.c.bf16 %v876, %v875
        %v880 = vpack.c.bf16 %v878, %v877
        %v897 = vunpack.c.l.b16 %v594
        %v898 = vunpack.c.l.b16 %v595
        %v899 = vunpack.c.l.b16 %v596
        %v900 = vunpack.c.l.b16 %v597
        %v901 = vunpack.c.l.b16 %v598
        %v902 = vunpack.c.l.b16 %v599
        %v903 = vunpack.c.l.b16 %v600
        %v904 = vunpack.c.l.b16 %v601
        %v905 = vunpack.c.l.b16 %v602
        %v906 = vunpack.c.l.b16 %v603
        %v907 = vunpack.c.l.b16 %v604
        %v908 = vunpack.c.l.b16 %v605
        %v909 = vunpack.c.l.b16 %v606
        %v910 = vunpack.c.l.b16 %v607
        %v911 = vunpack.c.l.b16 %v608
        %v912 = vunpack.c.l.b16 %v609
        %v913 = vpack.c.b16 %v898, %v897
        %v914 = vpack.c.b16 %v900, %v899
        %v915 = vpack.c.b16 %v902, %v901
        %v916 = vpack.c.b16 %v904, %v903
        %v917 = vpack.c.b16 %v906, %v905
        %v918 = vpack.c.b16 %v908, %v907
        %v919 = vpack.c.b16 %v910, %v909
        %v920 = vpack.c.b16 %v912, %v911
        %929 = vmatprep.subr.bf16.mxu0 0
        %930 = vmatpush1.bf16.msra.mxu0 %v913
        %931 = vmatprep.subr.bf16.mxu0 0
        %932 = vmatpush1.bf16.msra.mxu0 %v914
        %933 = vmatprep.subr.bf16.mxu0 0
        %934 = vmatpush1.bf16.msra.mxu0 %v915
        %935 = vmatprep.subr.bf16.mxu0 0
        %936 = vmatpush1.bf16.msra.mxu0 %v916
        %937 = vmatprep.subr.bf16.mxu0 0
        %938 = vmatpush1.bf16.msra.mxu0 %v917
        %939 = vmatprep.subr.bf16.mxu0 0
        %940 = vmatpush1.bf16.msra.mxu0 %v918
        %941 = vmatprep.subr.bf16.mxu0 0
        %942 = vmatpush1.bf16.msra.mxu0 %v919
        %943 = vmatprep.subr.bf16.mxu0 0
        %944 = vmatpush1.bf16.msra.mxu0 %v920
        %945 = vmatprep.subr.bf16.mxu0 0
        %946 = vmatpush1.bf16.msra.mxu0 0
        %947 = vmatprep.subr.bf16.mxu0 0
        %948 = vmatpush1.bf16.msra.mxu0 0
        %949 = vmatprep.subr.bf16.mxu0 0
        %950 = vmatpush1.bf16.msra.mxu0 0
        %951 = vmatprep.subr.bf16.mxu0 0
        %952 = vmatpush1.bf16.msra.mxu0 0
        %953 = vmatprep.subr.bf16.mxu0 0
        %954 = vmatpush1.bf16.msra.mxu0 0
        %955 = vmatprep.subr.bf16.mxu0 0
        %956 = vmatpush1.bf16.msra.mxu0 0
        %957 = vmatprep.subr.bf16.mxu0 0
        %958 = vmatpush1.bf16.msra.mxu0 0
        %959 = vmatprep.subr.bf16.mxu0 0
        %960 = vmatpush1.bf16.msra.mxu0 0
        %961 = vmatprep.mubr.bf16.mxu0 0
        %962 = vmatmul.mubr.bf16.gmra.mrb[0].mxu0 %v879
        %v963 = vpop.f32.mrb[0].mxu0
        %v964 = vadd.f32 0.0, %v963
        %v965 = vpop.f32.mrb[0].mxu0
        %v966 = vpop.f32.mrb[0].mxu0
        %v967 = vadd.f32 0.0, %v966
        %v968 = vpop.f32.mrb[0].mxu0
        %969 = vmatprep.mubr.bf16.mxu0 0
        %970 = vmatmul.mubr.bf16.gmra.mrb[0].mxu0 %v880
        %v971 = vpop.f32.mrb[0].mxu0
        %v972 = vadd.f32 0.0, %v971
        %v973 = vpop.f32.mrb[0].mxu0
        %v974 = vpop.f32.mrb[0].mxu0
        %v975 = vadd.f32 0.0, %v974
        %v976 = vpop.f32.mrb[0].mxu0
        %977 = vdwg.mxu0
        %v978 = vsub.f32 %v972, %v964
        %v979 = vsub.f32 %v975, %v967
        %v980 = vmul.f32 %v978, 1.442695
        %v981 = vpow.pop %v980
        %v982 = vmul.f32 %v979, 1.442695
        %v983 = vpow.pop %v982
        %v984 = vadd.f32 %v981, 1.0
        %v985 = vadd.f32 %v983, 1.0
        %v986 = vrcp.pop %v984
        %v987 = vrcp.pop %v985
        %v988 = vsub.f32 1.0, %v986
        %v989 = vsub.f32 1.0, %v987
        %v990 = vpack.c.bf16 %v987, %v986
        %v991 = vpack.c.bf16 %v989, %v988
        %vm992 = vcmask 31744
        %v994 = vsel %vm992, %v990, 0
        %v997 = vsel %vm992, %v991, 0
        %vm999 = vcmask 1041408
        %v1001 = vsel %vm999, %v610, 0
        %1003 = vmatprep.subr.bf16.mxu0 0
        %1004 = vmatpush1.bf16.msra.mxu0 %v1001
        %1005 = vmatprep.subr.bf16.mxu0 0
        %1006 = vmatpush1.bf16.msra.mxu0 0
        %1007 = vmatprep.subr.bf16.mxu0 0
        %1008 = vmatpush1.bf16.msra.mxu0 0
        %1009 = vmatprep.subr.bf16.mxu0 0
        %1010 = vmatpush1.bf16.msra.mxu0 0
        %1011 = vmatprep.subr.bf16.mxu0 0
        %1012 = vmatpush1.bf16.msra.mxu0 0
        %1013 = vmatprep.subr.bf16.mxu0 0
        %1014 = vmatpush1.bf16.msra.mxu0 0
        %1015 = vmatprep.subr.bf16.mxu0 0
        %1016 = vmatpush1.bf16.msra.mxu0 0
        %1017 = vmatprep.subr.bf16.mxu0 0
        %1018 = vmatpush1.bf16.msra.mxu0 0
        %1019 = vmatprep.subr.bf16.mxu0 0
        %1020 = vmatpush1.bf16.msra.mxu0 0
        %1021 = vmatprep.subr.bf16.mxu0 0
        %1022 = vmatpush1.bf16.msra.mxu0 0
        %1023 = vmatprep.subr.bf16.mxu0 0
        %1024 = vmatpush1.bf16.msra.mxu0 0
        %1025 = vmatprep.subr.bf16.mxu0 0
        %1026 = vmatpush1.bf16.msra.mxu0 0
        %1027 = vmatprep.subr.bf16.mxu0 0
        %1028 = vmatpush1.bf16.msra.mxu0 0
        %1029 = vmatprep.subr.bf16.mxu0 0
        %1030 = vmatpush1.bf16.msra.mxu0 0
        %1031 = vmatprep.subr.bf16.mxu0 0
        %1032 = vmatpush1.bf16.msra.mxu0 0
        %1033 = vmatprep.subr.bf16.mxu0 0
        %1034 = vmatpush1.bf16.msra.mxu0 0
        %1035 = vmatprep.mubr.bf16.mxu0 0
        %1036 = vmatmul.mubr.bf16.gmra.mrb[0].mxu0 %v994
        %v1037 = vpop.f32.mrb[0].mxu0
        %v1038 = vadd.f32 0.0, %v1037
        %v1039 = vpop.f32.mrb[0].mxu0
        %v1040 = vpop.f32.mrb[0].mxu0
        %v1041 = vadd.f32 0.0, %v1040
        %v1042 = vpop.f32.mrb[0].mxu0
        %1043 = vmatprep.mubr.bf16.mxu0 0
        %1044 = vmatmul.mubr.bf16.gmra.mrb[0].mxu0 %v997
        %v1045 = vpop.f32.mrb[0].mxu0
        %v1046 = vadd.f32 0.0, %v1045
        %v1047 = vpop.f32.mrb[0].mxu0
        %v1048 = vpop.f32.mrb[0].mxu0
        %v1049 = vadd.f32 0.0, %v1048
        %v1050 = vpop.f32.mrb[0].mxu0
        %1051 = vdwg.mxu0
        %v1052 = vmul.f32 %v1038, %v869
        %v1053 = vmul.f32 %v1046, %v872
        %v1054 = vadd.f32 %v1052, %v1053
        %v1055 = vmul.f32 %v1041, %v869
        %v1056 = vmul.f32 %v1049, %v872
        %v1057 = vadd.f32 %v1055, %v1056
        %v1058 = vpack.c.bf16 %v1057, %v1054
        %v1059 = vld [vmem:[#allocation5] sm:$0xf]
        %v1060 = vld [vmem:[#allocation5 + $0x4] sm:$0xf]
        %v1061 = vld [vmem:[#allocation5 + $0x8] sm:$0xf]
        %v1062 = vld [vmem:[#allocation5 + $0xc] sm:$0xf]
        %v1063 = vld [vmem:[#allocation5 + $0x10] sm:$0xf]
        %v1064 = vld [vmem:[#allocation5 + $0x14] sm:$0xf]
        %v1065 = vld [vmem:[#allocation5 + $0x18] sm:$0xf]
        %v1066 = vld [vmem:[#allocation5 + $0x1c] sm:$0xf]
        %v1067 = vld [vmem:[#allocation5 + $0x20] sm:$0xf]
        %v1068 = vld [vmem:[#allocation5 + $0x24] sm:$0xf]
        %v1069 = vld [vmem:[#allocation5 + $0x28] sm:$0xf]
        %v1070 = vld [vmem:[#allocation5 + $0x2c] sm:$0xf]
        %v1071 = vld [vmem:[#allocation5 + $0x30] sm:$0xf]
        %v1072 = vld [vmem:[#allocation5 + $0x34] sm:$0xf]
        %v1073 = vld [vmem:[#allocation5 + $0x38] sm:$0xf]
        %v1074 = vld [vmem:[#allocation5 + $0x3c] sm:$0xf]
        %v1075 = vld [vmem:[%s7] sm:$0x1]
        %v1077 = vlaneseq
        %v1078 = vshrl.u32 %v1077, 7
        %v1079 = vsub.s32 0, %v1078
        %v1080 = vrot.slane %v1075, %v1079
        %v1098 = vunpack.c.l.b16 %v1059
        %v1099 = vunpack.c.l.b16 %v1060
        %v1100 = vunpack.c.l.b16 %v1061
        %v1101 = vunpack.c.l.b16 %v1062
        %v1102 = vunpack.c.l.b16 %v1063
        %v1103 = vunpack.c.l.b16 %v1064
        %v1104 = vunpack.c.l.b16 %v1065
        %v1105 = vunpack.c.l.b16 %v1066
        %v1106 = vunpack.c.l.b16 %v1067
        %v1107 = vunpack.c.l.b16 %v1068
        %v1108 = vunpack.c.l.b16 %v1069
        %v1109 = vunpack.c.l.b16 %v1070
        %v1110 = vunpack.c.l.b16 %v1071
        %v1111 = vunpack.c.l.b16 %v1072
        %v1112 = vunpack.c.l.b16 %v1073
        %v1113 = vunpack.c.l.b16 %v1074
        %v1114 = vpack.c.b16 %v1099, %v1098
        %v1115 = vpack.c.b16 %v1101, %v1100
        %v1116 = vpack.c.b16 %v1103, %v1102
        %v1117 = vpack.c.b16 %v1105, %v1104
        %v1118 = vpack.c.b16 %v1107, %v1106
        %v1119 = vpack.c.b16 %v1109, %v1108
        %v1120 = vpack.c.b16 %v1111, %v1110
        %v1121 = vpack.c.b16 %v1113, %v1112
        %1130 = vmatprep.subr.bf16.mxu0 0
        %1131 = vmatpush1.bf16.msra.mxu0 %v1114
        %1132 = vmatprep.subr.bf16.mxu0 0
        %1133 = vmatpush1.bf16.msra.mxu0 %v1115
        %1134 = vmatprep.subr.bf16.mxu0 0
        %1135 = vmatpush1.bf16.msra.mxu0 %v1116
        %1136 = vmatprep.subr.bf16.mxu0 0
        %1137 = vmatpush1.bf16.msra.mxu0 %v1117
        %1138 = vmatprep.subr.bf16.mxu0 0
        %1139 = vmatpush1.bf16.msra.mxu0 %v1118
        %1140 = vmatprep.subr.bf16.mxu0 0
        %1141 = vmatpush1.bf16.msra.mxu0 %v1119
        %1142 = vmatprep.subr.bf16.mxu0 0
        %1143 = vmatpush1.bf16.msra.mxu0 %v1120
        %1144 = vmatprep.subr.bf16.mxu0 0
        %1145 = vmatpush1.bf16.msra.mxu0 %v1121
        %1146 = vmatprep.subr.bf16.mxu0 0
        %1147 = vmatpush1.bf16.msra.mxu0 0
        %1148 = vmatprep.subr.bf16.mxu0 0
        %1149 = vmatpush1.bf16.msra.mxu0 0
        %1150 = vmatprep.subr.bf16.mxu0 0
        %1151 = vmatpush1.bf16.msra.mxu0 0
        %1152 = vmatprep.subr.bf16.mxu0 0
        %1153 = vmatpush1.bf16.msra.mxu0 0
        %1154 = vmatprep.subr.bf16.mxu0 0
        %1155 = vmatpush1.bf16.msra.mxu0 0
        %1156 = vmatprep.subr.bf16.mxu0 0
        %1157 = vmatpush1.bf16.msra.mxu0 0
        %1158 = vmatprep.subr.bf16.mxu0 0
        %1159 = vmatpush1.bf16.msra.mxu0 0
        %1160 = vmatprep.subr.bf16.mxu0 0
        %1161 = vmatpush1.bf16.msra.mxu0 0
        %1162 = vmatprep.mubr.bf16.mxu0 0
        %1163 = vmatmul.mubr.bf16.gmra.mrb[0].mxu0 %v1058
        %v1164 = vpop.f32.mrb[0].mxu0
        %v1165 = vadd.f32 %v1080, %v1164
        %v1166 = vpop.f32.mrb[0].mxu0
        %v1167 = vpop.f32.mrb[0].mxu0
        %v1168 = vadd.f32 %v1080, %v1167
        %v1169 = vpop.f32.mrb[0].mxu0
        %1170 = vdwg.mxu0
        %v1171 = vadd.f32 %v611, %v1165
        %v1172 = vadd.f32 %v612, %v1168
        %v1173 = vld [vmem:[%s12] sm:$0x1]
        %v1174 = vld [vmem:[%s13] sm:$0x1]
        %1175 = vadd.xlane.f32.xlu0 %v1171
        %v1176 = vpop.xlane.xlu0 %1175
        %1177 = vadd.xlane.f32.xlu0 %v1172
        %v1178 = vpop.xlane.xlu0 %1177
        %v1179 = vrcp.pop 128.0
        %v1180 = vmul.f32 %v1176, %v1179
        %v1181 = vmul.f32 %v1178, %v1179
        %v1182 = vsub.f32 %v1171, %v1180
        %v1183 = vsub.f32 %v1172, %v1181
        %v1184 = vmul.f32 %v1182, %v1182
        %v1185 = vmul.f32 %v1183, %v1183
        %1186 = vadd.xlane.f32.xlu0 %v1184
        %v1187 = vpop.xlane.xlu0 %1186
        %1188 = vadd.xlane.f32.xlu0 %v1185
        %v1189 = vpop.xlane.xlu0 %1188
        %v1190 = vmul.f32 %v1187, %v1179
        %v1191 = vmul.f32 %v1189, %v1179
        %v1192 = vadd.f32 %v1190, 1e-05
        %v1193 = vadd.f32 %v1191, 1e-05
        %v1194 = vrsqrt.pop %v1192
        %v1195 = vrsqrt.pop %v1193
        %v1196 = vmul.f32 %v1182, %v1194
        %v1197 = vmul.f32 %v1183, %v1195
        %v1199 = vlaneseq
        %v1200 = vshrl.u32 %v1199, 7
        %v1201 = vsub.s32 0, %v1200
        %v1202 = vrot.slane %v1173, %v1201
        %v1204 = vmul.f32 %v1196, %v1202
        %v1205 = vmul.f32 %v1197, %v1202
        %v1207 = vlaneseq
        %v1208 = vshrl.u32 %v1207, 7
        %v1209 = vsub.s32 0, %v1208
        %v1210 = vrot.slane %v1174, %v1209
        %v1212 = vadd.f32 %v1204, %v1210
        %v1213 = vadd.f32 %v1205, %v1210
        %v1214 = vpack.c.bf16 %v1213, %v1212
        %v1215 = vld [vmem:[#allocation7] sm:$0xff]
        %v1216 = vld [vmem:[#allocation7 + $0x8] sm:$0xff]
        %v1217 = vld [vmem:[#allocation7 + $0x10] sm:$0xff]
        %v1218 = vld [vmem:[#allocation7 + $0x18] sm:$0xff]
        %v1219 = vld [vmem:[#allocation7 + $0x20] sm:$0xff]
        %v1220 = vld [vmem:[#allocation7 + $0x28] sm:$0xff]
        %v1221 = vld [vmem:[#allocation7 + $0x30] sm:$0xff]
        %v1222 = vld [vmem:[#allocation7 + $0x38] sm:$0xff]
        %v1223 = vld [vmem:[#allocation7 + $0x40] sm:$0xff]
        %v1224 = vld [vmem:[#allocation7 + $0x48] sm:$0xff]
        %v1225 = vld [vmem:[#allocation7 + $0x50] sm:$0xff]
        %v1226 = vld [vmem:[#allocation7 + $0x58] sm:$0xff]
        %v1227 = vld [vmem:[#allocation7 + $0x60] sm:$0xff]
        %v1228 = vld [vmem:[#allocation7 + $0x68] sm:$0xff]
        %v1229 = vld [vmem:[#allocation7 + $0x70] sm:$0xff]
        %v1230 = vld [vmem:[#allocation7 + $0x78] sm:$0xff]
        %v1231 = vld [vmem:[%s9] sm:$0x3]
        %v1233 = vlaneseq
        %v1234 = vshrl.u32 %v1233, 7
        %v1235 = vsub.s32 0, %v1234
        %v1236 = vrot.slane %v1231, %v1235
        %v1237 = vlaneseq
        %v1238 = vshrl.u32 %v1237, 7
        %v1239 = vsub.s32 1, %v1238
        %v1240 = vrot.slane %v1231, %v1239
        %v1259 = vunpack.c.l.b16 %v1215
        %v1260 = vunpack.c.h.b16 %v1215
        %v1261 = vunpack.c.l.b16 %v1216
        %v1262 = vunpack.c.h.b16 %v1216
        %v1263 = vunpack.c.l.b16 %v1217
        %v1264 = vunpack.c.h.b16 %v1217
        %v1265 = vunpack.c.l.b16 %v1218
        %v1266 = vunpack.c.h.b16 %v1218
        %v1267 = vunpack.c.l.b16 %v1219
        %v1268 = vunpack.c.h.b16 %v1219
        %v1269 = vunpack.c.l.b16 %v1220
        %v1270 = vunpack.c.h.b16 %v1220
        %v1271 = vunpack.c.l.b16 %v1221
        %v1272 = vunpack.c.h.b16 %v1221
        %v1273 = vunpack.c.l.b16 %v1222
        %v1274 = vunpack.c.h.b16 %v1222
        %v1275 = vunpack.c.l.b16 %v1223
        %v1276 = vunpack.c.h.b16 %v1223
        %v1277 = vunpack.c.l.b16 %v1224
        %v1278 = vunpack.c.h.b16 %v1224
        %v1279 = vunpack.c.l.b16 %v1225
        %v1280 = vunpack.c.h.b16 %v1225
        %v1281 = vunpack.c.l.b16 %v1226
        %v1282 = vunpack.c.h.b16 %v1226
        %v1283 = vunpack.c.l.b16 %v1227
        %v1284 = vunpack.c.h.b16 %v1227
        %v1285 = vunpack.c.l.b16 %v1228
        %v1286 = vunpack.c.h.b16 %v1228
        %v1287 = vunpack.c.l.b16 %v1229
        %v1288 = vunpack.c.h.b16 %v1229
        %v1289 = vunpack.c.l.b16 %v1230
        %v1290 = vunpack.c.h.b16 %v1230
        %v1291 = vpack.c.b16 %v1261, %v1259
        %v1292 = vpack.c.b16 %v1262, %v1260
        %v1293 = vpack.c.b16 %v1265, %v1263
        %v1294 = vpack.c.b16 %v1266, %v1264
        %v1295 = vpack.c.b16 %v1269, %v1267
        %v1296 = vpack.c.b16 %v1270, %v1268
        %v1297 = vpack.c.b16 %v1273, %v1271
        %v1298 = vpack.c.b16 %v1274, %v1272
        %v1299 = vpack.c.b16 %v1277, %v1275
        %v1300 = vpack.c.b16 %v1278, %v1276
        %v1301 = vpack.c.b16 %v1281, %v1279
        %v1302 = vpack.c.b16 %v1282, %v1280
        %v1303 = vpack.c.b16 %v1285, %v1283
        %v1304 = vpack.c.b16 %v1286, %v1284
        %v1305 = vpack.c.b16 %v1289, %v1287
        %v1306 = vpack.c.b16 %v1290, %v1288
        %1323 = vmatprep.subr.bf16.mxu0 %v1292
        %1324 = vmatpush1.bf16.msra.mxu0 %v1291
        %1325 = vmatprep.subr.bf16.mxu0 %v1294
        %1326 = vmatpush1.bf16.msra.mxu0 %v1293
        %1327 = vmatprep.subr.bf16.mxu0 %v1296
        %1328 = vmatpush1.bf16.msra.mxu0 %v1295
        %1329 = vmatprep.subr.bf16.mxu0 %v1298
        %1330 = vmatpush1.bf16.msra.mxu0 %v1297
        %1331 = vmatprep.subr.bf16.mxu0 %v1300
        %1332 = vmatpush1.bf16.msra.mxu0 %v1299
        %1333 = vmatprep.subr.bf16.mxu0 %v1302
        %1334 = vmatpush1.bf16.msra.mxu0 %v1301
        %1335 = vmatprep.subr.bf16.mxu0 %v1304
        %1336 = vmatpush1.bf16.msra.mxu0 %v1303
        %1337 = vmatprep.subr.bf16.mxu0 %v1306
        %1338 = vmatpush1.bf16.msra.mxu0 %v1305
        %1339 = vmatprep.subr.bf16.mxu0 0
        %1340 = vmatpush1.bf16.msra.mxu0 0
        %1341 = vmatprep.subr.bf16.mxu0 0
        %1342 = vmatpush1.bf16.msra.mxu0 0
        %1343 = vmatprep.subr.bf16.mxu0 0
        %1344 = vmatpush1.bf16.msra.mxu0 0
        %1345 = vmatprep.subr.bf16.mxu0 0
        %1346 = vmatpush1.bf16.msra.mxu0 0
        %1347 = vmatprep.subr.bf16.mxu0 0
        %1348 = vmatpush1.bf16.msra.mxu0 0
        %1349 = vmatprep.subr.bf16.mxu0 0
        %1350 = vmatpush1.bf16.msra.mxu0 0
        %1351 = vmatprep.subr.bf16.mxu0 0
        %1352 = vmatpush1.bf16.msra.mxu0 0
        %1353 = vmatprep.subr.bf16.mxu0 0
        %1354 = vmatpush1.bf16.msra.mxu0 0
        %1355 = vmatprep.mubr.bf16.mxu0 0
        %1356 = vmatmul.mubr.bf16.gmra.mrb[0].mxu0 %v1214
        %v1357 = vpop.f32.mrb[0].mxu0
        %v1358 = vadd.f32 %v1236, %v1357
        %v1359 = vpop.f32.mrb[0].mxu0
        %v1360 = vadd.f32 %v1240, %v1359
        %v1361 = vpop.f32.mrb[0].mxu0
        %v1362 = vadd.f32 %v1236, %v1361
        %v1363 = vpop.f32.mrb[0].mxu0
        %v1364 = vadd.f32 %v1240, %v1363
        %1365 = vdwg.mxu0
        %v1366 = vmax.f32 %v1358, 0.0
        %v1367 = vmax.f32 %v1360, 0.0
        %v1368 = vmax.f32 %v1362, 0.0
        %v1369 = vmax.f32 %v1364, 0.0
        %v1370 = vpack.c.bf16 %v1368, %v1366
        %v1371 = vpack.c.bf16 %v1369, %v1367
        %v1372 = vld [vmem:[#allocation8] sm:$0xf]
        %v1373 = vld [vmem:[#allocation8 + $0x4] sm:$0xf]
        %v1374 = vld [vmem:[#allocation8 + $0x8] sm:$0xf]
        %v1375 = vld [vmem:[#allocation8 + $0xc] sm:$0xf]
        %v1376 = vld [vmem:[#allocation8 + $0x10] sm:$0xf]
        %v1377 = vld [vmem:[#allocation8 + $0x14] sm:$0xf]
        %v1378 = vld [vmem:[#allocation8 + $0x18] sm:$0xf]
        %v1379 = vld [vmem:[#allocation8 + $0x1c] sm:$0xf]
        %v1380 = vld [vmem:[#allocation8 + $0x20] sm:$0xf]
        %v1381 = vld [vmem:[#allocation8 + $0x24] sm:$0xf]
        %v1382 = vld [vmem:[#allocation8 + $0x28] sm:$0xf]
        %v1383 = vld [vmem:[#allocation8 + $0x2c] sm:$0xf]
        %v1384 = vld [vmem:[#allocation8 + $0x30] sm:$0xf]
        %v1385 = vld [vmem:[#allocation8 + $0x34] sm:$0xf]
        %v1386 = vld [vmem:[#allocation8 + $0x38] sm:$0xf]
        %v1387 = vld [vmem:[#allocation8 + $0x3c] sm:$0xf]
        %v1388 = vld [vmem:[#allocation8 + $0x40] sm:$0xf]
        %v1389 = vld [vmem:[#allocation8 + $0x44] sm:$0xf]
        %v1390 = vld [vmem:[#allocation8 + $0x48] sm:$0xf]
        %v1391 = vld [vmem:[#allocation8 + $0x4c] sm:$0xf]
        %v1392 = vld [vmem:[#allocation8 + $0x50] sm:$0xf]
        %v1393 = vld [vmem:[#allocation8 + $0x54] sm:$0xf]
        %v1394 = vld [vmem:[#allocation8 + $0x58] sm:$0xf]
        %v1395 = vld [vmem:[#allocation8 + $0x5c] sm:$0xf]
        %v1396 = vld [vmem:[#allocation8 + $0x60] sm:$0xf]
        %v1397 = vld [vmem:[#allocation8 + $0x64] sm:$0xf]
        %v1398 = vld [vmem:[#allocation8 + $0x68] sm:$0xf]
        %v1399 = vld [vmem:[#allocation8 + $0x6c] sm:$0xf]
        %v1400 = vld [vmem:[#allocation8 + $0x70] sm:$0xf]
        %v1401 = vld [vmem:[#allocation8 + $0x74] sm:$0xf]
        %v1402 = vld [vmem:[#allocation8 + $0x78] sm:$0xf]
        %v1403 = vld [vmem:[#allocation8 + $0x7c] sm:$0xf]
        %v1404 = vld [vmem:[%s11] sm:$0x1]
        %v1406 = vlaneseq
        %v1407 = vshrl.u32 %v1406, 7
        %v1408 = vsub.s32 0, %v1407
        %v1409 = vrot.slane %v1404, %v1408
        %v1443 = vunpack.c.l.b16 %v1372
        %v1444 = vunpack.c.l.b16 %v1373
        %v1445 = vunpack.c.l.b16 %v1374
        %v1446 = vunpack.c.l.b16 %v1375
        %v1447 = vunpack.c.l.b16 %v1376
        %v1448 = vunpack.c.l.b16 %v1377
        %v1449 = vunpack.c.l.b16 %v1378
        %v1450 = vunpack.c.l.b16 %v1379
        %v1451 = vunpack.c.l.b16 %v1380
        %v1452 = vunpack.c.l.b16 %v1381
        %v1453 = vunpack.c.l.b16 %v1382
        %v1454 = vunpack.c.l.b16 %v1383
        %v1455 = vunpack.c.l.b16 %v1384
        %v1456 = vunpack.c.l.b16 %v1385
        %v1457 = vunpack.c.l.b16 %v1386
        %v1458 = vunpack.c.l.b16 %v1387
        %v1459 = vunpack.c.l.b16 %v1388
        %v1460 = vunpack.c.l.b16 %v1389
        %v1461 = vunpack.c.l.b16 %v1390
        %v1462 = vunpack.c.l.b16 %v1391
        %v1463 = vunpack.c.l.b16 %v1392
        %v1464 = vunpack.c.l.b16 %v1393
        %v1465 = vunpack.c.l.b16 %v1394
        %v1466 = vunpack.c.l.b16 %v1395
        %v1467 = vunpack.c.l.b16 %v1396
        %v1468 = vunpack.c.l.b16 %v1397
        %v1469 = vunpack.c.l.b16 %v1398
        %v1470 = vunpack.c.l.b16 %v1399
        %v1471 = vunpack.c.l.b16 %v1400
        %v1472 = vunpack.c.l.b16 %v1401
        %v1473 = vunpack.c.l.b16 %v1402
        %v1474 = vunpack.c.l.b16 %v1403
        %v1475 = vpack.c.b16 %v1444, %v1443
        %v1476 = vpack.c.b16 %v1446, %v1445
        %v1477 = vpack.c.b16 %v1448, %v1447
        %v1478 = vpack.c.b16 %v1450, %v1449
        %v1479 = vpack.c.b16 %v1452, %v1451
        %v1480 = vpack.c.b16 %v1454, %v1453
        %v1481 = vpack.c.b16 %v1456, %v1455
        %v1482 = vpack.c.b16 %v1458, %v1457
        %v1483 = vpack.c.b16 %v1460, %v1459
        %v1484 = vpack.c.b16 %v1462, %v1461
        %v1485 = vpack.c.b16 %v1464, %v1463
        %v1486 = vpack.c.b16 %v1466, %v1465
        %v1487 = vpack.c.b16 %v1468, %v1467
        %v1488 = vpack.c.b16 %v1470, %v1469
        %v1489 = vpack.c.b16 %v1472, %v1471
        %v1490 = vpack.c.b16 %v1474, %v1473
        %1507 = vmatprep.subr.bf16.mxu0 0
        %1508 = vmatpush1.bf16.msra.mxu0 %v1475
        %1509 = vmatprep.subr.bf16.mxu0 0
        %1510 = vmatpush1.bf16.msra.mxu0 %v1476
        %1511 = vmatprep.subr.bf16.mxu0 0
        %1512 = vmatpush1.bf16.msra.mxu0 %v1477
        %1513 = vmatprep.subr.bf16.mxu0 0
        %1514 = vmatpush1.bf16.msra.mxu0 %v1478
        %1515 = vmatprep.subr.bf16.mxu0 0
        %1516 = vmatpush1.bf16.msra.mxu0 %v1479
        %1517 = vmatprep.subr.bf16.mxu0 0
        %1518 = vmatpush1.bf16.msra.mxu0 %v1480
        %1519 = vmatprep.subr.bf16.mxu0 0
        %1520 = vmatpush1.bf16.msra.mxu0 %v1481
        %1521 = vmatprep.subr.bf16.mxu0 0
        %1522 = vmatpush1.bf16.msra.mxu0 %v1482
        %1523 = vmatprep.subr.bf16.mxu0 0
        %1524 = vmatpush1.bf16.msra.mxu0 %v1483
        %1525 = vmatprep.subr.bf16.mxu0 0
        %1526 = vmatpush1.bf16.msra.mxu0 %v1484
        %1527 = vmatprep.subr.bf16.mxu0 0
        %1528 = vmatpush1.bf16.msra.mxu0 %v1485
        %1529 = vmatprep.subr.bf16.mxu0 0
        %1530 = vmatpush1.bf16.msra.mxu0 %v1486
        %1531 = vmatprep.subr.bf16.mxu0 0
        %1532 = vmatpush1.bf16.msra.mxu0 %v1487
        %1533 = vmatprep.subr.bf16.mxu0 0
        %1534 = vmatpush1.bf16.msra.mxu0 %v1488
        %1535 = vmatprep.subr.bf16.mxu0 0
        %1536 = vmatpush1.bf16.msra.mxu0 %v1489
        %1537 = vmatprep.subr.bf16.mxu0 0
        %1538 = vmatpush1.bf16.msra.mxu0 %v1490
        %1539 = vmatprep.mubr.bf16.mxu0 %v1371
        %1540 = vmatmul.mubr.bf16.gmra.mrb[0].mxu0 %v1370
        %v1541 = vpop.f32.mrb[0].mxu0
        %v1542 = vadd.f32 %v1409, %v1541
        %v1543 = vpop.f32.mrb[0].mxu0
        %v1544 = vpop.f32.mrb[0].mxu0
        %v1545 = vadd.f32 %v1409, %v1544
        %v1546 = vpop.f32.mrb[0].mxu0
        %1547 = vdwg.mxu0
        %v1548 = vadd.f32 %v1212, %v1542
        %v1549 = vadd.f32 %v1213, %v1545
        %v1550 = vld [vmem:[%s14] sm:$0x1]
        %v1551 = vld [vmem:[%s15] sm:$0x1]
        %1552 = vadd.xlane.f32.xlu0 %v1548
        %v1553 = vpop.xlane.xlu0 %1552
        %1554 = vadd.xlane.f32.xlu0 %v1549
        %v1555 = vpop.xlane.xlu0 %1554
        %v1556 = vmul.f32 %v1553, %v1179
        %v1557 = vmul.f32 %v1555, %v1179
        %v1558 = vsub.f32 %v1548, %v1556
        %v1559 = vsub.f32 %v1549, %v1557
        %v1560 = vmul.f32 %v1558, %v1558
        %v1561 = vmul.f32 %v1559, %v1559
        %1562 = vadd.xlane.f32.xlu0 %v1560
        %v1563 = vpop.xlane.xlu0 %1562
        %1564 = vadd.xlane.f32.xlu0 %v1561
        %v1565 = vpop.xlane.xlu0 %1564
        %v1566 = vmul.f32 %v1563, %v1179
        %v1567 = vmul.f32 %v1565, %v1179
        %v1568 = vadd.f32 %v1566, 1e-05
        %v1569 = vadd.f32 %v1567, 1e-05
        %v1570 = vrsqrt.pop %v1568
        %v1571 = vrsqrt.pop %v1569
        %v1572 = vmul.f32 %v1558, %v1570
        %v1573 = vmul.f32 %v1559, %v1571
        %v1575 = vlaneseq
        %v1576 = vshrl.u32 %v1575, 7
        %v1577 = vsub.s32 0, %v1576
        %v1578 = vrot.slane %v1550, %v1577
        %v1580 = vmul.f32 %v1572, %v1578
        %v1581 = vmul.f32 %v1573, %v1578
        %v1583 = vlaneseq
        %v1584 = vshrl.u32 %v1583, 7
        %v1585 = vsub.s32 0, %v1584
        %v1586 = vrot.slane %v1551, %v1585
        %v1588 = vadd.f32 %v1580, %v1586
        %v1589 = vadd.f32 %v1581, %v1586
        %v1590 = vpack.c.bf16 %v1589, %v1588
        %s1591 = scalar_lea.vmem [#allocation2], 192
        %v1592 = vld [vmem:[%s1591] sm:$0xff]
        %v1593 = vld [vmem:[%s1591 + $0x8] sm:$0xf]
        %v1594 = vld [vmem:[%s1591 + $0xc] sm:$0xff]
        %v1595 = vld [vmem:[%s1591 + $0x14] sm:$0xf]
        %v1596 = vld [vmem:[%s1591 + $0x18] sm:$0xff]
        %v1597 = vld [vmem:[%s1591 + $0x20] sm:$0xf]
        %v1598 = vld [vmem:[%s1591 + $0x24] sm:$0xff]
        %v1599 = vld [vmem:[%s1591 + $0x2c] sm:$0xf]
        %v1600 = vld [vmem:[%s1591 + $0x30] sm:$0xff]
        %v1601 = vld [vmem:[%s1591 + $0x38] sm:$0xf]
        %v1602 = vld [vmem:[%s1591 + $0x3c] sm:$0xff]
        %v1603 = vld [vmem:[%s1591 + $0x44] sm:$0xf]
        %v1604 = vld [vmem:[%s1591 + $0x48] sm:$0xff]
        %v1605 = vld [vmem:[%s1591 + $0x50] sm:$0xf]
        %v1606 = vld [vmem:[%s1591 + $0x54] sm:$0xff]
        %v1607 = vld [vmem:[%s1591 + $0x5c] sm:$0xf]
        %v1608 = vld [vmem:[%s1591 + $0x60] sm:$0xff]
        %v1609 = vld [vmem:[%s1591 + $0x68] sm:$0xf]
        %v1610 = vld [vmem:[%s1591 + $0x6c] sm:$0xff]
        %v1611 = vld [vmem:[%s1591 + $0x74] sm:$0xf]
        %v1612 = vld [vmem:[%s1591 + $0x78] sm:$0xff]
        %v1613 = vld [vmem:[%s1591 + $0x80] sm:$0xf]
        %v1614 = vld [vmem:[%s1591 + $0x84] sm:$0xff]
        %v1615 = vld [vmem:[%s1591 + $0x8c] sm:$0xf]
        %v1616 = vld [vmem:[%s1591 + $0x90] sm:$0xff]
        %v1617 = vld [vmem:[%s1591 + $0x98] sm:$0xf]
        %v1618 = vld [vmem:[%s1591 + $0x9c] sm:$0xff]
        %v1619 = vld [vmem:[%s1591 + $0xa4] sm:$0xf]
        %v1620 = vld [vmem:[%s1591 + $0xa8] sm:$0xff]
        %v1621 = vld [vmem:[%s1591 + $0xb0] sm:$0xf]
        %v1622 = vld [vmem:[%s1591 + $0xb4] sm:$0xff]
        %v1623 = vld [vmem:[%s1591 + $0xbc] sm:$0xf]
        %s1624 = scalar_lea.vmem %s5, 3
        %v1625 = vld [vmem:[%s1624] sm:$0x7]
        %v1627 = vlaneseq
        %v1628 = vshrl.u32 %v1627, 7
        %v1629 = vsub.s32 0, %v1628
        %v1630 = vrot.slane %v1625, %v1629
        %v1631 = vlaneseq
        %v1632 = vshrl.u32 %v1631, 7
        %v1633 = vsub.s32 1, %v1632
        %v1634 = vrot.slane %v1625, %v1633
        %v1635 = vlaneseq
        %v1636 = vshrl.u32 %v1635, 7
        %v1637 = vsub.s32 2, %v1636
        %v1638 = vrot.slane %v1625, %v1637
        %v1674 = vunpack.c.l.b16 %v1592
        %v1675 = vunpack.c.h.b16 %v1592
        %v1676 = vunpack.c.l.b16 %v1593
        %v1677 = vunpack.c.l.b16 %v1594
        %v1678 = vunpack.c.h.b16 %v1594
        %v1679 = vunpack.c.l.b16 %v1595
        %v1680 = vunpack.c.l.b16 %v1596
        %v1681 = vunpack.c.h.b16 %v1596
        %v1682 = vunpack.c.l.b16 %v1597
        %v1683 = vunpack.c.l.b16 %v1598
        %v1684 = vunpack.c.h.b16 %v1598
        %v1685 = vunpack.c.l.b16 %v1599
        %v1686 = vunpack.c.l.b16 %v1600
        %v1687 = vunpack.c.h.b16 %v1600
        %v1688 = vunpack.c.l.b16 %v1601
        %v1689 = vunpack.c.l.b16 %v1602
        %v1690 = vunpack.c.h.b16 %v1602
        %v1691 = vunpack.c.l.b16 %v1603
        %v1692 = vunpack.c.l.b16 %v1604
        %v1693 = vunpack.c.h.b16 %v1604
        %v1694 = vunpack.c.l.b16 %v1605
        %v1695 = vunpack.c.l.b16 %v1606
        %v1696 = vunpack.c.h.b16 %v1606
        %v1697 = vunpack.c.l.b16 %v1607
        %v1698 = vunpack.c.l.b16 %v1608
        %v1699 = vunpack.c.h.b16 %v1608
        %v1700 = vunpack.c.l.b16 %v1609
        %v1701 = vunpack.c.l.b16 %v1610
        %v1702 = vunpack.c.h.b16 %v1610
        %v1703 = vunpack.c.l.b16 %v1611
        %v1704 = vunpack.c.l.b16 %v1612
        %v1705 = vunpack.c.h.b16 %v1612
        %v1706 = vunpack.c.l.b16 %v1613
        %v1707 = vunpack.c.l.b16 %v1614
        %v1708 = vunpack.c.h.b16 %v1614
        %v1709 = vunpack.c.l.b16 %v1615
        %v1710 = vunpack.c.l.b16 %v1616
        %v1711 = vunpack.c.h.b16 %v1616
        %v1712 = vunpack.c.l.b16 %v1617
        %v1713 = vunpack.c.l.b16 %v1618
        %v1714 = vunpack.c.h.b16 %v1618
        %v1715 = vunpack.c.l.b16 %v1619
        %v1716 = vunpack.c.l.b16 %v1620
        %v1717 = vunpack.c.h.b16 %v1620
        %v1718 = vunpack.c.l.b16 %v1621
        %v1719 = vunpack.c.l.b16 %v1622
        %v1720 = vunpack.c.h.b16 %v1622
        %v1721 = vunpack.c.l.b16 %v1623
        %v1722 = vpack.c.b16 %v1677, %v1674
        %v1723 = vpack.c.b16 %v1678, %v1675
        %v1724 = vpack.c.b16 %v1679, %v1676
        %v1725 = vpack.c.b16 %v1683, %v1680
        %v1726 = vpack.c.b16 %v1684, %v1681
        %v1727 = vpack.c.b16 %v1685, %v1682
        %v1728 = vpack.c.b16 %v1689, %v1686
        %v1729 = vpack.c.b16 %v1690, %v1687
        %v1730 = vpack.c.b16 %v1691, %v1688
        %v1731 = vpack.c.b16 %v1695, %v1692
        %v1732 = vpack.c.b16 %v1696, %v1693
        %v1733 = vpack.c.b16 %v1697, %v1694
        %v1734 = vpack.c.b16 %v1701, %v1698
        %v1735 = vpack.c.b16 %v1702, %v1699
        %v1736 = vpack.c.b16 %v1703, %v1700
        %v1737 = vpack.c.b16 %v1707, %v1704
        %v1738 = vpack.c.b16 %v1708, %v1705
        %v1739 = vpack.c.b16 %v1709, %v1706
        %v1740 = vpack.c.b16 %v1713, %v1710
        %v1741 = vpack.c.b16 %v1714, %v1711
        %v1742 = vpack.c.b16 %v1715, %v1712
        %v1743 = vpack.c.b16 %v1719, %v1716
        %v1744 = vpack.c.b16 %v1720, %v1717
        %v1745 = vpack.c.b16 %v1721, %v1718
        %1770 = vmatprep.subr.bf16.mxu0 %v1723
        %1771 = vmatpush1.bf16.msra.mxu0 %v1722
        %1772 = vmatprep.subr.bf16.mxu0 %v1726
        %1773 = vmatpush1.bf16.msra.mxu0 %v1725
        %1774 = vmatprep.subr.bf16.mxu0 %v1729
        %1775 = vmatpush1.bf16.msra.mxu0 %v1728
        %1776 = vmatprep.subr.bf16.mxu0 %v1732
        %1777 = vmatpush1.bf16.msra.mxu0 %v1731
        %1778 = vmatprep.subr.bf16.mxu0 %v1735
        %1779 = vmatpush1.bf16.msra.mxu0 %v1734
        %1780 = vmatprep.subr.bf16.mxu0 %v1738
        %1781 = vmatpush1.bf16.msra.mxu0 %v1737
        %1782 = vmatprep.subr.bf16.mxu0 %v1741
        %1783 = vmatpush1.bf16.msra.mxu0 %v1740
        %1784 = vmatprep.subr.bf16.mxu0 %v1744
        %1785 = vmatpush1.bf16.msra.mxu0 %v1743
        %1786 = vmatprep.subr.bf16.mxu0 0
        %1787 = vmatpush1.bf16.msra.mxu0 0
        %1788 = vmatprep.subr.bf16.mxu0 0
        %1789 = vmatpush1.bf16.msra.mxu0 0
        %1790 = vmatprep.subr.bf16.mxu0 0
        %1791 = vmatpush1.bf16.msra.mxu0 0
        %1792 = vmatprep.subr.bf16.mxu0 0
        %1793 = vmatpush1.bf16.msra.mxu0 0
        %1794 = vmatprep.subr.bf16.mxu0 0
        %1795 = vmatpush1.bf16.msra.mxu0 0
        %1796 = vmatprep.subr.bf16.mxu0 0
        %1797 = vmatpush1.bf16.msra.mxu0 0
        %1798 = vmatprep.subr.bf16.mxu0 0
        %1799 = vmatpush1.bf16.msra.mxu0 0
        %1800 = vmatprep.subr.bf16.mxu0 0
        %1801 = vmatpush1.bf16.msra.mxu0 0
        %1802 = vmatprep.mubr.bf16.mxu0 0
        %1803 = vmatmul.mubr.bf16.gmra.mrb[0].mxu0 %v1590
        %v1804 = vpop.f32.mrb[0].mxu0
        %v1805 = vadd.f32 %v1630, %v1804
        %v1806 = vpop.f32.mrb[0].mxu0
        %v1807 = vadd.f32 %v1634, %v1806
        %v1808 = vpop.f32.mrb[0].mxu0
        %v1809 = vadd.f32 %v1630, %v1808
        %v1810 = vpop.f32.mrb[0].mxu0
        %v1811 = vadd.f32 %v1634, %v1810
        %1812 = vdwg.mxu0
        %1813 = vmatprep.subr.bf16.mxu0 0
        %1814 = vmatpush1.bf16.msra.mxu0 %v1724
        %1815 = vmatprep.subr.bf16.mxu0 0
        %1816 = vmatpush1.bf16.msra.mxu0 %v1727
        %1817 = vmatprep.subr.bf16.mxu0 0
        %1818 = vmatpush1.bf16.msra.mxu0 %v1730
        %1819 = vmatprep.subr.bf16.mxu0 0
        %1820 = vmatpush1.bf16.msra.mxu0 %v1733
        %1821 = vmatprep.subr.bf16.mxu0 0
        %1822 = vmatpush1.bf16.msra.mxu0 %v1736
        %1823 = vmatprep.subr.bf16.mxu0 0
        %1824 = vmatpush1.bf16.msra.mxu0 %v1739
        %1825 = vmatprep.subr.bf16.mxu0 0
        %1826 = vmatpush1.bf16.msra.mxu0 %v1742
        %1827 = vmatprep.subr.bf16.mxu0 0
        %1828 = vmatpush1.bf16.msra.mxu0 %v1745
        %1829 = vmatprep.subr.bf16.mxu0 0
        %1830 = vmatpush1.bf16.msra.mxu0 0
        %1831 = vmatprep.subr.bf16.mxu0 0
        %1832 = vmatpush1.bf16.msra.mxu0 0
        %1833 = vmatprep.subr.bf16.mxu0 0
        %1834 = vmatpush1.bf16.msra.mxu0 0
        %1835 = vmatprep.subr.bf16.mxu0 0
        %1836 = vmatpush1.bf16.msra.mxu0 0
        %1837 = vmatprep.subr.bf16.mxu0 0
        %1838 = vmatpush1.bf16.msra.mxu0 0
        %1839 = vmatprep.subr.bf16.mxu0 0
        %1840 = vmatpush1.bf16.msra.mxu0 0
        %1841 = vmatprep.subr.bf16.mxu0 0
        %1842 = vmatpush1.bf16.msra.mxu0 0
        %1843 = vmatprep.subr.bf16.mxu0 0
        %1844 = vmatpush1.bf16.msra.mxu0 0
        %1845 = vmatprep.mubr.bf16.mxu0 0
        %1846 = vmatmul.mubr.bf16.gmra.mrb[0].mxu0 %v1590
        %v1847 = vpop.f32.mrb[0].mxu0
        %v1848 = vadd.f32 %v1638, %v1847
        %v1849 = vpop.f32.mrb[0].mxu0
        %v1850 = vpop.f32.mrb[0].mxu0
        %v1851 = vadd.f32 %v1638, %v1850
        %v1852 = vpop.f32.mrb[0].mxu0
        %1853 = vdwg.mxu0
        %v1854 = vmul.f32 %v1805, %v1807
        %v1855 = vmul.f32 %v1809, %v1807
        %v1856 = vmul.f32 %v1805, %v1811
        %v1857 = vmul.f32 %v1809, %v1811
        %v1858 = vpack.c.bf16 %v1855, %v1854
        %v1859 = vpack.c.bf16 %v1857, %v1856
        %1860 = vmatprep.subr.bf16.mxu0 0
        %1861 = vmatpush1.bf16.msra.mxu0 %v913
        %1862 = vmatprep.subr.bf16.mxu0 0
        %1863 = vmatpush1.bf16.msra.mxu0 %v914
        %1864 = vmatprep.subr.bf16.mxu0 0
        %1865 = vmatpush1.bf16.msra.mxu0 %v915
        %1866 = vmatprep.subr.bf16.mxu0 0
        %1867 = vmatpush1.bf16.msra.mxu0 %v916
        %1868 = vmatprep.subr.bf16.mxu0 0
        %1869 = vmatpush1.bf16.msra.mxu0 %v917
        %1870 = vmatprep.subr.bf16.mxu0 0
        %1871 = vmatpush1.bf16.msra.mxu0 %v918
        %1872 = vmatprep.subr.bf16.mxu0 0
        %1873 = vmatpush1.bf16.msra.mxu0 %v919
        %1874 = vmatprep.subr.bf16.mxu0 0
        %1875 = vmatpush1.bf16.msra.mxu0 %v920
        %1876 = vmatprep.subr.bf16.mxu0 0
        %1877 = vmatpush1.bf16.msra.mxu0 0
        %1878 = vmatprep.subr.bf16.mxu0 0
        %1879 = vmatpush1.bf16.msra.mxu0 0
        %1880 = vmatprep.subr.bf16.mxu0 0
        %1881 = vmatpush1.bf16.msra.mxu0 0
        %1882 = vmatprep.subr.bf16.mxu0 0
        %1883 = vmatpush1.bf16.msra.mxu0 0
        %1884 = vmatprep.subr.bf16.mxu0 0
        %1885 = vmatpush1.bf16.msra.mxu0 0
        %1886 = vmatprep.subr.bf16.mxu0 0
        %1887 = vmatpush1.bf16.msra.mxu0 0
        %1888 = vmatprep.subr.bf16.mxu0 0
        %1889 = vmatpush1.bf16.msra.mxu0 0
        %1890 = vmatprep.subr.bf16.mxu0 0
        %1891 = vmatpush1.bf16.msra.mxu0 0
        %1892 = vmatprep.mubr.bf16.mxu0 0
        %1893 = vmatmul.mubr.bf16.gmra.mrb[0].mxu0 %v1858
        %v1894 = vpop.f32.mrb[0].mxu0
        %v1895 = vadd.f32 0.0, %v1894
        %v1896 = vpop.f32.mrb[0].mxu0
        %v1897 = vpop.f32.mrb[0].mxu0
        %v1898 = vadd.f32 0.0, %v1897
        %v1899 = vpop.f32.mrb[0].mxu0
        %1900 = vmatprep.mubr.bf16.mxu0 0
        %1901 = vmatmul.mubr.bf16.gmra.mrb[0].mxu0 %v1859
        %v1902 = vpop.f32.mrb[0].mxu0
        %v1903 = vadd.f32 0.0, %v1902
        %v1904 = vpop.f32.mrb[0].mxu0
        %v1905 = vpop.f32.mrb[0].mxu0
        %v1906 = vadd.f32 0.0, %v1905
        %v1907 = vpop.f32.mrb[0].mxu0
        %1908 = vdwg.mxu0
        %v1909 = vsub.f32 %v1903, %v1895
        %v1910 = vsub.f32 %v1906, %v1898
        %v1911 = vmul.f32 %v1909, 1.442695
        %v1912 = vpow.pop %v1911
        %v1913 = vmul.f32 %v1910, 1.442695
        %v1914 = vpow.pop %v1913
        %v1915 = vadd.f32 %v1912, 1.0
        %v1916 = vadd.f32 %v1914, 1.0
        %v1917 = vrcp.pop %v1915
        %v1918 = vrcp.pop %v1916
        %v1919 = vsub.f32 1.0, %v1917
        %v1920 = vsub.f32 1.0, %v1918
        %v1921 = vpack.c.bf16 %v1918, %v1917
        %v1922 = vpack.c.bf16 %v1920, %v1919
        %v1924 = vsel %vm992, %v1921, 0
        %v1927 = vsel %vm992, %v1922, 0
        %1929 = vmatprep.subr.bf16.mxu0 0
        %1930 = vmatpush1.bf16.msra.mxu0 %v1001
        %1931 = vmatprep.subr.bf16.mxu0 0
        %1932 = vmatpush1.bf16.msra.mxu0 0
        %1933 = vmatprep.subr.bf16.mxu0 0
        %1934 = vmatpush1.bf16.msra.mxu0 0
        %1935 = vmatprep.subr.bf16.mxu0 0
        %1936 = vmatpush1.bf16.msra.mxu0 0
        %1937 = vmatprep.subr.bf16.mxu0 0
        %1938 = vmatpush1.bf16.msra.mxu0 0
        %1939 = vmatprep.subr.bf16.mxu0 0
        %1940 = vmatpush1.bf16.msra.mxu0 0
        %1941 = vmatprep.subr.bf16.mxu0 0
        %1942 = vmatpush1.bf16.msra.mxu0 0
        %1943 = vmatprep.subr.bf16.mxu0 0
        %1944 = vmatpush1.bf16.msra.mxu0 0
        %1945 = vmatprep.subr.bf16.mxu0 0
        %1946 = vmatpush1.bf16.msra.mxu0 0
        %1947 = vmatprep.subr.bf16.mxu0 0
        %1948 = vmatpush1.bf16.msra.mxu0 0
        %1949 = vmatprep.subr.bf16.mxu0 0
        %1950 = vmatpush1.bf16.msra.mxu0 0
        %1951 = vmatprep.subr.bf16.mxu0 0
        %1952 = vmatpush1.bf16.msra.mxu0 0
        %1953 = vmatprep.subr.bf16.mxu0 0
        %1954 = vmatpush1.bf16.msra.mxu0 0
        %1955 = vmatprep.subr.bf16.mxu0 0
        %1956 = vmatpush1.bf16.msra.mxu0 0
        %1957 = vmatprep.subr.bf16.mxu0 0
        %1958 = vmatpush1.bf16.msra.mxu0 0
        %1959 = vmatprep.subr.bf16.mxu0 0
        %1960 = vmatpush1.bf16.msra.mxu0 0
        %1961 = vmatprep.mubr.bf16.mxu0 0
        %1962 = vmatmul.mubr.bf16.gmra.mrb[0].mxu0 %v1924
        %v1963 = vpop.f32.mrb[0].mxu0
        %v1964 = vadd.f32 0.0, %v1963
        %v1965 = vpop.f32.mrb[0].mxu0
        %v1966 = vpop.f32.mrb[0].mxu0
        %v1967 = vadd.f32 0.0, %v1966
        %v1968 = vpop.f32.mrb[0].mxu0
        %1969 = vmatprep.mubr.bf16.mxu0 0
        %1970 = vmatmul.mubr.bf16.gmra.mrb[0].mxu0 %v1927
        %v1971 = vpop.f32.mrb[0].mxu0
        %v1972 = vadd.f32 0.0, %v1971
        %v1973 = vpop.f32.mrb[0].mxu0
        %v1974 = vpop.f32.mrb[0].mxu0
        %v1975 = vadd.f32 0.0, %v1974
        %v1976 = vpop.f32.mrb[0].mxu0
        %1977 = vdwg.mxu0
        %v1978 = vmul.f32 %v1964, %v1848
        %v1979 = vmul.f32 %v1972, %v1851
        %v1980 = vadd.f32 %v1978, %v1979
        %v1981 = vmul.f32 %v1967, %v1848
        %v1982 = vmul.f32 %v1975, %v1851
        %v1983 = vadd.f32 %v1981, %v1982
        %v1984 = vpack.c.bf16 %v1983, %v1980
        %s1985 = scalar_lea.vmem [#allocation5], 64
        %v1986 = vld [vmem:[%s1985] sm:$0xf]
        %v1987 = vld [vmem:[%s1985 + $0x4] sm:$0xf]
        %v1988 = vld [vmem:[%s1985 + $0x8] sm:$0xf]
        %v1989 = vld [vmem:[%s1985 + $0xc] sm:$0xf]
        %v1990 = vld [vmem:[%s1985 + $0x10] sm:$0xf]
        %v1991 = vld [vmem:[%s1985 + $0x14] sm:$0xf]
        %v1992 = vld [vmem:[%s1985 + $0x18] sm:$0xf]
        %v1993 = vld [vmem:[%s1985 + $0x1c] sm:$0xf]
        %v1994 = vld [vmem:[%s1985 + $0x20] sm:$0xf]
        %v1995 = vld [vmem:[%s1985 + $0x24] sm:$0xf]
        %v1996 = vld [vmem:[%s1985 + $0x28] sm:$0xf]
        %v1997 = vld [vmem:[%s1985 + $0x2c] sm:$0xf]
        %v1998 = vld [vmem:[%s1985 + $0x30] sm:$0xf]
        %v1999 = vld [vmem:[%s1985 + $0x34] sm:$0xf]
        %v2000 = vld [vmem:[%s1985 + $0x38] sm:$0xf]
        %v2001 = vld [vmem:[%s1985 + $0x3c] sm:$0xf]
        %s2002 = scalar_lea.vmem %s7, 1
        %v2003 = vld [vmem:[%s2002] sm:$0x1]
        %v2005 = vlaneseq
        %v2006 = vshrl.u32 %v2005, 7
        %v2007 = vsub.s32 0, %v2006
        %v2008 = vrot.slane %v2003, %v2007
        %v2026 = vunpack.c.l.b16 %v1986
        %v2027 = vunpack.c.l.b16 %v1987
        %v2028 = vunpack.c.l.b16 %v1988
        %v2029 = vunpack.c.l.b16 %v1989
        %v2030 = vunpack.c.l.b16 %v1990
        %v2031 = vunpack.c.l.b16 %v1991
        %v2032 = vunpack.c.l.b16 %v1992
        %v2033 = vunpack.c.l.b16 %v1993
        %v2034 = vunpack.c.l.b16 %v1994
        %v2035 = vunpack.c.l.b16 %v1995
        %v2036 = vunpack.c.l.b16 %v1996
        %v2037 = vunpack.c.l.b16 %v1997
        %v2038 = vunpack.c.l.b16 %v1998
        %v2039 = vunpack.c.l.b16 %v1999
        %v2040 = vunpack.c.l.b16 %v2000
        %v2041 = vunpack.c.l.b16 %v2001
        %v2042 = vpack.c.b16 %v2027, %v2026
        %v2043 = vpack.c.b16 %v2029, %v2028
        %v2044 = vpack.c.b16 %v2031, %v2030
        %v2045 = vpack.c.b16 %v2033, %v2032
        %v2046 = vpack.c.b16 %v2035, %v2034
        %v2047 = vpack.c.b16 %v2037, %v2036
        %v2048 = vpack.c.b16 %v2039, %v2038
        %v2049 = vpack.c.b16 %v2041, %v2040
        %2058 = vmatprep.subr.bf16.mxu0 0
        %2059 = vmatpush1.bf16.msra.mxu0 %v2042
        %2060 = vmatprep.subr.bf16.mxu0 0
        %2061 = vmatpush1.bf16.msra.mxu0 %v2043
        %2062 = vmatprep.subr.bf16.mxu0 0
        %2063 = vmatpush1.bf16.msra.mxu0 %v2044
        %2064 = vmatprep.subr.bf16.mxu0 0
        %2065 = vmatpush1.bf16.msra.mxu0 %v2045
        %2066 = vmatprep.subr.bf16.mxu0 0
        %2067 = vmatpush1.bf16.msra.mxu0 %v2046
        %2068 = vmatprep.subr.bf16.mxu0 0
        %2069 = vmatpush1.bf16.msra.mxu0 %v2047
        %2070 = vmatprep.subr.bf16.mxu0 0
        %2071 = vmatpush1.bf16.msra.mxu0 %v2048
        %2072 = vmatprep.subr.bf16.mxu0 0
        %2073 = vmatpush1.bf16.msra.mxu0 %v2049
        %2074 = vmatprep.subr.bf16.mxu0 0
        %2075 = vmatpush1.bf16.msra.mxu0 0
        %2076 = vmatprep.subr.bf16.mxu0 0
        %2077 = vmatpush1.bf16.msra.mxu0 0
        %2078 = vmatprep.subr.bf16.mxu0 0
        %2079 = vmatpush1.bf16.msra.mxu0 0
        %2080 = vmatprep.subr.bf16.mxu0 0
        %2081 = vmatpush1.bf16.msra.mxu0 0
        %2082 = vmatprep.subr.bf16.mxu0 0
        %2083 = vmatpush1.bf16.msra.mxu0 0
        %2084 = vmatprep.subr.bf16.mxu0 0
        %2085 = vmatpush1.bf16.msra.mxu0 0
        %2086 = vmatprep.subr.bf16.mxu0 0
        %2087 = vmatpush1.bf16.msra.mxu0 0
        %2088 = vmatprep.subr.bf16.mxu0 0
        %2089 = vmatpush1.bf16.msra.mxu0 0
        %2090 = vmatprep.mubr.bf16.mxu0 0
        %2091 = vmatmul.mubr.bf16.gmra.mrb[0].mxu0 %v1984
        %v2092 = vpop.f32.mrb[0].mxu0
        %v2093 = vadd.f32 %v2008, %v2092
        %v2094 = vpop.f32.mrb[0].mxu0
        %v2095 = vpop.f32.mrb[0].mxu0
        %v2096 = vadd.f32 %v2008, %v2095
        %v2097 = vpop.f32.mrb[0].mxu0
        %2098 = vdwg.mxu0
        %v2099 = vadd.f32 %v1588, %v2093
        %v2100 = vadd.f32 %v1589, %v2096
        %s2101 = scalar_lea.vmem %s12, 1
        %v2102 = vld [vmem:[%s2101] sm:$0x1]
        %s2103 = scalar_lea.vmem %s13, 1
        %v2104 = vld [vmem:[%s2103] sm:$0x1]
        %2105 = vadd.xlane.f32.xlu0 %v2099
        %v2106 = vpop.xlane.xlu0 %2105
        %2107 = vadd.xlane.f32.xlu0 %v2100
        %v2108 = vpop.xlane.xlu0 %2107
        %v2109 = vmul.f32 %v2106, %v1179
        %v2110 = vmul.f32 %v2108, %v1179
        %v2111 = vsub.f32 %v2099, %v2109
        %v2112 = vsub.f32 %v2100, %v2110
        %v2113 = vmul.f32 %v2111, %v2111
        %v2114 = vmul.f32 %v2112, %v2112
        %2115 = vadd.xlane.f32.xlu0 %v2113
        %v2116 = vpop.xlane.xlu0 %2115
        %2117 = vadd.xlane.f32.xlu0 %v2114
        %v2118 = vpop.xlane.xlu0 %2117
        %v2119 = vmul.f32 %v2116, %v1179
        %v2120 = vmul.f32 %v2118, %v1179
        %v2121 = vadd.f32 %v2119, 1e-05
        %v2122 = vadd.f32 %v2120, 1e-05
        %v2123 = vrsqrt.pop %v2121
        %v2124 = vrsqrt.pop %v2122
        %v2125 = vmul.f32 %v2111, %v2123
        %v2126 = vmul.f32 %v2112, %v2124
        %v2128 = vlaneseq
        %v2129 = vshrl.u32 %v2128, 7
        %v2130 = vsub.s32 0, %v2129
        %v2131 = vrot.slane %v2102, %v2130
        %v2133 = vmul.f32 %v2125, %v2131
        %v2134 = vmul.f32 %v2126, %v2131
        %v2136 = vlaneseq
        %v2137 = vshrl.u32 %v2136, 7
        %v2138 = vsub.s32 0, %v2137
        %v2139 = vrot.slane %v2104, %v2138
        %v2141 = vadd.f32 %v2133, %v2139
        %v2142 = vadd.f32 %v2134, %v2139
        %v2143 = vpack.c.bf16 %v2142, %v2141
        %s2144 = scalar_lea.vmem [#allocation7], 128
        %v2145 = vld [vmem:[%s2144] sm:$0xff]
        %v2146 = vld [vmem:[%s2144 + $0x8] sm:$0xff]
        %v2147 = vld [vmem:[%s2144 + $0x10] sm:$0xff]
        %v2148 = vld [vmem:[%s2144 + $0x18] sm:$0xff]
        %v2149 = vld [vmem:[%s2144 + $0x20] sm:$0xff]
        %v2150 = vld [vmem:[%s2144 + $0x28] sm:$0xff]
        %v2151 = vld [vmem:[%s2144 + $0x30] sm:$0xff]
        %v2152 = vld [vmem:[%s2144 + $0x38] sm:$0xff]
        %v2153 = vld [vmem:[%s2144 + $0x40] sm:$0xff]
        %v2154 = vld [vmem:[%s2144 + $0x48] sm:$0xff]
        %v2155 = vld [vmem:[%s2144 + $0x50] sm:$0xff]
        %v2156 = vld [vmem:[%s2144 + $0x58] sm:$0xff]
        %v2157 = vld [vmem:[%s2144 + $0x60] sm:$0xff]
        %v2158 = vld [vmem:[%s2144 + $0x68] sm:$0xff]
        %v2159 = vld [vmem:[%s2144 + $0x70] sm:$0xff]
        %v2160 = vld [vmem:[%s2144 + $0x78] sm:$0xff]
        %s2161 = scalar_lea.vmem %s9, 2
        %v2162 = vld [vmem:[%s2161] sm:$0x3]
        %v2164 = vlaneseq
        %v2165 = vshrl.u32 %v2164, 7
        %v2166 = vsub.s32 0, %v2165
        %v2167 = vrot.slane %v2162, %v2166
        %v2168 = vlaneseq
        %v2169 = vshrl.u32 %v2168, 7
        %v2170 = vsub.s32 1, %v2169
        %v2171 = vrot.slane %v2162, %v2170
        %v2190 = vunpack.c.l.b16 %v2145
        %v2191 = vunpack.c.h.b16 %v2145
        %v2192 = vunpack.c.l.b16 %v2146
        %v2193 = vunpack.c.h.b16 %v2146
        %v2194 = vunpack.c.l.b16 %v2147
        %v2195 = vunpack.c.h.b16 %v2147
        %v2196 = vunpack.c.l.b16 %v2148
        %v2197 = vunpack.c.h.b16 %v2148
        %v2198 = vunpack.c.l.b16 %v2149
        %v2199 = vunpack.c.h.b16 %v2149
        %v2200 = vunpack.c.l.b16 %v2150
        %v2201 = vunpack.c.h.b16 %v2150
        %v2202 = vunpack.c.l.b16 %v2151
        %v2203 = vunpack.c.h.b16 %v2151
        %v2204 = vunpack.c.l.b16 %v2152
        %v2205 = vunpack.c.h.b16 %v2152
        %v2206 = vunpack.c.l.b16 %v2153
        %v2207 = vunpack.c.h.b16 %v2153
        %v2208 = vunpack.c.l.b16 %v2154
        %v2209 = vunpack.c.h.b16 %v2154
        %v2210 = vunpack.c.l.b16 %v2155
        %v2211 = vunpack.c.h.b16 %v2155
        %v2212 = vunpack.c.l.b16 %v2156
        %v2213 = vunpack.c.h.b16 %v2156
        %v2214 = vunpack.c.l.b16 %v2157
        %v2215 = vunpack.c.h.b16 %v2157
        %v2216 = vunpack.c.l.b16 %v2158
        %v2217 = vunpack.c.h.b16 %v2158
        %v2218 = vunpack.c.l.b16 %v2159
        %v2219 = vunpack.c.h.b16 %v2159
        %v2220 = vunpack.c.l.b16 %v2160
        %v2221 = vunpack.c.h.b16 %v2160
        %v2222 = vpack.c.b16 %v2192, %v2190
        %v2223 = vpack.c.b16 %v2193, %v2191
        %v2224 = vpack.c.b16 %v2196, %v2194
        %v2225 = vpack.c.b16 %v2197, %v2195
        %v2226 = vpack.c.b16 %v2200, %v2198
        %v2227 = vpack.c.b16 %v2201, %v2199
        %v2228 = vpack.c.b16 %v2204, %v2202
        %v2229 = vpack.c.b16 %v2205, %v2203
        %v2230 = vpack.c.b16 %v2208, %v2206
        %v2231 = vpack.c.b16 %v2209, %v2207
        %v2232 = vpack.c.b16 %v2212, %v2210
        %v2233 = vpack.c.b16 %v2213, %v2211
        %v2234 = vpack.c.b16 %v2216, %v2214
        %v2235 = vpack.c.b16 %v2217, %v2215
        %v2236 = vpack.c.b16 %v2220, %v2218
        %v2237 = vpack.c.b16 %v2221, %v2219
        %2254 = vmatprep.subr.bf16.mxu0 %v2223
        %2255 = vmatpush1.bf16.msra.mxu0 %v2222
        %2256 = vmatprep.subr.bf16.mxu0 %v2225
        %2257 = vmatpush1.bf16.msra.mxu0 %v2224
        %2258 = vmatprep.subr.bf16.mxu0 %v2227
        %2259 = vmatpush1.bf16.msra.mxu0 %v2226
        %2260 = vmatprep.subr.bf16.mxu0 %v2229
        %2261 = vmatpush1.bf16.msra.mxu0 %v2228
        %2262 = vmatprep.subr.bf16.mxu0 %v2231
        %2263 = vmatpush1.bf16.msra.mxu0 %v2230
        %2264 = vmatprep.subr.bf16.mxu0 %v2233
        %2265 = vmatpush1.bf16.msra.mxu0 %v2232
        %2266 = vmatprep.subr.bf16.mxu0 %v2235
        %2267 = vmatpush1.bf16.msra.mxu0 %v2234
        %2268 = vmatprep.subr.bf16.mxu0 %v2237
        %2269 = vmatpush1.bf16.msra.mxu0 %v2236
        %2270 = vmatprep.subr.bf16.mxu0 0
        %2271 = vmatpush1.bf16.msra.mxu0 0
        %2272 = vmatprep.subr.bf16.mxu0 0
        %2273 = vmatpush1.bf16.msra.mxu0 0
        %2274 = vmatprep.subr.bf16.mxu0 0
        %2275 = vmatpush1.bf16.msra.mxu0 0
        %2276 = vmatprep.subr.bf16.mxu0 0
        %2277 = vmatpush1.bf16.msra.mxu0 0
        %2278 = vmatprep.subr.bf16.mxu0 0
        %2279 = vmatpush1.bf16.msra.mxu0 0
        %2280 = vmatprep.subr.bf16.mxu0 0
        %2281 = vmatpush1.bf16.msra.mxu0 0
        %2282 = vmatprep.subr.bf16.mxu0 0
        %2283 = vmatpush1.bf16.msra.mxu0 0
        %2284 = vmatprep.subr.bf16.mxu0 0
        %2285 = vmatpush1.bf16.msra.mxu0 0
        %2286 = vmatprep.mubr.bf16.mxu0 0
        %2287 = vmatmul.mubr.bf16.gmra.mrb[0].mxu0 %v2143
        %v2288 = vpop.f32.mrb[0].mxu0
        %v2289 = vadd.f32 %v2167, %v2288
        %v2290 = vpop.f32.mrb[0].mxu0
        %v2291 = vadd.f32 %v2171, %v2290
        %v2292 = vpop.f32.mrb[0].mxu0
        %v2293 = vadd.f32 %v2167, %v2292
        %v2294 = vpop.f32.mrb[0].mxu0
        %v2295 = vadd.f32 %v2171, %v2294
        %2296 = vdwg.mxu0
        %v2297 = vmax.f32 %v2289, 0.0
        %v2298 = vmax.f32 %v2291, 0.0
        %v2299 = vmax.f32 %v2293, 0.0
        %v2300 = vmax.f32 %v2295, 0.0
        %v2301 = vpack.c.bf16 %v2299, %v2297
        %v2302 = vpack.c.bf16 %v2300, %v2298
        %s2303 = scalar_lea.vmem [#allocation8], 128
        %v2304 = vld [vmem:[%s2303] sm:$0xf]
        %v2305 = vld [vmem:[%s2303 + $0x4] sm:$0xf]
        %v2306 = vld [vmem:[%s2303 + $0x8] sm:$0xf]
        %v2307 = vld [vmem:[%s2303 + $0xc] sm:$0xf]
        %v2308 = vld [vmem:[%s2303 + $0x10] sm:$0xf]
        %v2309 = vld [vmem:[%s2303 + $0x14] sm:$0xf]
        %v2310 = vld [vmem:[%s2303 + $0x18] sm:$0xf]
        %v2311 = vld [vmem:[%s2303 + $0x1c] sm:$0xf]
        %v2312 = vld [vmem:[%s2303 + $0x20] sm:$0xf]
        %v2313 = vld [vmem:[%s2303 + $0x24] sm:$0xf]
        %v2314 = vld [vmem:[%s2303 + $0x28] sm:$0xf]
        %v2315 = vld [vmem:[%s2303 + $0x2c] sm:$0xf]
        %v2316 = vld [vmem:[%s2303 + $0x30] sm:$0xf]
        %v2317 = vld [vmem:[%s2303 + $0x34] sm:$0xf]
        %v2318 = vld [vmem:[%s2303 + $0x38] sm:$0xf]
        %v2319 = vld [vmem:[%s2303 + $0x3c] sm:$0xf]
        %v2320 = vld [vmem:[%s2303 + $0x40] sm:$0xf]
        %v2321 = vld [vmem:[%s2303 + $0x44] sm:$0xf]
        %v2322 = vld [vmem:[%s2303 + $0x48] sm:$0xf]
        %v2323 = vld [vmem:[%s2303 + $0x4c] sm:$0xf]
        %v2324 = vld [vmem:[%s2303 + $0x50] sm:$0xf]
        %v2325 = vld [vmem:[%s2303 + $0x54] sm:$0xf]
        %v2326 = vld [vmem:[%s2303 + $0x58] sm:$0xf]
        %v2327 = vld [vmem:[%s2303 + $0x5c] sm:$0xf]
        %v2328 = vld [vmem:[%s2303 + $0x60] sm:$0xf]
        %v2329 = vld [vmem:[%s2303 + $0x64] sm:$0xf]
        %v2330 = vld [vmem:[%s2303 + $0x68] sm:$0xf]
        %v2331 = vld [vmem:[%s2303 + $0x6c] sm:$0xf]
        %v2332 = vld [vmem:[%s2303 + $0x70] sm:$0xf]
        %v2333 = vld [vmem:[%s2303 + $0x74] sm:$0xf]
        %v2334 = vld [vmem:[%s2303 + $0x78] sm:$0xf]
        %v2335 = vld [vmem:[%s2303 + $0x7c] sm:$0xf]
        %s2336 = scalar_lea.vmem %s11, 1
        %v2337 = vld [vmem:[%s2336] sm:$0x1]
        %v2339 = vlaneseq
        %v2340 = vshrl.u32 %v2339, 7
        %v2341 = vsub.s32 0, %v2340
        %v2342 = vrot.slane %v2337, %v2341
        %v2376 = vunpack.c.l.b16 %v2304
        %v2377 = vunpack.c.l.b16 %v2305
        %v2378 = vunpack.c.l.b16 %v2306
        %v2379 = vunpack.c.l.b16 %v2307
        %v2380 = vunpack.c.l.b16 %v2308
        %v2381 = vunpack.c.l.b16 %v2309
        %v2382 = vunpack.c.l.b16 %v2310
        %v2383 = vunpack.c.l.b16 %v2311
        %v2384 = vunpack.c.l.b16 %v2312
        %v2385 = vunpack.c.l.b16 %v2313
        %v2386 = vunpack.c.l.b16 %v2314
        %v2387 = vunpack.c.l.b16 %v2315
        %v2388 = vunpack.c.l.b16 %v2316
        %v2389 = vunpack.c.l.b16 %v2317
        %v2390 = vunpack.c.l.b16 %v2318
        %v2391 = vunpack.c.l.b16 %v2319
        %v2392 = vunpack.c.l.b16 %v2320
        %v2393 = vunpack.c.l.b16 %v2321
        %v2394 = vunpack.c.l.b16 %v2322
        %v2395 = vunpack.c.l.b16 %v2323
        %v2396 = vunpack.c.l.b16 %v2324
        %v2397 = vunpack.c.l.b16 %v2325
        %v2398 = vunpack.c.l.b16 %v2326
        %v2399 = vunpack.c.l.b16 %v2327
        %v2400 = vunpack.c.l.b16 %v2328
        %v2401 = vunpack.c.l.b16 %v2329
        %v2402 = vunpack.c.l.b16 %v2330
        %v2403 = vunpack.c.l.b16 %v2331
        %v2404 = vunpack.c.l.b16 %v2332
        %v2405 = vunpack.c.l.b16 %v2333
        %v2406 = vunpack.c.l.b16 %v2334
        %v2407 = vunpack.c.l.b16 %v2335
        %v2408 = vpack.c.b16 %v2377, %v2376
        %v2409 = vpack.c.b16 %v2379, %v2378
        %v2410 = vpack.c.b16 %v2381, %v2380
        %v2411 = vpack.c.b16 %v2383, %v2382
        %v2412 = vpack.c.b16 %v2385, %v2384
        %v2413 = vpack.c.b16 %v2387, %v2386
        %v2414 = vpack.c.b16 %v2389, %v2388
        %v2415 = vpack.c.b16 %v2391, %v2390
        %v2416 = vpack.c.b16 %v2393, %v2392
        %v2417 = vpack.c.b16 %v2395, %v2394
        %v2418 = vpack.c.b16 %v2397, %v2396
        %v2419 = vpack.c.b16 %v2399, %v2398
        %v2420 = vpack.c.b16 %v2401, %v2400
        %v2421 = vpack.c.b16 %v2403, %v2402
        %v2422 = vpack.c.b16 %v2405, %v2404
        %v2423 = vpack.c.b16 %v2407, %v2406
        %2440 = vmatprep.subr.bf16.mxu0 0
        %2441 = vmatpush1.bf16.msra.mxu0 %v2408
        %2442 = vmatprep.subr.bf16.mxu0 0
        %2443 = vmatpush1.bf16.msra.mxu0 %v2409
        %2444 = vmatprep.subr.bf16.mxu0 0
        %2445 = vmatpush1.bf16.msra.mxu0 %v2410
        %2446 = vmatprep.subr.bf16.mxu0 0
        %2447 = vmatpush1.bf16.msra.mxu0 %v2411
        %2448 = vmatprep.subr.bf16.mxu0 0
        %2449 = vmatpush1.bf16.msra.mxu0 %v2412
        %2450 = vmatprep.subr.bf16.mxu0 0
        %2451 = vmatpush1.bf16.msra.mxu0 %v2413
        %2452 = vmatprep.subr.bf16.mxu0 0
        %2453 = vmatpush1.bf16.msra.mxu0 %v2414
        %2454 = vmatprep.subr.bf16.mxu0 0
        %2455 = vmatpush1.bf16.msra.mxu0 %v2415
        %2456 = vmatprep.subr.bf16.mxu0 0
        %2457 = vmatpush1.bf16.msra.mxu0 %v2416
        %2458 = vmatprep.subr.bf16.mxu0 0
        %2459 = vmatpush1.bf16.msra.mxu0 %v2417
        %2460 = vmatprep.subr.bf16.mxu0 0
        %2461 = vmatpush1.bf16.msra.mxu0 %v2418
        %2462 = vmatprep.subr.bf16.mxu0 0
        %2463 = vmatpush1.bf16.msra.mxu0 %v2419
        %2464 = vmatprep.subr.bf16.mxu0 0
        %2465 = vmatpush1.bf16.msra.mxu0 %v2420
        %2466 = vmatprep.subr.bf16.mxu0 0
        %2467 = vmatpush1.bf16.msra.mxu0 %v2421
        %2468 = vmatprep.subr.bf16.mxu0 0
        %2469 = vmatpush1.bf16.msra.mxu0 %v2422
        %2470 = vmatprep.subr.bf16.mxu0 0
        %2471 = vmatpush1.bf16.msra.mxu0 %v2423
        %2472 = vmatprep.mubr.bf16.mxu0 %v2302
        %2473 = vmatmul.mubr.bf16.gmra.mrb[0].mxu0 %v2301
        %v2474 = vpop.f32.mrb[0].mxu0
        %v2475 = vadd.f32 %v2342, %v2474
        %v2476 = vpop.f32.mrb[0].mxu0
        %v2477 = vpop.f32.mrb[0].mxu0
        %v2478 = vadd.f32 %v2342, %v2477
        %v2479 = vpop.f32.mrb[0].mxu0
        %2480 = vdwg.mxu0
        %v2481 = vadd.f32 %v2141, %v2475
        %v2482 = vadd.f32 %v2142, %v2478
        %s2483 = scalar_lea.vmem %s14, 1
        %v2484 = vld [vmem:[%s2483] sm:$0x1]
        %s2485 = scalar_lea.vmem %s15, 1
        %v2486 = vld [vmem:[%s2485] sm:$0x1]
        %2487 = vadd.xlane.f32.xlu0 %v2481
        %v2488 = vpop.xlane.xlu0 %2487
        %2489 = vadd.xlane.f32.xlu0 %v2482
        %v2490 = vpop.xlane.xlu0 %2489
        %v2491 = vmul.f32 %v2488, %v1179
        %v2492 = vmul.f32 %v2490, %v1179
        %v2493 = vsub.f32 %v2481, %v2491
        %v2494 = vsub.f32 %v2482, %v2492
        %v2495 = vmul.f32 %v2493, %v2493
        %v2496 = vmul.f32 %v2494, %v2494
        %2497 = vadd.xlane.f32.xlu0 %v2495
        %v2498 = vpop.xlane.xlu0 %2497
        %2499 = vadd.xlane.f32.xlu0 %v2496
        %v2500 = vpop.xlane.xlu0 %2499
        %v2501 = vmul.f32 %v2498, %v1179
        %v2502 = vmul.f32 %v2500, %v1179
        %v2503 = vadd.f32 %v2501, 1e-05
        %v2504 = vadd.f32 %v2502, 1e-05
        %v2505 = vrsqrt.pop %v2503
        %v2506 = vrsqrt.pop %v2504
        %v2507 = vmul.f32 %v2493, %v2505
        %v2508 = vmul.f32 %v2494, %v2506
        %v2510 = vlaneseq
        %v2511 = vshrl.u32 %v2510, 7
        %v2512 = vsub.s32 0, %v2511
        %v2513 = vrot.slane %v2484, %v2512
        %v2515 = vmul.f32 %v2507, %v2513
        %v2516 = vmul.f32 %v2508, %v2513
        %v2518 = vlaneseq
        %v2519 = vshrl.u32 %v2518, 7
        %v2520 = vsub.s32 0, %v2519
        %v2521 = vrot.slane %v2486, %v2520
        %v2523 = vadd.f32 %v2515, %v2521
        %v2524 = vadd.f32 %v2516, %v2521
        %v2525 = vadd.f32 %v2523, %v2524
        %v2526 = vmul.f32 %v2525, 0.5
        %v2527 = vadd.f32 %v2526, %v611
        %2528 = vst [vmem:[%s584] sm:$0xff] %v2527
        %s2529 = sand.u32 %s387, 1
        %s2530 = scalar_lea.sflag [#allocation4], %s2529
        %s2531 = sand.u32 %s387, 1
        %s2532 = smul.addr %s2531, 8
        %s2533 = scalar_lea.vmem [#allocation10], %s2532
        // Predicated region
        $region101: #{tpu_custom_call.1} parent=83 // pred_check
          %p2534 = pneg %p397
        $region102: #{tpu_custom_call.1} parent=83 // pred_check_branch
          %2536 = sbr.rel (%p2534) target = $region104
        $region103: #{tpu_custom_call.1} parent=83 // pred_region
          %s2538 = ssub.s32 128, 128
          %2539 = vsyncadd %s2530, %s2538
          %s2540 = smul.addr %s33, 128
          %s2541 = scalar_lea.hbm %s16, %s2540
          %s2543 = sshll.u32 %s2533, 4
          %s2544 = int_to_ptr.vmem [resolvable:$true] %s2543
          %2546 = dma.vmem_to_hbm [thread:$0]  %s2544, 128, %s2541, %s2530
        $region104: #{tpu_custom_call.1} parent=83 // pred_fallthru
          _
      $region84: #{tpu_custom_call.1} parent=5 // pred_fallthru
        _
      %p2547 = scmp.le.s32.totalorder 2, %s28
      // Predicated region
      $region105: #{tpu_custom_call.1} parent=5 // pred_check
        %p2548 = pneg %p2547
      $region106: #{tpu_custom_call.1} parent=5 // pred_check_branch
        %2550 = sbr.rel (%p2548) target = $region108
      $region107: #{tpu_custom_call.1} parent=5 // pred_region
        %s2551 = ssub.s32 %s28, 2
        // Predicated region
        $region109: #{tpu_custom_call.1} parent=107 // pred_check
          %p2552 = pneg %p403
        $region110: #{tpu_custom_call.1} parent=107 // pred_check_branch
          %2554 = sbr.rel (%p2552) target = $region112
        $region111: #{tpu_custom_call.1} parent=107 // pred_region
          %s2555 = sand.u32 %s388, 1
          %s2556 = scalar_lea.sflag [#allocation4], %s2555
          %s2557 = sand.u32 %s388, 1
          %s2558 = smul.addr %s2557, 8
          %s2559 = scalar_lea.vmem [#allocation10], %s2558
          %2560 = dma.done %s2556, 128
        $region112: #{tpu_custom_call.1} parent=107 // pred_fallthru
          _
      $region108: #{tpu_custom_call.1} parent=5 // pred_fallthru
        _
    $region6: #{tpu_custom_call.1} parent=1 // loop_footer
      %s32 = sadd.s32 1, %s28
    $region7: #{tpu_custom_call.1} parent=1 // loop_footer_branch
      %27 = sbr.rel target = $region3
    $region8: #{tpu_custom_call.1} parent=1 // loop_exit
      _
    %2561 = vsyncpa [#allocation3], 1
    %s2562 = scalar_lea.sflag [#allocation3], 1
    %2563 = vsyncpa %s2562, 1
    %2564 = vsyncpa [#allocation6], 1
    %2565 = vsyncpa [#allocation9], 1
    %2566 = vsyncpa [#allocation4], 1
    %s2567 = scalar_lea.sflag [#allocation4], 1
    %2568 = vsyncpa %s2567, 1

// kernel: tpu_custom_call.1
$region0: #{tpu_custom_call.1}
  #allocation0 [shape = 'u32[]', space=smem, size = 0x4, offset = 0x4, fixed_abs, tag = 'smem constant byte address 0x4 - core index']
  #allocation1 [shape = 'u32[144,128]{1,0:T(1,128)}', space=vmem, size = 0x12000, scoped, tag = 'internal scratch']
  %s0 = inlined_call_operand.vmem [shape: f32[16,128], index: 0, kind: input, shape index: {}]
  %s1 = inlined_call_operand.vmem [shape: f32[16,128], index: 1, kind: input, shape index: {}]
  %s2 = inlined_call_operand.vmem [shape: bf16[128,4], index: 2, kind: input, shape index: {}]
  %s3 = inlined_call_operand.vmem [shape: bf16[4,128], index: 3, kind: input, shape index: {}]
  %s4 = inlined_call_operand.hbm [shape: bf16[2,128,384], index: 4, kind: input, shape index: {}]
  %s5 = inlined_call_operand.vmem [shape: f32[2,1,384], index: 5, kind: input, shape index: {}]
  %s6 = inlined_call_operand.hbm [shape: bf16[2,128,128], index: 6, kind: input, shape index: {}]
  %s7 = inlined_call_operand.vmem [shape: f32[2,1,128], index: 7, kind: input, shape index: {}]
  %s8 = inlined_call_operand.hbm [shape: bf16[2,128,256], index: 8, kind: input, shape index: {}]
  %s9 = inlined_call_operand.vmem [shape: f32[2,1,256], index: 9, kind: input, shape index: {}]
  %s10 = inlined_call_operand.hbm [shape: bf16[2,256,128], index: 10, kind: input, shape index: {}]
  %s11 = inlined_call_operand.vmem [shape: f32[2,1,128], index: 11, kind: input, shape index: {}]
  %s12 = inlined_call_operand.vmem [shape: f32[2,1,128], index: 12, kind: input, shape index: {}]
  %s13 = inlined_call_operand.vmem [shape: f32[2,1,128], index: 13, kind: input, shape index: {}]
  %s14 = inlined_call_operand.vmem [shape: f32[2,1,128], index: 14, kind: input, shape index: {}]
  %s15 = inlined_call_operand.vmem [shape: f32[2,1,128], index: 15, kind: input, shape index: {}]
  %s16 = inlined_call_operand.hbm [shape: f32[16,128], index: 16, kind: output, shape index: {}]
  %s17 = sld [smem:[#allocation0]]
  $region113: #{tpu_custom_call.1} parent=0
    _
  %s19 = ssub.s32 1, %s17
  %s20 = scalar_select 0, %s19, %s17
  $region1: #{tpu_custom_call.1} parent=0
    #allocation2 [shape = 'u8[196608]{0}', space=vmem, size = 0x30000, scoped, tag = 'input window, operand 4, single buffered']
    #allocation3 [shape = 's32[2]{0}', space=sflag, size = 0x8, scoped, tag = 'scoped memory for tpu_custom_call.1']
    #allocation4 [shape = 's32[2]{0}', space=sflag, size = 0x8, scoped, tag = 'scoped memory for tpu_custom_call.1']
    #allocation5 [shape = 'u8[65536]{0}', space=vmem, size = 0x10000, scoped, tag = 'input window, operand 6, single buffered']
    #allocation6 [shape = 's32[1]{0}', space=sflag, size = 0x4, scoped, tag = 'scoped memory for tpu_custom_call.1']
    #allocation7 [shape = 'u8[131072]{0}', space=vmem, size = 0x20000, scoped, tag = 'input window, operand 8, single buffered']
    #allocation8 [shape = 'u8[131072]{0}', space=vmem, size = 0x20000, scoped, tag = 'input window, operand 10, single buffered']
    #allocation9 [shape = 's32[1]{0}', space=sflag, size = 0x4, scoped, tag = 'scoped memory for tpu_custom_call.1']
    #allocation10 [shape = 'u8[8192]{0}', space=vmem, size = 0x2000, scoped, tag = 'output window, operand 0']
    %21 = vsyncpa [#allocation3], 0
    %22 = vsyncpa [#allocation6], 0
    %23 = vsyncpa [#allocation9], 0
    %24 = vsyncpa [#allocation4], 0
    %s25 = scalar_lea.sflag [#allocation4], 1
    %26 = vsyncpa %s25, 0
    loop: start=0, step=1, limit=4
    $region2: #{tpu_custom_call.1} parent=1 // loop_pre_header
      _
    $region3: #{tpu_custom_call.1} parent=1 // loop_header
      %s28 = sphi 0, %s32
      %p29 = scmp.ge.s32.totalorder %s28, 4
      %s38 = sphi 0, %s40
      %s41 = sphi 0, %s38
      %s42 = sphi 0, %s41
      %s58 = sphi 0, %s42
      %s64 = sphi 0, %s66
      %s67 = sphi 0, %s64
      %s68 = sphi 0, %s67
      %s84 = sphi 0, %s68
      %s88 = sphi 0, %s88
      %s90 = sphi 0, %s88
      %s91 = sphi 0, %s90
      %s105 = sphi 0, %s91
      %s109 = sphi 0, %s109
      %s111 = sphi 0, %s109
      %s112 = sphi 0, %s111
      %s126 = sphi 0, %s112
      %s130 = sphi 0, %s130
      %s132 = sphi 0, %s130
      %s133 = sphi 0, %s132
      %s147 = sphi 0, %s133
      %s151 = sphi 0, %s151
      %s153 = sphi 0, %s151
      %s154 = sphi 0, %s153
      %s168 = sphi 0, %s154
      %s172 = sphi 0, %s172
      %s174 = sphi 0, %s172
      %s175 = sphi 0, %s174
      %s189 = sphi 0, %s175
      %s193 = sphi 0, %s193
      %s195 = sphi 0, %s193
      %s196 = sphi 0, %s195
      %s210 = sphi 0, %s196
      %s214 = sphi 0, %s214
      %s216 = sphi 0, %s214
      %s217 = sphi 0, %s216
      %s231 = sphi 0, %s217
      %s235 = sphi 0, %s235
      %s237 = sphi 0, %s235
      %s238 = sphi 0, %s237
      %s252 = sphi 0, %s238
      %s256 = sphi 0, %s256
      %s258 = sphi 0, %s256
      %s259 = sphi 0, %s258
      %s273 = sphi 0, %s259
      %s277 = sphi 0, %s277
      %s279 = sphi 0, %s277
      %s280 = sphi 0, %s279
      %s294 = sphi 0, %s280
      %s298 = sphi 0, %s298
      %s300 = sphi 0, %s298
      %s301 = sphi 0, %s300
      %s315 = sphi 0, %s301
      %s319 = sphi 0, %s319
      %s321 = sphi 0, %s319
      %s322 = sphi 0, %s321
      %s336 = sphi 0, %s322
      %s340 = sphi 0, %s340
      %s342 = sphi 0, %s340
      %s343 = sphi 0, %s342
      %s357 = sphi 0, %s343
      %s361 = sphi 0, %s361
      %s363 = sphi 0, %s361
      %s364 = sphi 0, %s363
      %s378 = sphi 0, %s364
      %s384 = sphi 0, %s386
      %s387 = sphi 0, %s384
      %s388 = sphi 0, %s387
      %s404 = sphi 0, %s388
    $region4: #{tpu_custom_call.1} parent=1 // loop_header_branch
      %31 = sbr.rel (%p29) target = $region8
    $region5: #{tpu_custom_call.1} parent=1 // loop_body
      %s33 = ssub.s32 %s28, 1
      %s34 = ssub.s32 %s28, 2
      %s35 = sadd.s32 %s28, 1
      %s36 = ssub.s32 %s28, %s35
      %p37 = scmp.eq.s32.totalorder %s36, 0
      %s39 = sadd.s32 %s38, 1
      %s40 = scalar_select %p37, %s38, %s39
      %p43 = pneg %p37
      %p44 = scmp.eq.s32.totalorder %s28, 1
      %p45 = por %p43, %p44
      %p46 = scmp.ne.s32.totalorder %s38, %s41
      %p47 = scmp.eq.s32.totalorder %s28, 0
      %p48 = por %p46, %p47
      %p49 = scmp.ne.s32.totalorder %s38, %s41
      %p50 = scmp.eq.s32.totalorder %s33, 1
      %p51 = por %p49, %p50
      %p52 = scmp.ne.s32.totalorder %s41, %s42
      %p53 = scmp.eq.s32.totalorder %s33, 0
      %p54 = por %p52, %p53
      %p55 = scmp.ne.s32.totalorder %s41, %s42
      %p56 = scmp.eq.s32.totalorder %s34, 1
      %p57 = por %p55, %p56
      %p59 = scmp.ne.s32.totalorder %s42, %s58
      %p60 = scmp.eq.s32.totalorder %s34, 0
      %p61 = por %p59, %p60
      %s62 = ssub.s32 %s28, %s35
      %p63 = scmp.eq.s32.totalorder %s62, 0
      %s65 = sadd.s32 %s64, 1
      %s66 = scalar_select %p63, %s64, %s65
      %p69 = pneg %p63
      %p70 = scmp.eq.s32.totalorder %s28, 1
      %p71 = por %p69, %p70
      %p72 = scmp.ne.s32.totalorder %s64, %s67
      %p73 = scmp.eq.s32.totalorder %s28, 0
      %p74 = por %p72, %p73
      %p75 = scmp.ne.s32.totalorder %s64, %s67
      %p76 = scmp.eq.s32.totalorder %s33, 1
      %p77 = por %p75, %p76
      %p78 = scmp.ne.s32.totalorder %s67, %s68
      %p79 = scmp.eq.s32.totalorder %s33, 0
      %p80 = por %p78, %p79
      %p81 = scmp.ne.s32.totalorder %s67, %s68
      %p82 = scmp.eq.s32.totalorder %s34, 1
      %p83 = por %p81, %p82
      %p85 = scmp.ne.s32.totalorder %s68, %s84
      %p86 = scmp.eq.s32.totalorder %s34, 0
      %p87 = por %p85, %p86
      %s89 = sadd.s32 %s88, 1
      %p92 = scmp.eq.s32.totalorder %s28, 1
      %p93 = scmp.ne.s32.totalorder %s88, %s90
      %p94 = scmp.eq.s32.totalorder %s28, 0
      %p95 = por %p93, %p94
      %p96 = scmp.ne.s32.totalorder %s88, %s90
      %p97 = scmp.eq.s32.totalorder %s33, 1
      %p98 = por %p96, %p97
      %p99 = scmp.ne.s32.totalorder %s90, %s91
      %p100 = scmp.eq.s32.totalorder %s33, 0
      %p101 = por %p99, %p100
      %p102 = scmp.ne.s32.totalorder %s90, %s91
      %p103 = scmp.eq.s32.totalorder %s34, 1
      %p104 = por %p102, %p103
      %p106 = scmp.ne.s32.totalorder %s91, %s105
      %p107 = scmp.eq.s32.totalorder %s34, 0
      %p108 = por %p106, %p107
      %s110 = sadd.s32 %s109, 1
      %p113 = scmp.eq.s32.totalorder %s28, 1
      %p114 = scmp.ne.s32.totalorder %s109, %s111
      %p115 = scmp.eq.s32.totalorder %s28, 0
      %p116 = por %p114, %p115
      %p117 = scmp.ne.s32.totalorder %s109, %s111
      %p118 = scmp.eq.s32.totalorder %s33, 1
      %p119 = por %p117, %p118
      %p120 = scmp.ne.s32.totalorder %s111, %s112
      %p121 = scmp.eq.s32.totalorder %s33, 0
      %p122 = por %p120, %p121
      %p123 = scmp.ne.s32.totalorder %s111, %s112
      %p124 = scmp.eq.s32.totalorder %s34, 1
      %p125 = por %p123, %p124
      %p127 = scmp.ne.s32.totalorder %s112, %s126
      %p128 = scmp.eq.s32.totalorder %s34, 0
      %p129 = por %p127, %p128
      %s131 = sadd.s32 %s130, 1
      %p134 = scmp.eq.s32.totalorder %s28, 1
      %p135 = scmp.ne.s32.totalorder %s130, %s132
      %p136 = scmp.eq.s32.totalorder %s28, 0
      %p137 = por %p135, %p136
      %p138 = scmp.ne.s32.totalorder %s130, %s132
      %p139 = scmp.eq.s32.totalorder %s33, 1
      %p140 = por %p138, %p139
      %p141 = scmp.ne.s32.totalorder %s132, %s133
      %p142 = scmp.eq.s32.totalorder %s33, 0
      %p143 = por %p141, %p142
      %p144 = scmp.ne.s32.totalorder %s132, %s133
      %p145 = scmp.eq.s32.totalorder %s34, 1
      %p146 = por %p144, %p145
      %p148 = scmp.ne.s32.totalorder %s133, %s147
      %p149 = scmp.eq.s32.totalorder %s34, 0
      %p150 = por %p148, %p149
      %s152 = sadd.s32 %s151, 1
      %p155 = scmp.eq.s32.totalorder %s28, 1
      %p156 = scmp.ne.s32.totalorder %s151, %s153
      %p157 = scmp.eq.s32.totalorder %s28, 0
      %p158 = por %p156, %p157
      %p159 = scmp.ne.s32.totalorder %s151, %s153
      %p160 = scmp.eq.s32.totalorder %s33, 1
      %p161 = por %p159, %p160
      %p162 = scmp.ne.s32.totalorder %s153, %s154
      %p163 = scmp.eq.s32.totalorder %s33, 0
      %p164 = por %p162, %p163
      %p165 = scmp.ne.s32.totalorder %s153, %s154
      %p166 = scmp.eq.s32.totalorder %s34, 1
      %p167 = por %p165, %p166
      %p169 = scmp.ne.s32.totalorder %s154, %s168
      %p170 = scmp.eq.s32.totalorder %s34, 0
      %p171 = por %p169, %p170
      %s173 = sadd.s32 %s172, 1
      %p176 = scmp.eq.s32.totalorder %s28, 1
      %p177 = scmp.ne.s32.totalorder %s172, %s174
      %p178 = scmp.eq.s32.totalorder %s28, 0
      %p179 = por %p177, %p178
      %p180 = scmp.ne.s32.totalorder %s172, %s174
      %p181 = scmp.eq.s32.totalorder %s33, 1
      %p182 = por %p180, %p181
      %p183 = scmp.ne.s32.totalorder %s174, %s175
      %p184 = scmp.eq.s32.totalorder %s33, 0
      %p185 = por %p183, %p184
      %p186 = scmp.ne.s32.totalorder %s174, %s175
      %p187 = scmp.eq.s32.totalorder %s34, 1
      %p188 = por %p186, %p187
      %p190 = scmp.ne.s32.totalorder %s175, %s189
      %p191 = scmp.eq.s32.totalorder %s34, 0
      %p192 = por %p190, %p191
      %s194 = sadd.s32 %s193, 1
      %p197 = scmp.eq.s32.totalorder %s28, 1
      %p198 = scmp.ne.s32.totalorder %s193, %s195
      %p199 = scmp.eq.s32.totalorder %s28, 0
      %p200 = por %p198, %p199
      %p201 = scmp.ne.s32.totalorder %s193, %s195
      %p202 = scmp.eq.s32.totalorder %s33, 1
      %p203 = por %p201, %p202
      %p204 = scmp.ne.s32.totalorder %s195, %s196
      %p205 = scmp.eq.s32.totalorder %s33, 0
      %p206 = por %p204, %p205
      %p207 = scmp.ne.s32.totalorder %s195, %s196
      %p208 = scmp.eq.s32.totalorder %s34, 1
      %p209 = por %p207, %p208
      %p211 = scmp.ne.s32.totalorder %s196, %s210
      %p212 = scmp.eq.s32.totalorder %s34, 0
      %p213 = por %p211, %p212
      %s215 = sadd.s32 %s214, 1
      %p218 = scmp.eq.s32.totalorder %s28, 1
      %p219 = scmp.ne.s32.totalorder %s214, %s216
      %p220 = scmp.eq.s32.totalorder %s28, 0
      %p221 = por %p219, %p220
      %p222 = scmp.ne.s32.totalorder %s214, %s216
      %p223 = scmp.eq.s32.totalorder %s33, 1
      %p224 = por %p222, %p223
      %p225 = scmp.ne.s32.totalorder %s216, %s217
      %p226 = scmp.eq.s32.totalorder %s33, 0
      %p227 = por %p225, %p226
      %p228 = scmp.ne.s32.totalorder %s216, %s217
      %p229 = scmp.eq.s32.totalorder %s34, 1
      %p230 = por %p228, %p229
      %p232 = scmp.ne.s32.totalorder %s217, %s231
      %p233 = scmp.eq.s32.totalorder %s34, 0
      %p234 = por %p232, %p233
      %s236 = sadd.s32 %s235, 1
      %p239 = scmp.eq.s32.totalorder %s28, 1
      %p240 = scmp.ne.s32.totalorder %s235, %s237
      %p241 = scmp.eq.s32.totalorder %s28, 0
      %p242 = por %p240, %p241
      %p243 = scmp.ne.s32.totalorder %s235, %s237
      %p244 = scmp.eq.s32.totalorder %s33, 1
      %p245 = por %p243, %p244
      %p246 = scmp.ne.s32.totalorder %s237, %s238
      %p247 = scmp.eq.s32.totalorder %s33, 0
      %p248 = por %p246, %p247
      %p249 = scmp.ne.s32.totalorder %s237, %s238
      %p250 = scmp.eq.s32.totalorder %s34, 1
      %p251 = por %p249, %p250
      %p253 = scmp.ne.s32.totalorder %s238, %s252
      %p254 = scmp.eq.s32.totalorder %s34, 0
      %p255 = por %p253, %p254
      %s257 = sadd.s32 %s256, 1
      %p260 = scmp.eq.s32.totalorder %s28, 1
      %p261 = scmp.ne.s32.totalorder %s256, %s258
      %p262 = scmp.eq.s32.totalorder %s28, 0
      %p263 = por %p261, %p262
      %p264 = scmp.ne.s32.totalorder %s256, %s258
      %p265 = scmp.eq.s32.totalorder %s33, 1
      %p266 = por %p264, %p265
      %p267 = scmp.ne.s32.totalorder %s258, %s259
      %p268 = scmp.eq.s32.totalorder %s33, 0
      %p269 = por %p267, %p268
      %p270 = scmp.ne.s32.totalorder %s258, %s259
      %p271 = scmp.eq.s32.totalorder %s34, 1
      %p272 = por %p270, %p271
      %p274 = scmp.ne.s32.totalorder %s259, %s273
      %p275 = scmp.eq.s32.totalorder %s34, 0
      %p276 = por %p274, %p275
      %s278 = sadd.s32 %s277, 1
      %p281 = scmp.eq.s32.totalorder %s28, 1
      %p282 = scmp.ne.s32.totalorder %s277, %s279
      %p283 = scmp.eq.s32.totalorder %s28, 0
      %p284 = por %p282, %p283
      %p285 = scmp.ne.s32.totalorder %s277, %s279
      %p286 = scmp.eq.s32.totalorder %s33, 1
      %p287 = por %p285, %p286
      %p288 = scmp.ne.s32.totalorder %s279, %s280
      %p289 = scmp.eq.s32.totalorder %s33, 0
      %p290 = por %p288, %p289
      %p291 = scmp.ne.s32.totalorder %s279, %s280
      %p292 = scmp.eq.s32.totalorder %s34, 1
      %p293 = por %p291, %p292
      %p295 = scmp.ne.s32.totalorder %s280, %s294
      %p296 = scmp.eq.s32.totalorder %s34, 0
      %p297 = por %p295, %p296
      %s299 = sadd.s32 %s298, 1
      %p302 = scmp.eq.s32.totalorder %s28, 1
      %p303 = scmp.ne.s32.totalorder %s298, %s300
      %p304 = scmp.eq.s32.totalorder %s28, 0
      %p305 = por %p303, %p304
      %p306 = scmp.ne.s32.totalorder %s298, %s300
      %p307 = scmp.eq.s32.totalorder %s33, 1
      %p308 = por %p306, %p307
      %p309 = scmp.ne.s32.totalorder %s300, %s301
      %p310 = scmp.eq.s32.totalorder %s33, 0
      %p311 = por %p309, %p310
      %p312 = scmp.ne.s32.totalorder %s300, %s301
      %p313 = scmp.eq.s32.totalorder %s34, 1
      %p314 = por %p312, %p313
      %p316 = scmp.ne.s32.totalorder %s301, %s315
      %p317 = scmp.eq.s32.totalorder %s34, 0
      %p318 = por %p316, %p317
      %s320 = sadd.s32 %s319, 1
      %p323 = scmp.eq.s32.totalorder %s28, 1
      %p324 = scmp.ne.s32.totalorder %s319, %s321
      %p325 = scmp.eq.s32.totalorder %s28, 0
      %p326 = por %p324, %p325
      %p327 = scmp.ne.s32.totalorder %s319, %s321
      %p328 = scmp.eq.s32.totalorder %s33, 1
      %p329 = por %p327, %p328
      %p330 = scmp.ne.s32.totalorder %s321, %s322
      %p331 = scmp.eq.s32.totalorder %s33, 0
      %p332 = por %p330, %p331
      %p333 = scmp.ne.s32.totalorder %s321, %s322
      %p334 = scmp.eq.s32.totalorder %s34, 1
      %p335 = por %p333, %p334
      %p337 = scmp.ne.s32.totalorder %s322, %s336
      %p338 = scmp.eq.s32.totalorder %s34, 0
      %p339 = por %p337, %p338
      %s341 = sadd.s32 %s340, 1
      %p344 = scmp.eq.s32.totalorder %s28, 1
      %p345 = scmp.ne.s32.totalorder %s340, %s342
      %p346 = scmp.eq.s32.totalorder %s28, 0
      %p347 = por %p345, %p346
      %p348 = scmp.ne.s32.totalorder %s340, %s342
      %p349 = scmp.eq.s32.totalorder %s33, 1
      %p350 = por %p348, %p349
      %p351 = scmp.ne.s32.totalorder %s342, %s343
      %p352 = scmp.eq.s32.totalorder %s33, 0
      %p353 = por %p351, %p352
      %p354 = scmp.ne.s32.totalorder %s342, %s343
      %p355 = scmp.eq.s32.totalorder %s34, 1
      %p356 = por %p354, %p355
      %p358 = scmp.ne.s32.totalorder %s343, %s357
      %p359 = scmp.eq.s32.totalorder %s34, 0
      %p360 = por %p358, %p359
      %s362 = sadd.s32 %s361, 1
      %p365 = scmp.eq.s32.totalorder %s28, 1
      %p366 = scmp.ne.s32.totalorder %s361, %s363
      %p367 = scmp.eq.s32.totalorder %s28, 0
      %p368 = por %p366, %p367
      %p369 = scmp.ne.s32.totalorder %s361, %s363
      %p370 = scmp.eq.s32.totalorder %s33, 1
      %p371 = por %p369, %p370
      %p372 = scmp.ne.s32.totalorder %s363, %s364
      %p373 = scmp.eq.s32.totalorder %s33, 0
      %p374 = por %p372, %p373
      %p375 = scmp.ne.s32.totalorder %s363, %s364
      %p376 = scmp.eq.s32.totalorder %s34, 1
      %p377 = por %p375, %p376
      %p379 = scmp.ne.s32.totalorder %s364, %s378
      %p380 = scmp.eq.s32.totalorder %s34, 0
      %p381 = por %p379, %p380
      %s382 = ssub.s32 %s28, %s35
      %p383 = scmp.eq.s32.totalorder %s382, 0
      %s385 = sadd.s32 %s384, 1
      %s386 = scalar_select %p383, %s384, %s385
      %p389 = pneg %p383
      %p390 = scmp.eq.s32.totalorder %s28, 1
      %p391 = por %p389, %p390
      %p392 = scmp.ne.s32.totalorder %s384, %s387
      %p393 = scmp.eq.s32.totalorder %s28, 0
      %p394 = por %p392, %p393
      %p395 = scmp.ne.s32.totalorder %s384, %s387
      %p396 = scmp.eq.s32.totalorder %s33, 1
      %p397 = por %p395, %p396
      %p398 = scmp.ne.s32.totalorder %s387, %s388
      %p399 = scmp.eq.s32.totalorder %s33, 0
      %p400 = por %p398, %p399
      %p401 = scmp.ne.s32.totalorder %s387, %s388
      %p402 = scmp.eq.s32.totalorder %s34, 1
      %p403 = por %p401, %p402
      %p405 = scmp.ne.s32.totalorder %s388, %s404
      %p406 = scmp.eq.s32.totalorder %s34, 0
      %p407 = por %p405, %p406
      %p408 = scmp.le.s32.totalorder 1, %s28
      %p409 = scmp.lt.s32.totalorder %s28, 3
      %p410 = pnand %p408, %p409
      %p411 = pneg %p410
      // Predicated region
      $region9: #{tpu_custom_call.1} parent=5 // pred_check
        _
      $region10: #{tpu_custom_call.1} parent=5 // pred_check_branch
        %413 = sbr.rel (%p410) target = $region12
      $region11: #{tpu_custom_call.1} parent=5 // pred_region
        %s414 = ssub.s32 %s28, 1
        // Predicated region
        $region13: #{tpu_custom_call.1} parent=11 // pred_check
          %p415 = pneg %p101
        $region14: #{tpu_custom_call.1} parent=11 // pred_check_branch
          %417 = sbr.rel (%p415) target = $region16
        $region15: #{tpu_custom_call.1} parent=11 // pred_region
          _
        $region16: #{tpu_custom_call.1} parent=11 // pred_fallthru
          _
        // Predicated region
        $region17: #{tpu_custom_call.1} parent=11 // pred_check
          %p418 = pneg %p122
        $region18: #{tpu_custom_call.1} parent=11 // pred_check_branch
          %420 = sbr.rel (%p418) target = $region20
        $region19: #{tpu_custom_call.1} parent=11 // pred_region
          _
        $region20: #{tpu_custom_call.1} parent=11 // pred_fallthru
          _
        // Predicated region
        $region21: #{tpu_custom_call.1} parent=11 // pred_check
          %p421 = pneg %p143
        $region22: #{tpu_custom_call.1} parent=11 // pred_check_branch
          %423 = sbr.rel (%p421) target = $region24
        $region23: #{tpu_custom_call.1} parent=11 // pred_region
          %s425 = ssub.s32 6144, 6144
          %426 = vsyncadd [#allocation3], %s425
          %s427 = sshll.u32 [#allocation2], 4
          %s428 = int_to_ptr.vmem [resolvable:$true] %s427
          %433 = dma.hbm_to_vmem [thread:$0]  %s4, 6144, %s428, [#allocation3], 192, 192, 12
        $region24: #{tpu_custom_call.1} parent=11 // pred_fallthru
          _
        // Predicated region
        $region25: #{tpu_custom_call.1} parent=11 // pred_check
          %p434 = pneg %p164
        $region26: #{tpu_custom_call.1} parent=11 // pred_check_branch
          %436 = sbr.rel (%p434) target = $region28
        $region27: #{tpu_custom_call.1} parent=11 // pred_region
          _
        $region28: #{tpu_custom_call.1} parent=11 // pred_fallthru
          _
        // Predicated region
        $region29: #{tpu_custom_call.1} parent=11 // pred_check
          %p437 = pneg %p185
        $region30: #{tpu_custom_call.1} parent=11 // pred_check_branch
          %439 = sbr.rel (%p437) target = $region32
        $region31: #{tpu_custom_call.1} parent=11 // pred_region
          %s441 = ssub.s32 2048, 2048
          %442 = vsyncadd [#allocation6], %s441
          %s443 = sshll.u32 [#allocation5], 4
          %s444 = int_to_ptr.vmem [resolvable:$true] %s443
          %449 = dma.hbm_to_vmem [thread:$0]  %s6, 2048, %s444, [#allocation6], 64, 64, 4
        $region32: #{tpu_custom_call.1} parent=11 // pred_fallthru
          _
        // Predicated region
        $region33: #{tpu_custom_call.1} parent=11 // pred_check
          %p450 = pneg %p206
        $region34: #{tpu_custom_call.1} parent=11 // pred_check_branch
          %452 = sbr.rel (%p450) target = $region36
        $region35: #{tpu_custom_call.1} parent=11 // pred_region
          _
        $region36: #{tpu_custom_call.1} parent=11 // pred_fallthru
          _
        // Predicated region
        $region37: #{tpu_custom_call.1} parent=11 // pred_check
          %p453 = pneg %p227
        $region38: #{tpu_custom_call.1} parent=11 // pred_check_branch
          %455 = sbr.rel (%p453) target = $region40
        $region39: #{tpu_custom_call.1} parent=11 // pred_region
          %s457 = ssub.s32 4096, 4096
          %458 = vsyncadd [#allocation6], %s457
          %s459 = sshll.u32 [#allocation7], 4
          %s460 = int_to_ptr.vmem [resolvable:$true] %s459
          %465 = dma.hbm_to_vmem [thread:$0]  %s8, 4096, %s460, [#allocation6], 128, 128, 8
        $region40: #{tpu_custom_call.1} parent=11 // pred_fallthru
          _
        // Predicated region
        $region41: #{tpu_custom_call.1} parent=11 // pred_check
          %p466 = pneg %p248
        $region42: #{tpu_custom_call.1} parent=11 // pred_check_branch
          %468 = sbr.rel (%p466) target = $region44
        $region43: #{tpu_custom_call.1} parent=11 // pred_region
          _
        $region44: #{tpu_custom_call.1} parent=11 // pred_fallthru
          _
        // Predicated region
        $region45: #{tpu_custom_call.1} parent=11 // pred_check
          %p469 = pneg %p269
        $region46: #{tpu_custom_call.1} parent=11 // pred_check_branch
          %471 = sbr.rel (%p469) target = $region48
        $region47: #{tpu_custom_call.1} parent=11 // pred_region
          %s473 = ssub.s32 4096, 4096
          %474 = vsyncadd [#allocation9], %s473
          %s475 = sshll.u32 [#allocation8], 4
          %s476 = int_to_ptr.vmem [resolvable:$true] %s475
          %481 = dma.hbm_to_vmem [thread:$0]  %s10, 4096, %s476, [#allocation9], 64, 64, 4
        $region48: #{tpu_custom_call.1} parent=11 // pred_fallthru
          _
        // Predicated region
        $region49: #{tpu_custom_call.1} parent=11 // pred_check
          %p482 = pneg %p290
        $region50: #{tpu_custom_call.1} parent=11 // pred_check_branch
          %484 = sbr.rel (%p482) target = $region52
        $region51: #{tpu_custom_call.1} parent=11 // pred_region
          _
        $region52: #{tpu_custom_call.1} parent=11 // pred_fallthru
          _
        // Predicated region
        $region53: #{tpu_custom_call.1} parent=11 // pred_check
          %p485 = pneg %p311
        $region54: #{tpu_custom_call.1} parent=11 // pred_check_branch
          %487 = sbr.rel (%p485) target = $region56
        $region55: #{tpu_custom_call.1} parent=11 // pred_region
          _
        $region56: #{tpu_custom_call.1} parent=11 // pred_fallthru
          _
        // Predicated region
        $region57: #{tpu_custom_call.1} parent=11 // pred_check
          %p488 = pneg %p332
        $region58: #{tpu_custom_call.1} parent=11 // pred_check_branch
          %490 = sbr.rel (%p488) target = $region60
        $region59: #{tpu_custom_call.1} parent=11 // pred_region
          _
        $region60: #{tpu_custom_call.1} parent=11 // pred_fallthru
          _
        // Predicated region
        $region61: #{tpu_custom_call.1} parent=11 // pred_check
          %p491 = pneg %p353
        $region62: #{tpu_custom_call.1} parent=11 // pred_check_branch
          %493 = sbr.rel (%p491) target = $region64
        $region63: #{tpu_custom_call.1} parent=11 // pred_region
          _
        $region64: #{tpu_custom_call.1} parent=11 // pred_fallthru
          _
        // Predicated region
        $region65: #{tpu_custom_call.1} parent=11 // pred_check
          %p494 = pneg %p374
        $region66: #{tpu_custom_call.1} parent=11 // pred_check_branch
          %496 = sbr.rel (%p494) target = $region68
        $region67: #{tpu_custom_call.1} parent=11 // pred_region
          _
        $region68: #{tpu_custom_call.1} parent=11 // pred_fallthru
          _
      $region12: #{tpu_custom_call.1} parent=5 // pred_fallthru
        _
      %p497 = scmp.lt.s32.totalorder %s28, 2
      // Predicated region
      $region69: #{tpu_custom_call.1} parent=5 // pred_check
        %p498 = pneg %p497
      $region70: #{tpu_custom_call.1} parent=5 // pred_check_branch
        %500 = sbr.rel (%p498) target = $region72
      $region71: #{tpu_custom_call.1} parent=5 // pred_region
        // Predicated region
        $region73: #{tpu_custom_call.1} parent=71 // pred_check
          %p501 = pneg %p48
        $region74: #{tpu_custom_call.1} parent=71 // pred_check_branch
          %503 = sbr.rel (%p501) target = $region76
        $region75: #{tpu_custom_call.1} parent=71 // pred_region
          %p504 = scmp.lt.s32.totalorder %s28, 1
          %s505 = scalar_select %p504, %s28, 1
          %s506 = smul.addr %s505, 8
          %s507 = scalar_lea.vmem %s0, %s506
        $region76: #{tpu_custom_call.1} parent=71 // pred_fallthru
          _
        // Predicated region
        $region77: #{tpu_custom_call.1} parent=71 // pred_check
          %p508 = pneg %p74
        $region78: #{tpu_custom_call.1} parent=71 // pred_check_branch
          %510 = sbr.rel (%p508) target = $region80
        $region79: #{tpu_custom_call.1} parent=71 // pred_region
          %p511 = scmp.lt.s32.totalorder %s28, 1
          %s512 = scalar_select %p511, %s28, 1
          %s513 = smul.addr %s512, 8
          %s514 = scalar_lea.vmem %s1, %s513
        $region80: #{tpu_custom_call.1} parent=71 // pred_fallthru
          _
      $region72: #{tpu_custom_call.1} parent=5 // pred_fallthru
        _
      %p515 = scmp.le.s32.totalorder 1, %s28
      %p516 = scmp.lt.s32.totalorder %s28, 3
      %p517 = pnand %p515, %p516
      %p518 = pneg %p517
      // Predicated region
      $region81: #{tpu_custom_call.1} parent=5 // pred_check
        _
      $region82: #{tpu_custom_call.1} parent=5 // pred_check_branch
        %520 = sbr.rel (%p517) target = $region84
      $region83: #{tpu_custom_call.1} parent=5 // pred_region
        %s521 = ssub.s32 %s28, 1
        // Predicated region
        $region85: #{tpu_custom_call.1} parent=83 // pred_check
          %p522 = pneg %p143
        $region86: #{tpu_custom_call.1} parent=83 // pred_check_branch
          %524 = sbr.rel (%p522) target = $region88
        $region87: #{tpu_custom_call.1} parent=83 // pred_region
          %525 = dma.done [#allocation3], 6144
        $region88: #{tpu_custom_call.1} parent=83 // pred_fallthru
          _
        // Predicated region
        $region89: #{tpu_custom_call.1} parent=83 // pred_check
          %p526 = pneg %p185
        $region90: #{tpu_custom_call.1} parent=83 // pred_check_branch
          %528 = sbr.rel (%p526) target = $region92
        $region91: #{tpu_custom_call.1} parent=83 // pred_region
          %529 = dma.done [#allocation6], 2048
        $region92: #{tpu_custom_call.1} parent=83 // pred_fallthru
          _
        // Predicated region
        $region93: #{tpu_custom_call.1} parent=83 // pred_check
          %p530 = pneg %p227
        $region94: #{tpu_custom_call.1} parent=83 // pred_check_branch
          %532 = sbr.rel (%p530) target = $region96
        $region95: #{tpu_custom_call.1} parent=83 // pred_region
          %533 = dma.done [#allocation6], 4096
        $region96: #{tpu_custom_call.1} parent=83 // pred_fallthru
          _
        // Predicated region
        $region97: #{tpu_custom_call.1} parent=83 // pred_check
          %p534 = pneg %p269
        $region98: #{tpu_custom_call.1} parent=83 // pred_check_branch
          %536 = sbr.rel (%p534) target = $region100
        $region99: #{tpu_custom_call.1} parent=83 // pred_region
          %537 = dma.done [#allocation9], 4096
        $region100: #{tpu_custom_call.1} parent=83 // pred_fallthru
          _
        %p538 = scmp.lt.s32.totalorder %s33, 1
        %s539 = scalar_select %p538, %s33, 1
        %s540 = smul.addr %s539, 8
        %s541 = scalar_lea.vmem %s0, %s540
        %p542 = pneg %p54
        %p543 = pneg %p51
        %p544 = scmp.lt.s32.totalorder %s33, 1
        %s545 = scalar_select %p544, %s33, 1
        %s546 = smul.addr %s545, 8
        %s547 = scalar_lea.vmem %s1, %s546
        %p548 = pneg %p80
        %p549 = pneg %p77
        %p550 = pneg %p101
        %p551 = pneg %p98
        %p552 = pneg %p122
        %p553 = pneg %p119
        %p554 = pneg %p143
        %p555 = pneg %p140
        %p556 = pneg %p164
        %p557 = pneg %p161
        %p558 = pneg %p185
        %p559 = pneg %p182
        %p560 = pneg %p206
        %p561 = pneg %p203
        %p562 = pneg %p227
        %p563 = pneg %p224
        %p564 = pneg %p248
        %p565 = pneg %p245
        %p566 = pneg %p269
        %p567 = pneg %p266
        %p568 = pneg %p290
        %p569 = pneg %p287
        %p570 = pneg %p311
        %p571 = pneg %p308
        %p572 = pneg %p332
        %p573 = pneg %p329
        %p574 = pneg %p353
        %p575 = pneg %p350
        %p576 = pneg %p374
        %p577 = pneg %p371
        %p578 = pneg %p400
        %p579 = pneg %p397
        %s580 = sand.u32 %s387, 1
        %s581 = scalar_lea.sflag [#allocation4], %s580
        %s582 = sand.u32 %s387, 1
        %s583 = smul.addr %s582, 8
        %s584 = scalar_lea.vmem [#allocation10], %s583
        %p585 = scmp.lt.s32.totalorder %s33, 1
        %s586 = scalar_select %p585, %s33, 1
        %s587 = smul.addr %s586, 8
        %s588 = scalar_lea.vmem %s0, %s587
        %p589 = scmp.lt.s32.totalorder %s33, 1
        %s590 = scalar_select %p589, %s33, 1
        %s591 = smul.addr %s590, 8
        %s592 = scalar_lea.vmem %s1, %s591
        %v594 = vld [vmem:[%s2] sm:$0xf]
        %v595 = vld [vmem:[%s2 + $0x4] sm:$0xf]
        %v596 = vld [vmem:[%s2 + $0x8] sm:$0xf]
        %v597 = vld [vmem:[%s2 + $0xc] sm:$0xf]
        %v598 = vld [vmem:[%s2 + $0x10] sm:$0xf]
        %v599 = vld [vmem:[%s2 + $0x14] sm:$0xf]
        %v600 = vld [vmem:[%s2 + $0x18] sm:$0xf]
        %v601 = vld [vmem:[%s2 + $0x1c] sm:$0xf]
        %v602 = vld [vmem:[%s2 + $0x20] sm:$0xf]
        %v603 = vld [vmem:[%s2 + $0x24] sm:$0xf]
        %v604 = vld [vmem:[%s2 + $0x28] sm:$0xf]
        %v605 = vld [vmem:[%s2 + $0x2c] sm:$0xf]
        %v606 = vld [vmem:[%s2 + $0x30] sm:$0xf]
        %v607 = vld [vmem:[%s2 + $0x34] sm:$0xf]
        %v608 = vld [vmem:[%s2 + $0x38] sm:$0xf]
        %v609 = vld [vmem:[%s2 + $0x3c] sm:$0xf]
        %v610 = vld [vmem:[%s3] sm:$0x3]
        %v611 = vld [vmem:[%s588] sm:$0xff]
        %v612 = vld [vmem:[%s592] sm:$0xff]
        %v613 = vpack.c.bf16 %v612, %v611
        %v614 = vld [vmem:[#allocation2] sm:$0xff]
        %v615 = vld [vmem:[#allocation2 + $0x8] sm:$0xf]
        %v616 = vld [vmem:[#allocation2 + $0xc] sm:$0xff]
        %v617 = vld [vmem:[#allocation2 + $0x14] sm:$0xf]
        %v618 = vld [vmem:[#allocation2 + $0x18] sm:$0xff]
        %v619 = vld [vmem:[#allocation2 + $0x20] sm:$0xf]
        %v620 = vld [vmem:[#allocation2 + $0x24] sm:$0xff]
        %v621 = vld [vmem:[#allocation2 + $0x2c] sm:$0xf]
        %v622 = vld [vmem:[#allocation2 + $0x30] sm:$0xff]
        %v623 = vld [vmem:[#allocation2 + $0x38] sm:$0xf]
        %v624 = vld [vmem:[#allocation2 + $0x3c] sm:$0xff]
        %v625 = vld [vmem:[#allocation2 + $0x44] sm:$0xf]
        %v626 = vld [vmem:[#allocation2 + $0x48] sm:$0xff]
        %v627 = vld [vmem:[#allocation2 + $0x50] sm:$0xf]
        %v628 = vld [vmem:[#allocation2 + $0x54] sm:$0xff]
        %v629 = vld [vmem:[#allocation2 + $0x5c] sm:$0xf]
        %v630 = vld [vmem:[#allocation2 + $0x60] sm:$0xff]
        %v631 = vld [vmem:[#allocation2 + $0x68] sm:$0xf]
        %v632 = vld [vmem:[#allocation2 + $0x6c] sm:$0xff]
        %v633 = vld [vmem:[#allocation2 + $0x74] sm:$0xf]
        %v634 = vld [vmem:[#allocation2 + $0x78] sm:$0xff]
        %v635 = vld [vmem:[#allocation2 + $0x80] sm:$0xf]
        %v636 = vld [vmem:[#allocation2 + $0x84] sm:$0xff]
        %v637 = vld [vmem:[#allocation2 + $0x8c] sm:$0xf]
        %v638 = vld [vmem:[#allocation2 + $0x90] sm:$0xff]
        %v639 = vld [vmem:[#allocation2 + $0x98] sm:$0xf]
        %v640 = vld [vmem:[#allocation2 + $0x9c] sm:$0xff]
        %v641 = vld [vmem:[#allocation2 + $0xa4] sm:$0xf]
        %v642 = vld [vmem:[#allocation2 + $0xa8] sm:$0xff]
        %v643 = vld [vmem:[#allocation2 + $0xb0] sm:$0xf]
        %v644 = vld [vmem:[#allocation2 + $0xb4] sm:$0xff]
        %v645 = vld [vmem:[#allocation2 + $0xbc] sm:$0xf]
        %v646 = vld [vmem:[%s5] sm:$0x7]
        %v648 = vlaneseq
        %v649 = vshrl.u32 %v648, 7
        %v650 = vsub.s32 0, %v649
        %v651 = vrot.slane %v646, %v650
        %v652 = vlaneseq
        %v653 = vshrl.u32 %v652, 7
        %v654 = vsub.s32 1, %v653
        %v655 = vrot.slane %v646, %v654
        %v656 = vlaneseq
        %v657 = vshrl.u32 %v656, 7
        %v658 = vsub.s32 2, %v657
        %v659 = vrot.slane %v646, %v658
        %v695 = vunpack.c.l.b16 %v614
        %v696 = vunpack.c.h.b16 %v614
        %v697 = vunpack.c.l.b16 %v615
        %v698 = vunpack.c.l.b16 %v616
        %v699 = vunpack.c.h.b16 %v616
        %v700 = vunpack.c.l.b16 %v617
        %v701 = vunpack.c.l.b16 %v618
        %v702 = vunpack.c.h.b16 %v618
        %v703 = vunpack.c.l.b16 %v619
        %v704 = vunpack.c.l.b16 %v620
        %v705 = vunpack.c.h.b16 %v620
        %v706 = vunpack.c.l.b16 %v621
        %v707 = vunpack.c.l.b16 %v622
        %v708 = vunpack.c.h.b16 %v622
        %v709 = vunpack.c.l.b16 %v623
        %v710 = vunpack.c.l.b16 %v624
        %v711 = vunpack.c.h.b16 %v624
        %v712 = vunpack.c.l.b16 %v625
        %v713 = vunpack.c.l.b16 %v626
        %v714 = vunpack.c.h.b16 %v626
        %v715 = vunpack.c.l.b16 %v627
        %v716 = vunpack.c.l.b16 %v628
        %v717 = vunpack.c.h.b16 %v628
        %v718 = vunpack.c.l.b16 %v629
        %v719 = vunpack.c.l.b16 %v630
        %v720 = vunpack.c.h.b16 %v630
        %v721 = vunpack.c.l.b16 %v631
        %v722 = vunpack.c.l.b16 %v632
        %v723 = vunpack.c.h.b16 %v632
        %v724 = vunpack.c.l.b16 %v633
        %v725 = vunpack.c.l.b16 %v634
        %v726 = vunpack.c.h.b16 %v634
        %v727 = vunpack.c.l.b16 %v635
        %v728 = vunpack.c.l.b16 %v636
        %v729 = vunpack.c.h.b16 %v636
        %v730 = vunpack.c.l.b16 %v637
        %v731 = vunpack.c.l.b16 %v638
        %v732 = vunpack.c.h.b16 %v638
        %v733 = vunpack.c.l.b16 %v639
        %v734 = vunpack.c.l.b16 %v640
        %v735 = vunpack.c.h.b16 %v640
        %v736 = vunpack.c.l.b16 %v641
        %v737 = vunpack.c.l.b16 %v642
        %v738 = vunpack.c.h.b16 %v642
        %v739 = vunpack.c.l.b16 %v643
        %v740 = vunpack.c.l.b16 %v644
        %v741 = vunpack.c.h.b16 %v644
        %v742 = vunpack.c.l.b16 %v645
        %v743 = vpack.c.b16 %v698, %v695
        %v744 = vpack.c.b16 %v699, %v696
        %v745 = vpack.c.b16 %v700, %v697
        %v746 = vpack.c.b16 %v704, %v701
        %v747 = vpack.c.b16 %v705, %v702
        %v748 = vpack.c.b16 %v706, %v703
        %v749 = vpack.c.b16 %v710, %v707
        %v750 = vpack.c.b16 %v711, %v708
        %v751 = vpack.c.b16 %v712, %v709
        %v752 = vpack.c.b16 %v716, %v713
        %v753 = vpack.c.b16 %v717, %v714
        %v754 = vpack.c.b16 %v718, %v715
        %v755 = vpack.c.b16 %v722, %v719
        %v756 = vpack.c.b16 %v723, %v720
        %v757 = vpack.c.b16 %v724, %v721
        %v758 = vpack.c.b16 %v728, %v725
        %v759 = vpack.c.b16 %v729, %v726
        %v760 = vpack.c.b16 %v730, %v727
        %v761 = vpack.c.b16 %v734, %v731
        %v762 = vpack.c.b16 %v735, %v732
        %v763 = vpack.c.b16 %v736, %v733
        %v764 = vpack.c.b16 %v740, %v737
        %v765 = vpack.c.b16 %v741, %v738
        %v766 = vpack.c.b16 %v742, %v739
        %791 = vmatprep.subr.bf16.mxu0 %v744
        %792 = vmatpush1.bf16.msra.mxu0 %v743
        %793 = vmatprep.subr.bf16.mxu0 %v747
        %794 = vmatpush1.bf16.msra.mxu0 %v746
        %795 = vmatprep.subr.bf16.mxu0 %v750
        %796 = vmatpush1.bf16.msra.mxu0 %v749
        %797 = vmatprep.subr.bf16.mxu0 %v753
        %798 = vmatpush1.bf16.msra.mxu0 %v752
        %799 = vmatprep.subr.bf16.mxu0 %v756
        %800 = vmatpush1.bf16.msra.mxu0 %v755
        %801 = vmatprep.subr.bf16.mxu0 %v759
        %802 = vmatpush1.bf16.msra.mxu0 %v758
        %803 = vmatprep.subr.bf16.mxu0 %v762
        %804 = vmatpush1.bf16.msra.mxu0 %v761
        %805 = vmatprep.subr.bf16.mxu0 %v765
        %806 = vmatpush1.bf16.msra.mxu0 %v764
        %807 = vmatprep.subr.bf16.mxu0 0
        %808 = vmatpush1.bf16.msra.mxu0 0
        %809 = vmatprep.subr.bf16.mxu0 0
        %810 = vmatpush1.bf16.msra.mxu0 0
        %811 = vmatprep.subr.bf16.mxu0 0
        %812 = vmatpush1.bf16.msra.mxu0 0
        %813 = vmatprep.subr.bf16.mxu0 0
        %814 = vmatpush1.bf16.msra.mxu0 0
        %815 = vmatprep.subr.bf16.mxu0 0
        %816 = vmatpush1.bf16.msra.mxu0 0
        %817 = vmatprep.subr.bf16.mxu0 0
        %818 = vmatpush1.bf16.msra.mxu0 0
        %819 = vmatprep.subr.bf16.mxu0 0
        %820 = vmatpush1.bf16.msra.mxu0 0
        %821 = vmatprep.subr.bf16.mxu0 0
        %822 = vmatpush1.bf16.msra.mxu0 0
        %823 = vmatprep.mubr.bf16.mxu0 0
        %824 = vmatmul.mubr.bf16.gmra.mrb[0].mxu0 %v613
        %v825 = vpop.f32.mrb[0].mxu0
        %v826 = vadd.f32 %v651, %v825
        %v827 = vpop.f32.mrb[0].mxu0
        %v828 = vadd.f32 %v655, %v827
        %v829 = vpop.f32.mrb[0].mxu0
        %v830 = vadd.f32 %v651, %v829
        %v831 = vpop.f32.mrb[0].mxu0
        %v832 = vadd.f32 %v655, %v831
        %833 = vdwg.mxu0
        %834 = vmatprep.subr.bf16.mxu0 0
        %835 = vmatpush1.bf16.msra.mxu0 %v745
        %836 = vmatprep.subr.bf16.mxu0 0
        %837 = vmatpush1.bf16.msra.mxu0 %v748
        %838 = vmatprep.subr.bf16.mxu0 0
        %839 = vmatpush1.bf16.msra.mxu0 %v751
        %840 = vmatprep.subr.bf16.mxu0 0
        %841 = vmatpush1.bf16.msra.mxu0 %v754
        %842 = vmatprep.subr.bf16.mxu0 0
        %843 = vmatpush1.bf16.msra.mxu0 %v757
        %844 = vmatprep.subr.bf16.mxu0 0
        %845 = vmatpush1.bf16.msra.mxu0 %v760
        %846 = vmatprep.subr.bf16.mxu0 0
        %847 = vmatpush1.bf16.msra.mxu0 %v763
        %848 = vmatprep.subr.bf16.mxu0 0
        %849 = vmatpush1.bf16.msra.mxu0 %v766
        %850 = vmatprep.subr.bf16.mxu0 0
        %851 = vmatpush1.bf16.msra.mxu0 0
        %852 = vmatprep.subr.bf16.mxu0 0
        %853 = vmatpush1.bf16.msra.mxu0 0
        %854 = vmatprep.subr.bf16.mxu0 0
        %855 = vmatpush1.bf16.msra.mxu0 0
        %856 = vmatprep.subr.bf16.mxu0 0
        %857 = vmatpush1.bf16.msra.mxu0 0
        %858 = vmatprep.subr.bf16.mxu0 0
        %859 = vmatpush1.bf16.msra.mxu0 0
        %860 = vmatprep.subr.bf16.mxu0 0
        %861 = vmatpush1.bf16.msra.mxu0 0
        %862 = vmatprep.subr.bf16.mxu0 0
        %863 = vmatpush1.bf16.msra.mxu0 0
        %864 = vmatprep.subr.bf16.mxu0 0
        %865 = vmatpush1.bf16.msra.mxu0 0
        %866 = vmatprep.mubr.bf16.mxu0 0
        %867 = vmatmul.mubr.bf16.gmra.mrb[0].mxu0 %v613
        %v868 = vpop.f32.mrb[0].mxu0
        %v869 = vadd.f32 %v659, %v868
        %v870 = vpop.f32.mrb[0].mxu0
        %v871 = vpop.f32.mrb[0].mxu0
        %v872 = vadd.f32 %v659, %v871
        %v873 = vpop.f32.mrb[0].mxu0
        %874 = vdwg.mxu0
        %v875 = vmul.f32 %v826, %v828
        %v876 = vmul.f32 %v830, %v828
        %v877 = vmul.f32 %v826, %v832
        %v878 = vmul.f32 %v830, %v832
        %v879 = vpack.c.bf16 %v876, %v875
        %v880 = vpack.c.bf16 %v878, %v877
        %v897 = vunpack.c.l.b16 %v594
        %v898 = vunpack.c.l.b16 %v595
        %v899 = vunpack.c.l.b16 %v596
        %v900 = vunpack.c.l.b16 %v597
        %v901 = vunpack.c.l.b16 %v598
        %v902 = vunpack.c.l.b16 %v599
        %v903 = vunpack.c.l.b16 %v600
        %v904 = vunpack.c.l.b16 %v601
        %v905 = vunpack.c.l.b16 %v602
        %v906 = vunpack.c.l.b16 %v603
        %v907 = vunpack.c.l.b16 %v604
        %v908 = vunpack.c.l.b16 %v605
        %v909 = vunpack.c.l.b16 %v606
        %v910 = vunpack.c.l.b16 %v607
        %v911 = vunpack.c.l.b16 %v608
        %v912 = vunpack.c.l.b16 %v609
        %v913 = vpack.c.b16 %v898, %v897
        %v914 = vpack.c.b16 %v900, %v899
        %v915 = vpack.c.b16 %v902, %v901
        %v916 = vpack.c.b16 %v904, %v903
        %v917 = vpack.c.b16 %v906, %v905
        %v918 = vpack.c.b16 %v908, %v907
        %v919 = vpack.c.b16 %v910, %v909
        %v920 = vpack.c.b16 %v912, %v911
        %929 = vmatprep.subr.bf16.mxu0 0
        %930 = vmatpush1.bf16.msra.mxu0 %v913
        %931 = vmatprep.subr.bf16.mxu0 0
        %932 = vmatpush1.bf16.msra.mxu0 %v914
        %933 = vmatprep.subr.bf16.mxu0 0
        %934 = vmatpush1.bf16.msra.mxu0 %v915
        %935 = vmatprep.subr.bf16.mxu0 0
        %936 = vmatpush1.bf16.msra.mxu0 %v916
        %937 = vmatprep.subr.bf16.mxu0 0
        %938 = vmatpush1.bf16.msra.mxu0 %v917
        %939 = vmatprep.subr.bf16.mxu0 0
        %940 = vmatpush1.bf16.msra.mxu0 %v918
        %941 = vmatprep.subr.bf16.mxu0 0
        %942 = vmatpush1.bf16.msra.mxu0 %v919
        %943 = vmatprep.subr.bf16.mxu0 0
        %944 = vmatpush1.bf16.msra.mxu0 %v920
        %945 = vmatprep.subr.bf16.mxu0 0
        %946 = vmatpush1.bf16.msra.mxu0 0
        %947 = vmatprep.subr.bf16.mxu0 0
        %948 = vmatpush1.bf16.msra.mxu0 0
        %949 = vmatprep.subr.bf16.mxu0 0
        %950 = vmatpush1.bf16.msra.mxu0 0
        %951 = vmatprep.subr.bf16.mxu0 0
        %952 = vmatpush1.bf16.msra.mxu0 0
        %953 = vmatprep.subr.bf16.mxu0 0
        %954 = vmatpush1.bf16.msra.mxu0 0
        %955 = vmatprep.subr.bf16.mxu0 0
        %956 = vmatpush1.bf16.msra.mxu0 0
        %957 = vmatprep.subr.bf16.mxu0 0
        %958 = vmatpush1.bf16.msra.mxu0 0
        %959 = vmatprep.subr.bf16.mxu0 0
        %960 = vmatpush1.bf16.msra.mxu0 0
        %961 = vmatprep.mubr.bf16.mxu0 0
        %962 = vmatmul.mubr.bf16.gmra.mrb[0].mxu0 %v879
        %v963 = vpop.f32.mrb[0].mxu0
        %v964 = vadd.f32 0.0, %v963
        %v965 = vpop.f32.mrb[0].mxu0
        %v966 = vpop.f32.mrb[0].mxu0
        %v967 = vadd.f32 0.0, %v966
        %v968 = vpop.f32.mrb[0].mxu0
        %969 = vmatprep.mubr.bf16.mxu0 0
        %970 = vmatmul.mubr.bf16.gmra.mrb[0].mxu0 %v880
        %v971 = vpop.f32.mrb[0].mxu0
        %v972 = vadd.f32 0.0, %v971
        %v973 = vpop.f32.mrb[0].mxu0
        %v974 = vpop.f32.mrb[0].mxu0
        %v975 = vadd.f32 0.0, %v974
        %v976 = vpop.f32.mrb[0].mxu0
        %977 = vdwg.mxu0
        %v978 = vsub.f32 %v972, %v964
        %v979 = vsub.f32 %v975, %v967
        %v980 = vmul.f32 %v978, 1.442695
        %v981 = vpow.pop %v980
        %v982 = vmul.f32 %v979, 1.442695
        %v983 = vpow.pop %v982
        %v984 = vadd.f32 %v981, 1.0
        %v985 = vadd.f32 %v983, 1.0
        %v986 = vrcp.pop %v984
        %v987 = vrcp.pop %v985
        %v988 = vsub.f32 1.0, %v986
        %v989 = vsub.f32 1.0, %v987
        %v990 = vpack.c.bf16 %v987, %v986
        %v991 = vpack.c.bf16 %v989, %v988
        %vm992 = vcmask 31744
        %v994 = vsel %vm992, %v990, 0
        %v997 = vsel %vm992, %v991, 0
        %vm999 = vcmask 1041408
        %v1001 = vsel %vm999, %v610, 0
        %1003 = vmatprep.subr.bf16.mxu0 0
        %1004 = vmatpush1.bf16.msra.mxu0 %v1001
        %1005 = vmatprep.subr.bf16.mxu0 0
        %1006 = vmatpush1.bf16.msra.mxu0 0
        %1007 = vmatprep.subr.bf16.mxu0 0
        %1008 = vmatpush1.bf16.msra.mxu0 0
        %1009 = vmatprep.subr.bf16.mxu0 0
        %1010 = vmatpush1.bf16.msra.mxu0 0
        %1011 = vmatprep.subr.bf16.mxu0 0
        %1012 = vmatpush1.bf16.msra.mxu0 0
        %1013 = vmatprep.subr.bf16.mxu0 0
        %1014 = vmatpush1.bf16.msra.mxu0 0
        %1015 = vmatprep.subr.bf16.mxu0 0
        %1016 = vmatpush1.bf16.msra.mxu0 0
        %1017 = vmatprep.subr.bf16.mxu0 0
        %1018 = vmatpush1.bf16.msra.mxu0 0
        %1019 = vmatprep.subr.bf16.mxu0 0
        %1020 = vmatpush1.bf16.msra.mxu0 0
        %1021 = vmatprep.subr.bf16.mxu0 0
        %1022 = vmatpush1.bf16.msra.mxu0 0
        %1023 = vmatprep.subr.bf16.mxu0 0
        %1024 = vmatpush1.bf16.msra.mxu0 0
        %1025 = vmatprep.subr.bf16.mxu0 0
        %1026 = vmatpush1.bf16.msra.mxu0 0
        %1027 = vmatprep.subr.bf16.mxu0 0
        %1028 = vmatpush1.bf16.msra.mxu0 0
        %1029 = vmatprep.subr.bf16.mxu0 0
        %1030 = vmatpush1.bf16.msra.mxu0 0
        %1031 = vmatprep.subr.bf16.mxu0 0
        %1032 = vmatpush1.bf16.msra.mxu0 0
        %1033 = vmatprep.subr.bf16.mxu0 0
        %1034 = vmatpush1.bf16.msra.mxu0 0
        %1035 = vmatprep.mubr.bf16.mxu0 0
        %1036 = vmatmul.mubr.bf16.gmra.mrb[0].mxu0 %v994
        %v1037 = vpop.f32.mrb[0].mxu0
        %v1038 = vadd.f32 0.0, %v1037
        %v1039 = vpop.f32.mrb[0].mxu0
        %v1040 = vpop.f32.mrb[0].mxu0
        %v1041 = vadd.f32 0.0, %v1040
        %v1042 = vpop.f32.mrb[0].mxu0
        %1043 = vmatprep.mubr.bf16.mxu0 0
        %1044 = vmatmul.mubr.bf16.gmra.mrb[0].mxu0 %v997
        %v1045 = vpop.f32.mrb[0].mxu0
        %v1046 = vadd.f32 0.0, %v1045
        %v1047 = vpop.f32.mrb[0].mxu0
        %v1048 = vpop.f32.mrb[0].mxu0
        %v1049 = vadd.f32 0.0, %v1048
        %v1050 = vpop.f32.mrb[0].mxu0
        %1051 = vdwg.mxu0
        %v1052 = vmul.f32 %v1038, %v869
        %v1053 = vmul.f32 %v1046, %v872
        %v1054 = vadd.f32 %v1052, %v1053
        %v1055 = vmul.f32 %v1041, %v869
        %v1056 = vmul.f32 %v1049, %v872
        %v1057 = vadd.f32 %v1055, %v1056
        %v1058 = vpack.c.bf16 %v1057, %v1054
        %v1059 = vld [vmem:[#allocation5] sm:$0xf]
        %v1060 = vld [vmem:[#allocation5 + $0x4] sm:$0xf]
        %v1061 = vld [vmem:[#allocation5 + $0x8] sm:$0xf]
        %v1062 = vld [vmem:[#allocation5 + $0xc] sm:$0xf]
        %v1063 = vld [vmem:[#allocation5 + $0x10] sm:$0xf]
        %v1064 = vld [vmem:[#allocation5 + $0x14] sm:$0xf]
        %v1065 = vld [vmem:[#allocation5 + $0x18] sm:$0xf]
        %v1066 = vld [vmem:[#allocation5 + $0x1c] sm:$0xf]
        %v1067 = vld [vmem:[#allocation5 + $0x20] sm:$0xf]
        %v1068 = vld [vmem:[#allocation5 + $0x24] sm:$0xf]
        %v1069 = vld [vmem:[#allocation5 + $0x28] sm:$0xf]
        %v1070 = vld [vmem:[#allocation5 + $0x2c] sm:$0xf]
        %v1071 = vld [vmem:[#allocation5 + $0x30] sm:$0xf]
        %v1072 = vld [vmem:[#allocation5 + $0x34] sm:$0xf]
        %v1073 = vld [vmem:[#allocation5 + $0x38] sm:$0xf]
        %v1074 = vld [vmem:[#allocation5 + $0x3c] sm:$0xf]
        %v1075 = vld [vmem:[%s7] sm:$0x1]
        %v1077 = vlaneseq
        %v1078 = vshrl.u32 %v1077, 7
        %v1079 = vsub.s32 0, %v1078
        %v1080 = vrot.slane %v1075, %v1079
        %v1098 = vunpack.c.l.b16 %v1059
        %v1099 = vunpack.c.l.b16 %v1060
        %v1100 = vunpack.c.l.b16 %v1061
        %v1101 = vunpack.c.l.b16 %v1062
        %v1102 = vunpack.c.l.b16 %v1063
        %v1103 = vunpack.c.l.b16 %v1064
        %v1104 = vunpack.c.l.b16 %v1065
        %v1105 = vunpack.c.l.b16 %v1066
        %v1106 = vunpack.c.l.b16 %v1067
        %v1107 = vunpack.c.l.b16 %v1068
        %v1108 = vunpack.c.l.b16 %v1069
        %v1109 = vunpack.c.l.b16 %v1070
        %v1110 = vunpack.c.l.b16 %v1071
        %v1111 = vunpack.c.l.b16 %v1072
        %v1112 = vunpack.c.l.b16 %v1073
        %v1113 = vunpack.c.l.b16 %v1074
        %v1114 = vpack.c.b16 %v1099, %v1098
        %v1115 = vpack.c.b16 %v1101, %v1100
        %v1116 = vpack.c.b16 %v1103, %v1102
        %v1117 = vpack.c.b16 %v1105, %v1104
        %v1118 = vpack.c.b16 %v1107, %v1106
        %v1119 = vpack.c.b16 %v1109, %v1108
        %v1120 = vpack.c.b16 %v1111, %v1110
        %v1121 = vpack.c.b16 %v1113, %v1112
        %1130 = vmatprep.subr.bf16.mxu0 0
        %1131 = vmatpush1.bf16.msra.mxu0 %v1114
        %1132 = vmatprep.subr.bf16.mxu0 0
        %1133 = vmatpush1.bf16.msra.mxu0 %v1115
        %1134 = vmatprep.subr.bf16.mxu0 0
        %1135 = vmatpush1.bf16.msra.mxu0 %v1116
        %1136 = vmatprep.subr.bf16.mxu0 0
        %1137 = vmatpush1.bf16.msra.mxu0 %v1117
        %1138 = vmatprep.subr.bf16.mxu0 0
        %1139 = vmatpush1.bf16.msra.mxu0 %v1118
        %1140 = vmatprep.subr.bf16.mxu0 0
        %1141 = vmatpush1.bf16.msra.mxu0 %v1119
        %1142 = vmatprep.subr.bf16.mxu0 0
        %1143 = vmatpush1.bf16.msra.mxu0 %v1120
        %1144 = vmatprep.subr.bf16.mxu0 0
        %1145 = vmatpush1.bf16.msra.mxu0 %v1121
        %1146 = vmatprep.subr.bf16.mxu0 0
        %1147 = vmatpush1.bf16.msra.mxu0 0
        %1148 = vmatprep.subr.bf16.mxu0 0
        %1149 = vmatpush1.bf16.msra.mxu0 0
        %1150 = vmatprep.subr.bf16.mxu0 0
        %1151 = vmatpush1.bf16.msra.mxu0 0
        %1152 = vmatprep.subr.bf16.mxu0 0
        %1153 = vmatpush1.bf16.msra.mxu0 0
        %1154 = vmatprep.subr.bf16.mxu0 0
        %1155 = vmatpush1.bf16.msra.mxu0 0
        %1156 = vmatprep.subr.bf16.mxu0 0
        %1157 = vmatpush1.bf16.msra.mxu0 0
        %1158 = vmatprep.subr.bf16.mxu0 0
        %1159 = vmatpush1.bf16.msra.mxu0 0
        %1160 = vmatprep.subr.bf16.mxu0 0
        %1161 = vmatpush1.bf16.msra.mxu0 0
        %1162 = vmatprep.mubr.bf16.mxu0 0
        %1163 = vmatmul.mubr.bf16.gmra.mrb[0].mxu0 %v1058
        %v1164 = vpop.f32.mrb[0].mxu0
        %v1165 = vadd.f32 %v1080, %v1164
        %v1166 = vpop.f32.mrb[0].mxu0
        %v1167 = vpop.f32.mrb[0].mxu0
        %v1168 = vadd.f32 %v1080, %v1167
        %v1169 = vpop.f32.mrb[0].mxu0
        %1170 = vdwg.mxu0
        %v1171 = vadd.f32 %v611, %v1165
        %v1172 = vadd.f32 %v612, %v1168
        %v1173 = vld [vmem:[%s12] sm:$0x1]
        %v1174 = vld [vmem:[%s13] sm:$0x1]
        %1175 = vadd.xlane.f32.xlu0 %v1171
        %v1176 = vpop.xlane.xlu0 %1175
        %1177 = vadd.xlane.f32.xlu0 %v1172
        %v1178 = vpop.xlane.xlu0 %1177
        %v1179 = vrcp.pop 128.0
        %v1180 = vmul.f32 %v1176, %v1179
        %v1181 = vmul.f32 %v1178, %v1179
        %v1182 = vsub.f32 %v1171, %v1180
        %v1183 = vsub.f32 %v1172, %v1181
        %v1184 = vmul.f32 %v1182, %v1182
        %v1185 = vmul.f32 %v1183, %v1183
        %1186 = vadd.xlane.f32.xlu0 %v1184
        %v1187 = vpop.xlane.xlu0 %1186
        %1188 = vadd.xlane.f32.xlu0 %v1185
        %v1189 = vpop.xlane.xlu0 %1188
        %v1190 = vmul.f32 %v1187, %v1179
        %v1191 = vmul.f32 %v1189, %v1179
        %v1192 = vadd.f32 %v1190, 1e-05
        %v1193 = vadd.f32 %v1191, 1e-05
        %v1194 = vrsqrt.pop %v1192
        %v1195 = vrsqrt.pop %v1193
        %v1196 = vmul.f32 %v1182, %v1194
        %v1197 = vmul.f32 %v1183, %v1195
        %v1199 = vlaneseq
        %v1200 = vshrl.u32 %v1199, 7
        %v1201 = vsub.s32 0, %v1200
        %v1202 = vrot.slane %v1173, %v1201
        %v1204 = vmul.f32 %v1196, %v1202
        %v1205 = vmul.f32 %v1197, %v1202
        %v1207 = vlaneseq
        %v1208 = vshrl.u32 %v1207, 7
        %v1209 = vsub.s32 0, %v1208
        %v1210 = vrot.slane %v1174, %v1209
        %v1212 = vadd.f32 %v1204, %v1210
        %v1213 = vadd.f32 %v1205, %v1210
        %v1214 = vpack.c.bf16 %v1213, %v1212
        %v1215 = vld [vmem:[#allocation7] sm:$0xff]
        %v1216 = vld [vmem:[#allocation7 + $0x8] sm:$0xff]
        %v1217 = vld [vmem:[#allocation7 + $0x10] sm:$0xff]
        %v1218 = vld [vmem:[#allocation7 + $0x18] sm:$0xff]
        %v1219 = vld [vmem:[#allocation7 + $0x20] sm:$0xff]
        %v1220 = vld [vmem:[#allocation7 + $0x28] sm:$0xff]
        %v1221 = vld [vmem:[#allocation7 + $0x30] sm:$0xff]
        %v1222 = vld [vmem:[#allocation7 + $0x38] sm:$0xff]
        %v1223 = vld [vmem:[#allocation7 + $0x40] sm:$0xff]
        %v1224 = vld [vmem:[#allocation7 + $0x48] sm:$0xff]
        %v1225 = vld [vmem:[#allocation7 + $0x50] sm:$0xff]
        %v1226 = vld [vmem:[#allocation7 + $0x58] sm:$0xff]
        %v1227 = vld [vmem:[#allocation7 + $0x60] sm:$0xff]
        %v1228 = vld [vmem:[#allocation7 + $0x68] sm:$0xff]
        %v1229 = vld [vmem:[#allocation7 + $0x70] sm:$0xff]
        %v1230 = vld [vmem:[#allocation7 + $0x78] sm:$0xff]
        %v1231 = vld [vmem:[%s9] sm:$0x3]
        %v1233 = vlaneseq
        %v1234 = vshrl.u32 %v1233, 7
        %v1235 = vsub.s32 0, %v1234
        %v1236 = vrot.slane %v1231, %v1235
        %v1237 = vlaneseq
        %v1238 = vshrl.u32 %v1237, 7
        %v1239 = vsub.s32 1, %v1238
        %v1240 = vrot.slane %v1231, %v1239
        %v1259 = vunpack.c.l.b16 %v1215
        %v1260 = vunpack.c.h.b16 %v1215
        %v1261 = vunpack.c.l.b16 %v1216
        %v1262 = vunpack.c.h.b16 %v1216
        %v1263 = vunpack.c.l.b16 %v1217
        %v1264 = vunpack.c.h.b16 %v1217
        %v1265 = vunpack.c.l.b16 %v1218
        %v1266 = vunpack.c.h.b16 %v1218
        %v1267 = vunpack.c.l.b16 %v1219
        %v1268 = vunpack.c.h.b16 %v1219
        %v1269 = vunpack.c.l.b16 %v1220
        %v1270 = vunpack.c.h.b16 %v1220
        %v1271 = vunpack.c.l.b16 %v1221
        %v1272 = vunpack.c.h.b16 %v1221
        %v1273 = vunpack.c.l.b16 %v1222
        %v1274 = vunpack.c.h.b16 %v1222
        %v1275 = vunpack.c.l.b16 %v1223
        %v1276 = vunpack.c.h.b16 %v1223
        %v1277 = vunpack.c.l.b16 %v1224
        %v1278 = vunpack.c.h.b16 %v1224
        %v1279 = vunpack.c.l.b16 %v1225
        %v1280 = vunpack.c.h.b16 %v1225
        %v1281 = vunpack.c.l.b16 %v1226
        %v1282 = vunpack.c.h.b16 %v1226
        %v1283 = vunpack.c.l.b16 %v1227
        %v1284 = vunpack.c.h.b16 %v1227
        %v1285 = vunpack.c.l.b16 %v1228
        %v1286 = vunpack.c.h.b16 %v1228
        %v1287 = vunpack.c.l.b16 %v1229
        %v1288 = vunpack.c.h.b16 %v1229
        %v1289 = vunpack.c.l.b16 %v1230
        %v1290 = vunpack.c.h.b16 %v1230
        %v1291 = vpack.c.b16 %v1261, %v1259
        %v1292 = vpack.c.b16 %v1262, %v1260
        %v1293 = vpack.c.b16 %v1265, %v1263
        %v1294 = vpack.c.b16 %v1266, %v1264
        %v1295 = vpack.c.b16 %v1269, %v1267
        %v1296 = vpack.c.b16 %v1270, %v1268
        %v1297 = vpack.c.b16 %v1273, %v1271
        %v1298 = vpack.c.b16 %v1274, %v1272
        %v1299 = vpack.c.b16 %v1277, %v1275
        %v1300 = vpack.c.b16 %v1278, %v1276
        %v1301 = vpack.c.b16 %v1281, %v1279
        %v1302 = vpack.c.b16 %v1282, %v1280
        %v1303 = vpack.c.b16 %v1285, %v1283
        %v1304 = vpack.c.b16 %v1286, %v1284
        %v1305 = vpack.c.b16 %v1289, %v1287
        %v1306 = vpack.c.b16 %v1290, %v1288
        %1323 = vmatprep.subr.bf16.mxu0 %v1292
        %1324 = vmatpush1.bf16.msra.mxu0 %v1291
        %1325 = vmatprep.subr.bf16.mxu0 %v1294
        %1326 = vmatpush1.bf16.msra.mxu0 %v1293
        %1327 = vmatprep.subr.bf16.mxu0 %v1296
        %1328 = vmatpush1.bf16.msra.mxu0 %v1295
        %1329 = vmatprep.subr.bf16.mxu0 %v1298
        %1330 = vmatpush1.bf16.msra.mxu0 %v1297
        %1331 = vmatprep.subr.bf16.mxu0 %v1300
        %1332 = vmatpush1.bf16.msra.mxu0 %v1299
        %1333 = vmatprep.subr.bf16.mxu0 %v1302
        %1334 = vmatpush1.bf16.msra.mxu0 %v1301
        %1335 = vmatprep.subr.bf16.mxu0 %v1304
        %1336 = vmatpush1.bf16.msra.mxu0 %v1303
        %1337 = vmatprep.subr.bf16.mxu0 %v1306
        %1338 = vmatpush1.bf16.msra.mxu0 %v1305
        %1339 = vmatprep.subr.bf16.mxu0 0
        %1340 = vmatpush1.bf16.msra.mxu0 0
        %1341 = vmatprep.subr.bf16.mxu0 0
        %1342 = vmatpush1.bf16.msra.mxu0 0
        %1343 = vmatprep.subr.bf16.mxu0 0
        %1344 = vmatpush1.bf16.msra.mxu0 0
        %1345 = vmatprep.subr.bf16.mxu0 0
        %1346 = vmatpush1.bf16.msra.mxu0 0
        %1347 = vmatprep.subr.bf16.mxu0 0
        %1348 = vmatpush1.bf16.msra.mxu0 0
        %1349 = vmatprep.subr.bf16.mxu0 0
        %1350 = vmatpush1.bf16.msra.mxu0 0
        %1351 = vmatprep.subr.bf16.mxu0 0
        %1352 = vmatpush1.bf16.msra.mxu0 0
        %1353 = vmatprep.subr.bf16.mxu0 0
        %1354 = vmatpush1.bf16.msra.mxu0 0
        %1355 = vmatprep.mubr.bf16.mxu0 0
        %1356 = vmatmul.mubr.bf16.gmra.mrb[0].mxu0 %v1214
        %v1357 = vpop.f32.mrb[0].mxu0
        %v1358 = vadd.f32 %v1236, %v1357
        %v1359 = vpop.f32.mrb[0].mxu0
        %v1360 = vadd.f32 %v1240, %v1359
        %v1361 = vpop.f32.mrb[0].mxu0
        %v1362 = vadd.f32 %v1236, %v1361
        %v1363 = vpop.f32.mrb[0].mxu0
        %v1364 = vadd.f32 %v1240, %v1363
        %1365 = vdwg.mxu0
        %v1366 = vmax.f32 %v1358, 0.0
        %v1367 = vmax.f32 %v1360, 0.0
        %v1368 = vmax.f32 %v1362, 0.0
        %v1369 = vmax.f32 %v1364, 0.0
        %v1370 = vpack.c.bf16 %v1368, %v1366
        %v1371 = vpack.c.bf16 %v1369, %v1367
        %v1372 = vld [vmem:[#allocation8] sm:$0xf]
        %v1373 = vld [vmem:[#allocation8 + $0x4] sm:$0xf]
        %v1374 = vld [vmem:[#allocation8 + $0x8] sm:$0xf]
        %v1375 = vld [vmem:[#allocation8 + $0xc] sm:$0xf]
        %v1376 = vld [vmem:[#allocation8 + $0x10] sm:$0xf]
        %v1377 = vld [vmem:[#allocation8 + $0x14] sm:$0xf]
        %v1378 = vld [vmem:[#allocation8 + $0x18] sm:$0xf]
        %v1379 = vld [vmem:[#allocation8 + $0x1c] sm:$0xf]
        %v1380 = vld [vmem:[#allocation8 + $0x20] sm:$0xf]
        %v1381 = vld [vmem:[#allocation8 + $0x24] sm:$0xf]
        %v1382 = vld [vmem:[#allocation8 + $0x28] sm:$0xf]
        %v1383 = vld [vmem:[#allocation8 + $0x2c] sm:$0xf]
        %v1384 = vld [vmem:[#allocation8 + $0x30] sm:$0xf]
        %v1385 = vld [vmem:[#allocation8 + $0x34] sm:$0xf]
        %v1386 = vld [vmem:[#allocation8 + $0x38] sm:$0xf]
        %v1387 = vld [vmem:[#allocation8 + $0x3c] sm:$0xf]
        %v1388 = vld [vmem:[#allocation8 + $0x40] sm:$0xf]
        %v1389 = vld [vmem:[#allocation8 + $0x44] sm:$0xf]
        %v1390 = vld [vmem:[#allocation8 + $0x48] sm:$0xf]
        %v1391 = vld [vmem:[#allocation8 + $0x4c] sm:$0xf]
        %v1392 = vld [vmem:[#allocation8 + $0x50] sm:$0xf]
        %v1393 = vld [vmem:[#allocation8 + $0x54] sm:$0xf]
        %v1394 = vld [vmem:[#allocation8 + $0x58] sm:$0xf]
        %v1395 = vld [vmem:[#allocation8 + $0x5c] sm:$0xf]
        %v1396 = vld [vmem:[#allocation8 + $0x60] sm:$0xf]
        %v1397 = vld [vmem:[#allocation8 + $0x64] sm:$0xf]
        %v1398 = vld [vmem:[#allocation8 + $0x68] sm:$0xf]
        %v1399 = vld [vmem:[#allocation8 + $0x6c] sm:$0xf]
        %v1400 = vld [vmem:[#allocation8 + $0x70] sm:$0xf]
        %v1401 = vld [vmem:[#allocation8 + $0x74] sm:$0xf]
        %v1402 = vld [vmem:[#allocation8 + $0x78] sm:$0xf]
        %v1403 = vld [vmem:[#allocation8 + $0x7c] sm:$0xf]
        %v1404 = vld [vmem:[%s11] sm:$0x1]
        %v1406 = vlaneseq
        %v1407 = vshrl.u32 %v1406, 7
        %v1408 = vsub.s32 0, %v1407
        %v1409 = vrot.slane %v1404, %v1408
        %v1443 = vunpack.c.l.b16 %v1372
        %v1444 = vunpack.c.l.b16 %v1373
        %v1445 = vunpack.c.l.b16 %v1374
        %v1446 = vunpack.c.l.b16 %v1375
        %v1447 = vunpack.c.l.b16 %v1376
        %v1448 = vunpack.c.l.b16 %v1377
        %v1449 = vunpack.c.l.b16 %v1378
        %v1450 = vunpack.c.l.b16 %v1379
        %v1451 = vunpack.c.l.b16 %v1380
        %v1452 = vunpack.c.l.b16 %v1381
        %v1453 = vunpack.c.l.b16 %v1382
        %v1454 = vunpack.c.l.b16 %v1383
        %v1455 = vunpack.c.l.b16 %v1384
        %v1456 = vunpack.c.l.b16 %v1385
        %v1457 = vunpack.c.l.b16 %v1386
        %v1458 = vunpack.c.l.b16 %v1387
        %v1459 = vunpack.c.l.b16 %v1388
        %v1460 = vunpack.c.l.b16 %v1389
        %v1461 = vunpack.c.l.b16 %v1390
        %v1462 = vunpack.c.l.b16 %v1391
        %v1463 = vunpack.c.l.b16 %v1392
        %v1464 = vunpack.c.l.b16 %v1393
        %v1465 = vunpack.c.l.b16 %v1394
        %v1466 = vunpack.c.l.b16 %v1395
        %v1467 = vunpack.c.l.b16 %v1396
        %v1468 = vunpack.c.l.b16 %v1397
        %v1469 = vunpack.c.l.b16 %v1398
        %v1470 = vunpack.c.l.b16 %v1399
        %v1471 = vunpack.c.l.b16 %v1400
        %v1472 = vunpack.c.l.b16 %v1401
        %v1473 = vunpack.c.l.b16 %v1402
        %v1474 = vunpack.c.l.b16 %v1403
        %v1475 = vpack.c.b16 %v1444, %v1443
        %v1476 = vpack.c.b16 %v1446, %v1445
        %v1477 = vpack.c.b16 %v1448, %v1447
        %v1478 = vpack.c.b16 %v1450, %v1449
        %v1479 = vpack.c.b16 %v1452, %v1451
        %v1480 = vpack.c.b16 %v1454, %v1453
        %v1481 = vpack.c.b16 %v1456, %v1455
        %v1482 = vpack.c.b16 %v1458, %v1457
        %v1483 = vpack.c.b16 %v1460, %v1459
        %v1484 = vpack.c.b16 %v1462, %v1461
        %v1485 = vpack.c.b16 %v1464, %v1463
        %v1486 = vpack.c.b16 %v1466, %v1465
        %v1487 = vpack.c.b16 %v1468, %v1467
        %v1488 = vpack.c.b16 %v1470, %v1469
        %v1489 = vpack.c.b16 %v1472, %v1471
        %v1490 = vpack.c.b16 %v1474, %v1473
        %1507 = vmatprep.subr.bf16.mxu0 0
        %1508 = vmatpush1.bf16.msra.mxu0 %v1475
        %1509 = vmatprep.subr.bf16.mxu0 0
        %1510 = vmatpush1.bf16.msra.mxu0 %v1476
        %1511 = vmatprep.subr.bf16.mxu0 0
        %1512 = vmatpush1.bf16.msra.mxu0 %v1477
        %1513 = vmatprep.subr.bf16.mxu0 0
        %1514 = vmatpush1.bf16.msra.mxu0 %v1478
        %1515 = vmatprep.subr.bf16.mxu0 0
        %1516 = vmatpush1.bf16.msra.mxu0 %v1479
        %1517 = vmatprep.subr.bf16.mxu0 0
        %1518 = vmatpush1.bf16.msra.mxu0 %v1480
        %1519 = vmatprep.subr.bf16.mxu0 0
        %1520 = vmatpush1.bf16.msra.mxu0 %v1481
        %1521 = vmatprep.subr.bf16.mxu0 0
        %1522 = vmatpush1.bf16.msra.mxu0 %v1482
        %1523 = vmatprep.subr.bf16.mxu0 0
        %1524 = vmatpush1.bf16.msra.mxu0 %v1483
        %1525 = vmatprep.subr.bf16.mxu0 0
        %1526 = vmatpush1.bf16.msra.mxu0 %v1484
        %1527 = vmatprep.subr.bf16.mxu0 0
        %1528 = vmatpush1.bf16.msra.mxu0 %v1485
        %1529 = vmatprep.subr.bf16.mxu0 0
        %1530 = vmatpush1.bf16.msra.mxu0 %v1486
        %1531 = vmatprep.subr.bf16.mxu0 0
        %1532 = vmatpush1.bf16.msra.mxu0 %v1487
        %1533 = vmatprep.subr.bf16.mxu0 0
        %1534 = vmatpush1.bf16.msra.mxu0 %v1488
        %1535 = vmatprep.subr.bf16.mxu0 0
        %1536 = vmatpush1.bf16.msra.mxu0 %v1489
        %1537 = vmatprep.subr.bf16.mxu0 0
        %1538 = vmatpush1.bf16.msra.mxu0 %v1490
        %1539 = vmatprep.mubr.bf16.mxu0 %v1371
        %1540 = vmatmul.mubr.bf16.gmra.mrb[0].mxu0 %v1370
        %v1541 = vpop.f32.mrb[0].mxu0
        %v1542 = vadd.f32 %v1409, %v1541
        %v1543 = vpop.f32.mrb[0].mxu0
        %v1544 = vpop.f32.mrb[0].mxu0
        %v1545 = vadd.f32 %v1409, %v1544
        %v1546 = vpop.f32.mrb[0].mxu0
        %1547 = vdwg.mxu0
        %v1548 = vadd.f32 %v1212, %v1542
        %v1549 = vadd.f32 %v1213, %v1545
        %v1550 = vld [vmem:[%s14] sm:$0x1]
        %v1551 = vld [vmem:[%s15] sm:$0x1]
        %1552 = vadd.xlane.f32.xlu0 %v1548
        %v1553 = vpop.xlane.xlu0 %1552
        %1554 = vadd.xlane.f32.xlu0 %v1549
        %v1555 = vpop.xlane.xlu0 %1554
        %v1556 = vmul.f32 %v1553, %v1179
        %v1557 = vmul.f32 %v1555, %v1179
        %v1558 = vsub.f32 %v1548, %v1556
        %v1559 = vsub.f32 %v1549, %v1557
        %v1560 = vmul.f32 %v1558, %v1558
        %v1561 = vmul.f32 %v1559, %v1559
        %1562 = vadd.xlane.f32.xlu0 %v1560
        %v1563 = vpop.xlane.xlu0 %1562
        %1564 = vadd.xlane.f32.xlu0 %v1561
        %v1565 = vpop.xlane.xlu0 %1564
        %v1566 = vmul.f32 %v1563, %v1179
        %v1567 = vmul.f32 %v1565, %v1179
        %v1568 = vadd.f32 %v1566, 1e-05
        %v1569 = vadd.f32 %v1567, 1e-05
        %v1570 = vrsqrt.pop %v1568
        %v1571 = vrsqrt.pop %v1569
        %v1572 = vmul.f32 %v1558, %v1570
        %v1573 = vmul.f32 %v1559, %v1571
        %v1575 = vlaneseq
        %v1576 = vshrl.u32 %v1575, 7
        %v1577 = vsub.s32 0, %v1576
        %v1578 = vrot.slane %v1550, %v1577
        %v1580 = vmul.f32 %v1572, %v1578
        %v1581 = vmul.f32 %v1573, %v1578
        %v1583 = vlaneseq
        %v1584 = vshrl.u32 %v1583, 7
        %v1585 = vsub.s32 0, %v1584
        %v1586 = vrot.slane %v1551, %v1585
        %v1588 = vadd.f32 %v1580, %v1586
        %v1589 = vadd.f32 %v1581, %v1586
        %v1590 = vpack.c.bf16 %v1589, %v1588
        %s1591 = scalar_lea.vmem [#allocation2], 192
        %v1592 = vld [vmem:[%s1591] sm:$0xff]
        %v1593 = vld [vmem:[%s1591 + $0x8] sm:$0xf]
        %v1594 = vld [vmem:[%s1591 + $0xc] sm:$0xff]
        %v1595 = vld [vmem:[%s1591 + $0x14] sm:$0xf]
        %v1596 = vld [vmem:[%s1591 + $0x18] sm:$0xff]
        %v1597 = vld [vmem:[%s1591 + $0x20] sm:$0xf]
        %v1598 = vld [vmem:[%s1591 + $0x24] sm:$0xff]
        %v1599 = vld [vmem:[%s1591 + $0x2c] sm:$0xf]
        %v1600 = vld [vmem:[%s1591 + $0x30] sm:$0xff]
        %v1601 = vld [vmem:[%s1591 + $0x38] sm:$0xf]
        %v1602 = vld [vmem:[%s1591 + $0x3c] sm:$0xff]
        %v1603 = vld [vmem:[%s1591 + $0x44] sm:$0xf]
        %v1604 = vld [vmem:[%s1591 + $0x48] sm:$0xff]
        %v1605 = vld [vmem:[%s1591 + $0x50] sm:$0xf]
        %v1606 = vld [vmem:[%s1591 + $0x54] sm:$0xff]
        %v1607 = vld [vmem:[%s1591 + $0x5c] sm:$0xf]
        %v1608 = vld [vmem:[%s1591 + $0x60] sm:$0xff]
        %v1609 = vld [vmem:[%s1591 + $0x68] sm:$0xf]
        %v1610 = vld [vmem:[%s1591 + $0x6c] sm:$0xff]
        %v1611 = vld [vmem:[%s1591 + $0x74] sm:$0xf]
        %v1612 = vld [vmem:[%s1591 + $0x78] sm:$0xff]
        %v1613 = vld [vmem:[%s1591 + $0x80] sm:$0xf]
        %v1614 = vld [vmem:[%s1591 + $0x84] sm:$0xff]
        %v1615 = vld [vmem:[%s1591 + $0x8c] sm:$0xf]
        %v1616 = vld [vmem:[%s1591 + $0x90] sm:$0xff]
        %v1617 = vld [vmem:[%s1591 + $0x98] sm:$0xf]
        %v1618 = vld [vmem:[%s1591 + $0x9c] sm:$0xff]
        %v1619 = vld [vmem:[%s1591 + $0xa4] sm:$0xf]
        %v1620 = vld [vmem:[%s1591 + $0xa8] sm:$0xff]
        %v1621 = vld [vmem:[%s1591 + $0xb0] sm:$0xf]
        %v1622 = vld [vmem:[%s1591 + $0xb4] sm:$0xff]
        %v1623 = vld [vmem:[%s1591 + $0xbc] sm:$0xf]
        %s1624 = scalar_lea.vmem %s5, 3
        %v1625 = vld [vmem:[%s1624] sm:$0x7]
        %v1627 = vlaneseq
        %v1628 = vshrl.u32 %v1627, 7
        %v1629 = vsub.s32 0, %v1628
        %v1630 = vrot.slane %v1625, %v1629
        %v1631 = vlaneseq
        %v1632 = vshrl.u32 %v1631, 7
        %v1633 = vsub.s32 1, %v1632
        %v1634 = vrot.slane %v1625, %v1633
        %v1635 = vlaneseq
        %v1636 = vshrl.u32 %v1635, 7
        %v1637 = vsub.s32 2, %v1636
        %v1638 = vrot.slane %v1625, %v1637
        %v1674 = vunpack.c.l.b16 %v1592
        %v1675 = vunpack.c.h.b16 %v1592
        %v1676 = vunpack.c.l.b16 %v1593
        %v1677 = vunpack.c.l.b16 %v1594
        %v1678 = vunpack.c.h.b16 %v1594
        %v1679 = vunpack.c.l.b16 %v1595
        %v1680 = vunpack.c.l.b16 %v1596
        %v1681 = vunpack.c.h.b16 %v1596
        %v1682 = vunpack.c.l.b16 %v1597
        %v1683 = vunpack.c.l.b16 %v1598
        %v1684 = vunpack.c.h.b16 %v1598
        %v1685 = vunpack.c.l.b16 %v1599
        %v1686 = vunpack.c.l.b16 %v1600
        %v1687 = vunpack.c.h.b16 %v1600
        %v1688 = vunpack.c.l.b16 %v1601
        %v1689 = vunpack.c.l.b16 %v1602
        %v1690 = vunpack.c.h.b16 %v1602
        %v1691 = vunpack.c.l.b16 %v1603
        %v1692 = vunpack.c.l.b16 %v1604
        %v1693 = vunpack.c.h.b16 %v1604
        %v1694 = vunpack.c.l.b16 %v1605
        %v1695 = vunpack.c.l.b16 %v1606
        %v1696 = vunpack.c.h.b16 %v1606
        %v1697 = vunpack.c.l.b16 %v1607
        %v1698 = vunpack.c.l.b16 %v1608
        %v1699 = vunpack.c.h.b16 %v1608
        %v1700 = vunpack.c.l.b16 %v1609
        %v1701 = vunpack.c.l.b16 %v1610
        %v1702 = vunpack.c.h.b16 %v1610
        %v1703 = vunpack.c.l.b16 %v1611
        %v1704 = vunpack.c.l.b16 %v1612
        %v1705 = vunpack.c.h.b16 %v1612
        %v1706 = vunpack.c.l.b16 %v1613
        %v1707 = vunpack.c.l.b16 %v1614
        %v1708 = vunpack.c.h.b16 %v1614
        %v1709 = vunpack.c.l.b16 %v1615
        %v1710 = vunpack.c.l.b16 %v1616
        %v1711 = vunpack.c.h.b16 %v1616
        %v1712 = vunpack.c.l.b16 %v1617
        %v1713 = vunpack.c.l.b16 %v1618
        %v1714 = vunpack.c.h.b16 %v1618
        %v1715 = vunpack.c.l.b16 %v1619
        %v1716 = vunpack.c.l.b16 %v1620
        %v1717 = vunpack.c.h.b16 %v1620
        %v1718 = vunpack.c.l.b16 %v1621
        %v1719 = vunpack.c.l.b16 %v1622
        %v1720 = vunpack.c.h.b16 %v1622
        %v1721 = vunpack.c.l.b16 %v1623
        %v1722 = vpack.c.b16 %v1677, %v1674
        %v1723 = vpack.c.b16 %v1678, %v1675
        %v1724 = vpack.c.b16 %v1679, %v1676
        %v1725 = vpack.c.b16 %v1683, %v1680
        %v1726 = vpack.c.b16 %v1684, %v1681
        %v1727 = vpack.c.b16 %v1685, %v1682
        %v1728 = vpack.c.b16 %v1689, %v1686
        %v1729 = vpack.c.b16 %v1690, %v1687
        %v1730 = vpack.c.b16 %v1691, %v1688
        %v1731 = vpack.c.b16 %v1695, %v1692
        %v1732 = vpack.c.b16 %v1696, %v1693
        %v1733 = vpack.c.b16 %v1697, %v1694
        %v1734 = vpack.c.b16 %v1701, %v1698
        %v1735 = vpack.c.b16 %v1702, %v1699
        %v1736 = vpack.c.b16 %v1703, %v1700
        %v1737 = vpack.c.b16 %v1707, %v1704
        %v1738 = vpack.c.b16 %v1708, %v1705
        %v1739 = vpack.c.b16 %v1709, %v1706
        %v1740 = vpack.c.b16 %v1713, %v1710
        %v1741 = vpack.c.b16 %v1714, %v1711
        %v1742 = vpack.c.b16 %v1715, %v1712
        %v1743 = vpack.c.b16 %v1719, %v1716
        %v1744 = vpack.c.b16 %v1720, %v1717
        %v1745 = vpack.c.b16 %v1721, %v1718
        %1770 = vmatprep.subr.bf16.mxu0 %v1723
        %1771 = vmatpush1.bf16.msra.mxu0 %v1722
        %1772 = vmatprep.subr.bf16.mxu0 %v1726
        %1773 = vmatpush1.bf16.msra.mxu0 %v1725
        %1774 = vmatprep.subr.bf16.mxu0 %v1729
        %1775 = vmatpush1.bf16.msra.mxu0 %v1728
        %1776 = vmatprep.subr.bf16.mxu0 %v1732
        %1777 = vmatpush1.bf16.msra.mxu0 %v1731
        %1778 = vmatprep.subr.bf16.mxu0 %v1735
        %1779 = vmatpush1.bf16.msra.mxu0 %v1734
        %1780 = vmatprep.subr.bf16.mxu0 %v1738
        %1781 = vmatpush1.bf16.msra.mxu0 %v1737
        %1782 = vmatprep.subr.bf16.mxu0 %v1741
        %1783 = vmatpush1.bf16.msra.mxu0 %v1740
        %1784 = vmatprep.subr.bf16.mxu0 %v1744
        %1785 = vmatpush1.bf16.msra.mxu0 %v1743
        %1786 = vmatprep.subr.bf16.mxu0 0
        %1787 = vmatpush1.bf16.msra.mxu0 0
        %1788 = vmatprep.subr.bf16.mxu0 0
        %1789 = vmatpush1.bf16.msra.mxu0 0
        %1790 = vmatprep.subr.bf16.mxu0 0
        %1791 = vmatpush1.bf16.msra.mxu0 0
        %1792 = vmatprep.subr.bf16.mxu0 0
        %1793 = vmatpush1.bf16.msra.mxu0 0
        %1794 = vmatprep.subr.bf16.mxu0 0
        %1795 = vmatpush1.bf16.msra.mxu0 0
        %1796 = vmatprep.subr.bf16.mxu0 0
        %1797 = vmatpush1.bf16.msra.mxu0 0
        %1798 = vmatprep.subr.bf16.mxu0 0
        %1799 = vmatpush1.bf16.msra.mxu0 0
        %1800 = vmatprep.subr.bf16.mxu0 0
        %1801 = vmatpush1.bf16.msra.mxu0 0
        %1802 = vmatprep.mubr.bf16.mxu0 0
        %1803 = vmatmul.mubr.bf16.gmra.mrb[0].mxu0 %v1590
        %v1804 = vpop.f32.mrb[0].mxu0
        %v1805 = vadd.f32 %v1630, %v1804
        %v1806 = vpop.f32.mrb[0].mxu0
        %v1807 = vadd.f32 %v1634, %v1806
        %v1808 = vpop.f32.mrb[0].mxu0
        %v1809 = vadd.f32 %v1630, %v1808
        %v1810 = vpop.f32.mrb[0].mxu0
        %v1811 = vadd.f32 %v1634, %v1810
        %1812 = vdwg.mxu0
        %1813 = vmatprep.subr.bf16.mxu0 0
        %1814 = vmatpush1.bf16.msra.mxu0 %v1724
        %1815 = vmatprep.subr.bf16.mxu0 0
        %1816 = vmatpush1.bf16.msra.mxu0 %v1727
        %1817 = vmatprep.subr.bf16.mxu0 0
        %1818 = vmatpush1.bf16.msra.mxu0 %v1730
        %1819 = vmatprep.subr.bf16.mxu0 0
        %1820 = vmatpush1.bf16.msra.mxu0 %v1733
        %1821 = vmatprep.subr.bf16.mxu0 0
        %1822 = vmatpush1.bf16.msra.mxu0 %v1736
        %1823 = vmatprep.subr.bf16.mxu0 0
        %1824 = vmatpush1.bf16.msra.mxu0 %v1739
        %1825 = vmatprep.subr.bf16.mxu0 0
        %1826 = vmatpush1.bf16.msra.mxu0 %v1742
        %1827 = vmatprep.subr.bf16.mxu0 0
        %1828 = vmatpush1.bf16.msra.mxu0 %v1745
        %1829 = vmatprep.subr.bf16.mxu0 0
        %1830 = vmatpush1.bf16.msra.mxu0 0
        %1831 = vmatprep.subr.bf16.mxu0 0
        %1832 = vmatpush1.bf16.msra.mxu0 0
        %1833 = vmatprep.subr.bf16.mxu0 0
        %1834 = vmatpush1.bf16.msra.mxu0 0
        %1835 = vmatprep.subr.bf16.mxu0 0
        %1836 = vmatpush1.bf16.msra.mxu0 0
        %1837 = vmatprep.subr.bf16.mxu0 0
        %1838 = vmatpush1.bf16.msra.mxu0 0
        %1839 = vmatprep.subr.bf16.mxu0 0
        %1840 = vmatpush1.bf16.msra.mxu0 0
        %1841 = vmatprep.subr.bf16.mxu0 0
        %1842 = vmatpush1.bf16.msra.mxu0 0
        %1843 = vmatprep.subr.bf16.mxu0 0
        %1844 = vmatpush1.bf16.msra.mxu0 0
        %1845 = vmatprep.mubr.bf16.mxu0 0
        %1846 = vmatmul.mubr.bf16.gmra.mrb[0].mxu0 %v1590
        %v1847 = vpop.f32.mrb[0].mxu0
        %v1848 = vadd.f32 %v1638, %v1847
        %v1849 = vpop.f32.mrb[0].mxu0
        %v1850 = vpop.f32.mrb[0].mxu0
        %v1851 = vadd.f32 %v1638, %v1850
        %v1852 = vpop.f32.mrb[0].mxu0
        %1853 = vdwg.mxu0
        %v1854 = vmul.f32 %v1805, %v1807
        %v1855 = vmul.f32 %v1809, %v1807
        %v1856 = vmul.f32 %v1805, %v1811
        %v1857 = vmul.f32 %v1809, %v1811
        %v1858 = vpack.c.bf16 %v1855, %v1854
        %v1859 = vpack.c.bf16 %v1857, %v1856
        %1860 = vmatprep.subr.bf16.mxu0 0
        %1861 = vmatpush1.bf16.msra.mxu0 %v913
        %1862 = vmatprep.subr.bf16.mxu0 0
        %1863 = vmatpush1.bf16.msra.mxu0 %v914
        %1864 = vmatprep.subr.bf16.mxu0 0
        %1865 = vmatpush1.bf16.msra.mxu0 %v915
        %1866 = vmatprep.subr.bf16.mxu0 0
        %1867 = vmatpush1.bf16.msra.mxu0 %v916
        %1868 = vmatprep.subr.bf16.mxu0 0
        %1869 = vmatpush1.bf16.msra.mxu0 %v917
        %1870 = vmatprep.subr.bf16.mxu0 0
        %1871 = vmatpush1.bf16.msra.mxu0 %v918
        %1872 = vmatprep.subr.bf16.mxu0 0
        %1873 = vmatpush1.bf16.msra.mxu0 %v919
        %1874 = vmatprep.subr.bf16.mxu0 0
        %1875 = vmatpush1.bf16.msra.mxu0 %v920
        %1876 = vmatprep.subr.bf16.mxu0 0
        %1877 = vmatpush1.bf16.msra.mxu0 0
        %1878 = vmatprep.subr.bf16.mxu0 0
        %1879 = vmatpush1.bf16.msra.mxu0 0
        %1880 = vmatprep.subr.bf16.mxu0 0
        %1881 = vmatpush1.bf16.msra.mxu0 0
        %1882 = vmatprep.subr.bf16.mxu0 0
        %1883 = vmatpush1.bf16.msra.mxu0 0
        %1884 = vmatprep.subr.bf16.mxu0 0
        %1885 = vmatpush1.bf16.msra.mxu0 0
        %1886 = vmatprep.subr.bf16.mxu0 0
        %1887 = vmatpush1.bf16.msra.mxu0 0
        %1888 = vmatprep.subr.bf16.mxu0 0
        %1889 = vmatpush1.bf16.msra.mxu0 0
        %1890 = vmatprep.subr.bf16.mxu0 0
        %1891 = vmatpush1.bf16.msra.mxu0 0
        %1892 = vmatprep.mubr.bf16.mxu0 0
        %1893 = vmatmul.mubr.bf16.gmra.mrb[0].mxu0 %v1858
        %v1894 = vpop.f32.mrb[0].mxu0
        %v1895 = vadd.f32 0.0, %v1894
        %v1896 = vpop.f32.mrb[0].mxu0
        %v1897 = vpop.f32.mrb[0].mxu0
        %v1898 = vadd.f32 0.0, %v1897
        %v1899 = vpop.f32.mrb[0].mxu0
        %1900 = vmatprep.mubr.bf16.mxu0 0
        %1901 = vmatmul.mubr.bf16.gmra.mrb[0].mxu0 %v1859
        %v1902 = vpop.f32.mrb[0].mxu0
        %v1903 = vadd.f32 0.0, %v1902
        %v1904 = vpop.f32.mrb[0].mxu0
        %v1905 = vpop.f32.mrb[0].mxu0
        %v1906 = vadd.f32 0.0, %v1905
        %v1907 = vpop.f32.mrb[0].mxu0
        %1908 = vdwg.mxu0
        %v1909 = vsub.f32 %v1903, %v1895
        %v1910 = vsub.f32 %v1906, %v1898
        %v1911 = vmul.f32 %v1909, 1.442695
        %v1912 = vpow.pop %v1911
        %v1913 = vmul.f32 %v1910, 1.442695
        %v1914 = vpow.pop %v1913
        %v1915 = vadd.f32 %v1912, 1.0
        %v1916 = vadd.f32 %v1914, 1.0
        %v1917 = vrcp.pop %v1915
        %v1918 = vrcp.pop %v1916
        %v1919 = vsub.f32 1.0, %v1917
        %v1920 = vsub.f32 1.0, %v1918
        %v1921 = vpack.c.bf16 %v1918, %v1917
        %v1922 = vpack.c.bf16 %v1920, %v1919
        %v1924 = vsel %vm992, %v1921, 0
        %v1927 = vsel %vm992, %v1922, 0
        %1929 = vmatprep.subr.bf16.mxu0 0
        %1930 = vmatpush1.bf16.msra.mxu0 %v1001
        %1931 = vmatprep.subr.bf16.mxu0 0
        %1932 = vmatpush1.bf16.msra.mxu0 0
        %1933 = vmatprep.subr.bf16.mxu0 0
        %1934 = vmatpush1.bf16.msra.mxu0 0
        %1935 = vmatprep.subr.bf16.mxu0 0
        %1936 = vmatpush1.bf16.msra.mxu0 0
        %1937 = vmatprep.subr.bf16.mxu0 0
        %1938 = vmatpush1.bf16.msra.mxu0 0
        %1939 = vmatprep.subr.bf16.mxu0 0
        %1940 = vmatpush1.bf16.msra.mxu0 0
        %1941 = vmatprep.subr.bf16.mxu0 0
        %1942 = vmatpush1.bf16.msra.mxu0 0
        %1943 = vmatprep.subr.bf16.mxu0 0
        %1944 = vmatpush1.bf16.msra.mxu0 0
        %1945 = vmatprep.subr.bf16.mxu0 0
        %1946 = vmatpush1.bf16.msra.mxu0 0
        %1947 = vmatprep.subr.bf16.mxu0 0
        %1948 = vmatpush1.bf16.msra.mxu0 0
        %1949 = vmatprep.subr.bf16.mxu0 0
        %1950 = vmatpush1.bf16.msra.mxu0 0
        %1951 = vmatprep.subr.bf16.mxu0 0
        %1952 = vmatpush1.bf16.msra.mxu0 0
        %1953 = vmatprep.subr.bf16.mxu0 0
        %1954 = vmatpush1.bf16.msra.mxu0 0
        %1955 = vmatprep.subr.bf16.mxu0 0
        %1956 = vmatpush1.bf16.msra.mxu0 0
        %1957 = vmatprep.subr.bf16.mxu0 0
        %1958 = vmatpush1.bf16.msra.mxu0 0
        %1959 = vmatprep.subr.bf16.mxu0 0
        %1960 = vmatpush1.bf16.msra.mxu0 0
        %1961 = vmatprep.mubr.bf16.mxu0 0
        %1962 = vmatmul.mubr.bf16.gmra.mrb[0].mxu0 %v1924
        %v1963 = vpop.f32.mrb[0].mxu0
        %v1964 = vadd.f32 0.0, %v1963
        %v1965 = vpop.f32.mrb[0].mxu0
        %v1966 = vpop.f32.mrb[0].mxu0
        %v1967 = vadd.f32 0.0, %v1966
        %v1968 = vpop.f32.mrb[0].mxu0
        %1969 = vmatprep.mubr.bf16.mxu0 0
        %1970 = vmatmul.mubr.bf16.gmra.mrb[0].mxu0 %v1927
        %v1971 = vpop.f32.mrb[0].mxu0
        %v1972 = vadd.f32 0.0, %v1971
        %v1973 = vpop.f32.mrb[0].mxu0
        %v1974 = vpop.f32.mrb[0].mxu0
        %v1975 = vadd.f32 0.0, %v1974
        %v1976 = vpop.f32.mrb[0].mxu0
        %1977 = vdwg.mxu0
        %v1978 = vmul.f32 %v1964, %v1848
        %v1979 = vmul.f32 %v1972, %v1851
        %v1980 = vadd.f32 %v1978, %v1979
        %v1981 = vmul.f32 %v1967, %v1848
        %v1982 = vmul.f32 %v1975, %v1851
        %v1983 = vadd.f32 %v1981, %v1982
        %v1984 = vpack.c.bf16 %v1983, %v1980
        %s1985 = scalar_lea.vmem [#allocation5], 64
        %v1986 = vld [vmem:[%s1985] sm:$0xf]
        %v1987 = vld [vmem:[%s1985 + $0x4] sm:$0xf]
        %v1988 = vld [vmem:[%s1985 + $0x8] sm:$0xf]
        %v1989 = vld [vmem:[%s1985 + $0xc] sm:$0xf]
        %v1990 = vld [vmem:[%s1985 + $0x10] sm:$0xf]
        %v1991 = vld [vmem:[%s1985 + $0x14] sm:$0xf]
        %v1992 = vld [vmem:[%s1985 + $0x18] sm:$0xf]
        %v1993 = vld [vmem:[%s1985 + $0x1c] sm:$0xf]
        %v1994 = vld [vmem:[%s1985 + $0x20] sm:$0xf]
        %v1995 = vld [vmem:[%s1985 + $0x24] sm:$0xf]
        %v1996 = vld [vmem:[%s1985 + $0x28] sm:$0xf]
        %v1997 = vld [vmem:[%s1985 + $0x2c] sm:$0xf]
        %v1998 = vld [vmem:[%s1985 + $0x30] sm:$0xf]
        %v1999 = vld [vmem:[%s1985 + $0x34] sm:$0xf]
        %v2000 = vld [vmem:[%s1985 + $0x38] sm:$0xf]
        %v2001 = vld [vmem:[%s1985 + $0x3c] sm:$0xf]
        %s2002 = scalar_lea.vmem %s7, 1
        %v2003 = vld [vmem:[%s2002] sm:$0x1]
        %v2005 = vlaneseq
        %v2006 = vshrl.u32 %v2005, 7
        %v2007 = vsub.s32 0, %v2006
        %v2008 = vrot.slane %v2003, %v2007
        %v2026 = vunpack.c.l.b16 %v1986
        %v2027 = vunpack.c.l.b16 %v1987
        %v2028 = vunpack.c.l.b16 %v1988
        %v2029 = vunpack.c.l.b16 %v1989
        %v2030 = vunpack.c.l.b16 %v1990
        %v2031 = vunpack.c.l.b16 %v1991
        %v2032 = vunpack.c.l.b16 %v1992
        %v2033 = vunpack.c.l.b16 %v1993
        %v2034 = vunpack.c.l.b16 %v1994
        %v2035 = vunpack.c.l.b16 %v1995
        %v2036 = vunpack.c.l.b16 %v1996
        %v2037 = vunpack.c.l.b16 %v1997
        %v2038 = vunpack.c.l.b16 %v1998
        %v2039 = vunpack.c.l.b16 %v1999
        %v2040 = vunpack.c.l.b16 %v2000
        %v2041 = vunpack.c.l.b16 %v2001
        %v2042 = vpack.c.b16 %v2027, %v2026
        %v2043 = vpack.c.b16 %v2029, %v2028
        %v2044 = vpack.c.b16 %v2031, %v2030
        %v2045 = vpack.c.b16 %v2033, %v2032
        %v2046 = vpack.c.b16 %v2035, %v2034
        %v2047 = vpack.c.b16 %v2037, %v2036
        %v2048 = vpack.c.b16 %v2039, %v2038
        %v2049 = vpack.c.b16 %v2041, %v2040
        %2058 = vmatprep.subr.bf16.mxu0 0
        %2059 = vmatpush1.bf16.msra.mxu0 %v2042
        %2060 = vmatprep.subr.bf16.mxu0 0
        %2061 = vmatpush1.bf16.msra.mxu0 %v2043
        %2062 = vmatprep.subr.bf16.mxu0 0
        %2063 = vmatpush1.bf16.msra.mxu0 %v2044
        %2064 = vmatprep.subr.bf16.mxu0 0
        %2065 = vmatpush1.bf16.msra.mxu0 %v2045
        %2066 = vmatprep.subr.bf16.mxu0 0
        %2067 = vmatpush1.bf16.msra.mxu0 %v2046
        %2068 = vmatprep.subr.bf16.mxu0 0
        %2069 = vmatpush1.bf16.msra.mxu0 %v2047
        %2070 = vmatprep.subr.bf16.mxu0 0
        %2071 = vmatpush1.bf16.msra.mxu0 %v2048
        %2072 = vmatprep.subr.bf16.mxu0 0
        %2073 = vmatpush1.bf16.msra.mxu0 %v2049
        %2074 = vmatprep.subr.bf16.mxu0 0
        %2075 = vmatpush1.bf16.msra.mxu0 0
        %2076 = vmatprep.subr.bf16.mxu0 0
        %2077 = vmatpush1.bf16.msra.mxu0 0
        %2078 = vmatprep.subr.bf16.mxu0 0
        %2079 = vmatpush1.bf16.msra.mxu0 0
        %2080 = vmatprep.subr.bf16.mxu0 0
        %2081 = vmatpush1.bf16.msra.mxu0 0
        %2082 = vmatprep.subr.bf16.mxu0 0
        %2083 = vmatpush1.bf16.msra.mxu0 0
        %2084 = vmatprep.subr.bf16.mxu0 0
        %2085 = vmatpush1.bf16.msra.mxu0 0
        %2086 = vmatprep.subr.bf16.mxu0 0
        %2087 = vmatpush1.bf16.msra.mxu0 0
        %2088 = vmatprep.subr.bf16.mxu0 0
        %2089 = vmatpush1.bf16.msra.mxu0 0
        %2090 = vmatprep.mubr.bf16.mxu0 0
        %2091 = vmatmul.mubr.bf16.gmra.mrb[0].mxu0 %v1984
        %v2092 = vpop.f32.mrb[0].mxu0
        %v2093 = vadd.f32 %v2008, %v2092
        %v2094 = vpop.f32.mrb[0].mxu0
        %v2095 = vpop.f32.mrb[0].mxu0
        %v2096 = vadd.f32 %v2008, %v2095
        %v2097 = vpop.f32.mrb[0].mxu0
        %2098 = vdwg.mxu0
        %v2099 = vadd.f32 %v1588, %v2093
        %v2100 = vadd.f32 %v1589, %v2096
        %s2101 = scalar_lea.vmem %s12, 1
        %v2102 = vld [vmem:[%s2101] sm:$0x1]
        %s2103 = scalar_lea.vmem %s13, 1
        %v2104 = vld [vmem:[%s2103] sm:$0x1]
        %2105 = vadd.xlane.f32.xlu0 %v2099
        %v2106 = vpop.xlane.xlu0 %2105
        %2107 = vadd.xlane.f32.xlu0 %v2100
        %v2108 = vpop.xlane.xlu0 %2107
        %v2109 = vmul.f32 %v2106, %v1179
        %v2110 = vmul.f32 %v2108, %v1179
        %v2111 = vsub.f32 %v2099, %v2109
        %v2112 = vsub.f32 %v2100, %v2110
        %v2113 = vmul.f32 %v2111, %v2111
        %v2114 = vmul.f32 %v2112, %v2112
        %2115 = vadd.xlane.f32.xlu0 %v2113
        %v2116 = vpop.xlane.xlu0 %2115
        %2117 = vadd.xlane.f32.xlu0 %v2114
        %v2118 = vpop.xlane.xlu0 %2117
        %v2119 = vmul.f32 %v2116, %v1179
        %v2120 = vmul.f32 %v2118, %v1179
        %v2121 = vadd.f32 %v2119, 1e-05
        %v2122 = vadd.f32 %v2120, 1e-05
        %v2123 = vrsqrt.pop %v2121
        %v2124 = vrsqrt.pop %v2122
        %v2125 = vmul.f32 %v2111, %v2123
        %v2126 = vmul.f32 %v2112, %v2124
        %v2128 = vlaneseq
        %v2129 = vshrl.u32 %v2128, 7
        %v2130 = vsub.s32 0, %v2129
        %v2131 = vrot.slane %v2102, %v2130
        %v2133 = vmul.f32 %v2125, %v2131
        %v2134 = vmul.f32 %v2126, %v2131
        %v2136 = vlaneseq
        %v2137 = vshrl.u32 %v2136, 7
        %v2138 = vsub.s32 0, %v2137
        %v2139 = vrot.slane %v2104, %v2138
        %v2141 = vadd.f32 %v2133, %v2139
        %v2142 = vadd.f32 %v2134, %v2139
        %v2143 = vpack.c.bf16 %v2142, %v2141
        %s2144 = scalar_lea.vmem [#allocation7], 128
        %v2145 = vld [vmem:[%s2144] sm:$0xff]
        %v2146 = vld [vmem:[%s2144 + $0x8] sm:$0xff]
        %v2147 = vld [vmem:[%s2144 + $0x10] sm:$0xff]
        %v2148 = vld [vmem:[%s2144 + $0x18] sm:$0xff]
        %v2149 = vld [vmem:[%s2144 + $0x20] sm:$0xff]
        %v2150 = vld [vmem:[%s2144 + $0x28] sm:$0xff]
        %v2151 = vld [vmem:[%s2144 + $0x30] sm:$0xff]
        %v2152 = vld [vmem:[%s2144 + $0x38] sm:$0xff]
        %v2153 = vld [vmem:[%s2144 + $0x40] sm:$0xff]
        %v2154 = vld [vmem:[%s2144 + $0x48] sm:$0xff]
        %v2155 = vld [vmem:[%s2144 + $0x50] sm:$0xff]
        %v2156 = vld [vmem:[%s2144 + $0x58] sm:$0xff]
        %v2157 = vld [vmem:[%s2144 + $0x60] sm:$0xff]
        %v2158 = vld [vmem:[%s2144 + $0x68] sm:$0xff]
        %v2159 = vld [vmem:[%s2144 + $0x70] sm:$0xff]
        %v2160 = vld [vmem:[%s2144 + $0x78] sm:$0xff]
        %s2161 = scalar_lea.vmem %s9, 2
        %v2162 = vld [vmem:[%s2161] sm:$0x3]
        %v2164 = vlaneseq
        %v2165 = vshrl.u32 %v2164, 7
        %v2166 = vsub.s32 0, %v2165
        %v2167 = vrot.slane %v2162, %v2166
        %v2168 = vlaneseq
        %v2169 = vshrl.u32 %v2168, 7
        %v2170 = vsub.s32 1, %v2169
        %v2171 = vrot.slane %v2162, %v2170
        %v2190 = vunpack.c.l.b16 %v2145
        %v2191 = vunpack.c.h.b16 %v2145
        %v2192 = vunpack.c.l.b16 %v2146
        %v2193 = vunpack.c.h.b16 %v2146
        %v2194 = vunpack.c.l.b16 %v2147
        %v2195 = vunpack.c.h.b16 %v2147
        %v2196 = vunpack.c.l.b16 %v2148
        %v2197 = vunpack.c.h.b16 %v2148
        %v2198 = vunpack.c.l.b16 %v2149
        %v2199 = vunpack.c.h.b16 %v2149
        %v2200 = vunpack.c.l.b16 %v2150
        %v2201 = vunpack.c.h.b16 %v2150
        %v2202 = vunpack.c.l.b16 %v2151
        %v2203 = vunpack.c.h.b16 %v2151
        %v2204 = vunpack.c.l.b16 %v2152
        %v2205 = vunpack.c.h.b16 %v2152
        %v2206 = vunpack.c.l.b16 %v2153
        %v2207 = vunpack.c.h.b16 %v2153
        %v2208 = vunpack.c.l.b16 %v2154
        %v2209 = vunpack.c.h.b16 %v2154
        %v2210 = vunpack.c.l.b16 %v2155
        %v2211 = vunpack.c.h.b16 %v2155
        %v2212 = vunpack.c.l.b16 %v2156
        %v2213 = vunpack.c.h.b16 %v2156
        %v2214 = vunpack.c.l.b16 %v2157
        %v2215 = vunpack.c.h.b16 %v2157
        %v2216 = vunpack.c.l.b16 %v2158
        %v2217 = vunpack.c.h.b16 %v2158
        %v2218 = vunpack.c.l.b16 %v2159
        %v2219 = vunpack.c.h.b16 %v2159
        %v2220 = vunpack.c.l.b16 %v2160
        %v2221 = vunpack.c.h.b16 %v2160
        %v2222 = vpack.c.b16 %v2192, %v2190
        %v2223 = vpack.c.b16 %v2193, %v2191
        %v2224 = vpack.c.b16 %v2196, %v2194
        %v2225 = vpack.c.b16 %v2197, %v2195
        %v2226 = vpack.c.b16 %v2200, %v2198
        %v2227 = vpack.c.b16 %v2201, %v2199
        %v2228 = vpack.c.b16 %v2204, %v2202
        %v2229 = vpack.c.b16 %v2205, %v2203
        %v2230 = vpack.c.b16 %v2208, %v2206
        %v2231 = vpack.c.b16 %v2209, %v2207
        %v2232 = vpack.c.b16 %v2212, %v2210
        %v2233 = vpack.c.b16 %v2213, %v2211
        %v2234 = vpack.c.b16 %v2216, %v2214
        %v2235 = vpack.c.b16 %v2217, %v2215
        %v2236 = vpack.c.b16 %v2220, %v2218
        %v2237 = vpack.c.b16 %v2221, %v2219
        %2254 = vmatprep.subr.bf16.mxu0 %v2223
        %2255 = vmatpush1.bf16.msra.mxu0 %v2222
        %2256 = vmatprep.subr.bf16.mxu0 %v2225
        %2257 = vmatpush1.bf16.msra.mxu0 %v2224
        %2258 = vmatprep.subr.bf16.mxu0 %v2227
        %2259 = vmatpush1.bf16.msra.mxu0 %v2226
        %2260 = vmatprep.subr.bf16.mxu0 %v2229
        %2261 = vmatpush1.bf16.msra.mxu0 %v2228
        %2262 = vmatprep.subr.bf16.mxu0 %v2231
        %2263 = vmatpush1.bf16.msra.mxu0 %v2230
        %2264 = vmatprep.subr.bf16.mxu0 %v2233
        %2265 = vmatpush1.bf16.msra.mxu0 %v2232
        %2266 = vmatprep.subr.bf16.mxu0 %v2235
        %2267 = vmatpush1.bf16.msra.mxu0 %v2234
        %2268 = vmatprep.subr.bf16.mxu0 %v2237
        %2269 = vmatpush1.bf16.msra.mxu0 %v2236
        %2270 = vmatprep.subr.bf16.mxu0 0
        %2271 = vmatpush1.bf16.msra.mxu0 0
        %2272 = vmatprep.subr.bf16.mxu0 0
        %2273 = vmatpush1.bf16.msra.mxu0 0
        %2274 = vmatprep.subr.bf16.mxu0 0
        %2275 = vmatpush1.bf16.msra.mxu0 0
        %2276 = vmatprep.subr.bf16.mxu0 0
        %2277 = vmatpush1.bf16.msra.mxu0 0
        %2278 = vmatprep.subr.bf16.mxu0 0
        %2279 = vmatpush1.bf16.msra.mxu0 0
        %2280 = vmatprep.subr.bf16.mxu0 0
        %2281 = vmatpush1.bf16.msra.mxu0 0
        %2282 = vmatprep.subr.bf16.mxu0 0
        %2283 = vmatpush1.bf16.msra.mxu0 0
        %2284 = vmatprep.subr.bf16.mxu0 0
        %2285 = vmatpush1.bf16.msra.mxu0 0
        %2286 = vmatprep.mubr.bf16.mxu0 0
        %2287 = vmatmul.mubr.bf16.gmra.mrb[0].mxu0 %v2143
        %v2288 = vpop.f32.mrb[0].mxu0
        %v2289 = vadd.f32 %v2167, %v2288
        %v2290 = vpop.f32.mrb[0].mxu0
        %v2291 = vadd.f32 %v2171, %v2290
        %v2292 = vpop.f32.mrb[0].mxu0
        %v2293 = vadd.f32 %v2167, %v2292
        %v2294 = vpop.f32.mrb[0].mxu0
        %v2295 = vadd.f32 %v2171, %v2294
        %2296 = vdwg.mxu0
        %v2297 = vmax.f32 %v2289, 0.0
        %v2298 = vmax.f32 %v2291, 0.0
        %v2299 = vmax.f32 %v2293, 0.0
        %v2300 = vmax.f32 %v2295, 0.0
        %v2301 = vpack.c.bf16 %v2299, %v2297
        %v2302 = vpack.c.bf16 %v2300, %v2298
        %s2303 = scalar_lea.vmem [#allocation8], 128
        %v2304 = vld [vmem:[%s2303] sm:$0xf]
        %v2305 = vld [vmem:[%s2303 + $0x4] sm:$0xf]
        %v2306 = vld [vmem:[%s2303 + $0x8] sm:$0xf]
        %v2307 = vld [vmem:[%s2303 + $0xc] sm:$0xf]
        %v2308 = vld [vmem:[%s2303 + $0x10] sm:$0xf]
        %v2309 = vld [vmem:[%s2303 + $0x14] sm:$0xf]
        %v2310 = vld [vmem:[%s2303 + $0x18] sm:$0xf]
        %v2311 = vld [vmem:[%s2303 + $0x1c] sm:$0xf]
        %v2312 = vld [vmem:[%s2303 + $0x20] sm:$0xf]
        %v2313 = vld [vmem:[%s2303 + $0x24] sm:$0xf]
        %v2314 = vld [vmem:[%s2303 + $0x28] sm:$0xf]
        %v2315 = vld [vmem:[%s2303 + $0x2c] sm:$0xf]
        %v2316 = vld [vmem:[%s2303 + $0x30] sm:$0xf]
        %v2317 = vld [vmem:[%s2303 + $0x34] sm:$0xf]
        %v2318 = vld [vmem:[%s2303 + $0x38] sm:$0xf]
        %v2319 = vld [vmem:[%s2303 + $0x3c] sm:$0xf]
        %v2320 = vld [vmem:[%s2303 + $0x40] sm:$0xf]
        %v2321 = vld [vmem:[%s2303 + $0x44] sm:$0xf]
        %v2322 = vld [vmem:[%s2303 + $0x48] sm:$0xf]
        %v2323 = vld [vmem:[%s2303 + $0x4c] sm:$0xf]
        %v2324 = vld [vmem:[%s2303 + $0x50] sm:$0xf]
        %v2325 = vld [vmem:[%s2303 + $0x54] sm:$0xf]
        %v2326 = vld [vmem:[%s2303 + $0x58] sm:$0xf]
        %v2327 = vld [vmem:[%s2303 + $0x5c] sm:$0xf]
        %v2328 = vld [vmem:[%s2303 + $0x60] sm:$0xf]
        %v2329 = vld [vmem:[%s2303 + $0x64] sm:$0xf]
        %v2330 = vld [vmem:[%s2303 + $0x68] sm:$0xf]
        %v2331 = vld [vmem:[%s2303 + $0x6c] sm:$0xf]
        %v2332 = vld [vmem:[%s2303 + $0x70] sm:$0xf]
        %v2333 = vld [vmem:[%s2303 + $0x74] sm:$0xf]
        %v2334 = vld [vmem:[%s2303 + $0x78] sm:$0xf]
        %v2335 = vld [vmem:[%s2303 + $0x7c] sm:$0xf]
        %s2336 = scalar_lea.vmem %s11, 1
        %v2337 = vld [vmem:[%s2336] sm:$0x1]
        %v2339 = vlaneseq
        %v2340 = vshrl.u32 %v2339, 7
        %v2341 = vsub.s32 0, %v2340
        %v2342 = vrot.slane %v2337, %v2341
        %v2376 = vunpack.c.l.b16 %v2304
        %v2377 = vunpack.c.l.b16 %v2305
        %v2378 = vunpack.c.l.b16 %v2306
        %v2379 = vunpack.c.l.b16 %v2307
        %v2380 = vunpack.c.l.b16 %v2308
        %v2381 = vunpack.c.l.b16 %v2309
        %v2382 = vunpack.c.l.b16 %v2310
        %v2383 = vunpack.c.l.b16 %v2311
        %v2384 = vunpack.c.l.b16 %v2312
        %v2385 = vunpack.c.l.b16 %v2313
        %v2386 = vunpack.c.l.b16 %v2314
        %v2387 = vunpack.c.l.b16 %v2315
        %v2388 = vunpack.c.l.b16 %v2316
        %v2389 = vunpack.c.l.b16 %v2317
        %v2390 = vunpack.c.l.b16 %v2318
        %v2391 = vunpack.c.l.b16 %v2319
        %v2392 = vunpack.c.l.b16 %v2320
        %v2393 = vunpack.c.l.b16 %v2321
        %v2394 = vunpack.c.l.b16 %v2322
        %v2395 = vunpack.c.l.b16 %v2323
        %v2396 = vunpack.c.l.b16 %v2324
        %v2397 = vunpack.c.l.b16 %v2325
        %v2398 = vunpack.c.l.b16 %v2326
        %v2399 = vunpack.c.l.b16 %v2327
        %v2400 = vunpack.c.l.b16 %v2328
        %v2401 = vunpack.c.l.b16 %v2329
        %v2402 = vunpack.c.l.b16 %v2330
        %v2403 = vunpack.c.l.b16 %v2331
        %v2404 = vunpack.c.l.b16 %v2332
        %v2405 = vunpack.c.l.b16 %v2333
        %v2406 = vunpack.c.l.b16 %v2334
        %v2407 = vunpack.c.l.b16 %v2335
        %v2408 = vpack.c.b16 %v2377, %v2376
        %v2409 = vpack.c.b16 %v2379, %v2378
        %v2410 = vpack.c.b16 %v2381, %v2380
        %v2411 = vpack.c.b16 %v2383, %v2382
        %v2412 = vpack.c.b16 %v2385, %v2384
        %v2413 = vpack.c.b16 %v2387, %v2386
        %v2414 = vpack.c.b16 %v2389, %v2388
        %v2415 = vpack.c.b16 %v2391, %v2390
        %v2416 = vpack.c.b16 %v2393, %v2392
        %v2417 = vpack.c.b16 %v2395, %v2394
        %v2418 = vpack.c.b16 %v2397, %v2396
        %v2419 = vpack.c.b16 %v2399, %v2398
        %v2420 = vpack.c.b16 %v2401, %v2400
        %v2421 = vpack.c.b16 %v2403, %v2402
        %v2422 = vpack.c.b16 %v2405, %v2404
        %v2423 = vpack.c.b16 %v2407, %v2406
        %2440 = vmatprep.subr.bf16.mxu0 0
        %2441 = vmatpush1.bf16.msra.mxu0 %v2408
        %2442 = vmatprep.subr.bf16.mxu0 0
        %2443 = vmatpush1.bf16.msra.mxu0 %v2409
        %2444 = vmatprep.subr.bf16.mxu0 0
        %2445 = vmatpush1.bf16.msra.mxu0 %v2410
        %2446 = vmatprep.subr.bf16.mxu0 0
        %2447 = vmatpush1.bf16.msra.mxu0 %v2411
        %2448 = vmatprep.subr.bf16.mxu0 0
        %2449 = vmatpush1.bf16.msra.mxu0 %v2412
        %2450 = vmatprep.subr.bf16.mxu0 0
        %2451 = vmatpush1.bf16.msra.mxu0 %v2413
        %2452 = vmatprep.subr.bf16.mxu0 0
        %2453 = vmatpush1.bf16.msra.mxu0 %v2414
        %2454 = vmatprep.subr.bf16.mxu0 0
        %2455 = vmatpush1.bf16.msra.mxu0 %v2415
        %2456 = vmatprep.subr.bf16.mxu0 0
        %2457 = vmatpush1.bf16.msra.mxu0 %v2416
        %2458 = vmatprep.subr.bf16.mxu0 0
        %2459 = vmatpush1.bf16.msra.mxu0 %v2417
        %2460 = vmatprep.subr.bf16.mxu0 0
        %2461 = vmatpush1.bf16.msra.mxu0 %v2418
        %2462 = vmatprep.subr.bf16.mxu0 0
        %2463 = vmatpush1.bf16.msra.mxu0 %v2419
        %2464 = vmatprep.subr.bf16.mxu0 0
        %2465 = vmatpush1.bf16.msra.mxu0 %v2420
        %2466 = vmatprep.subr.bf16.mxu0 0
        %2467 = vmatpush1.bf16.msra.mxu0 %v2421
        %2468 = vmatprep.subr.bf16.mxu0 0
        %2469 = vmatpush1.bf16.msra.mxu0 %v2422
        %2470 = vmatprep.subr.bf16.mxu0 0
        %2471 = vmatpush1.bf16.msra.mxu0 %v2423
        %2472 = vmatprep.mubr.bf16.mxu0 %v2302
        %2473 = vmatmul.mubr.bf16.gmra.mrb[0].mxu0 %v2301
        %v2474 = vpop.f32.mrb[0].mxu0
        %v2475 = vadd.f32 %v2342, %v2474
        %v2476 = vpop.f32.mrb[0].mxu0
        %v2477 = vpop.f32.mrb[0].mxu0
        %v2478 = vadd.f32 %v2342, %v2477
        %v2479 = vpop.f32.mrb[0].mxu0
        %2480 = vdwg.mxu0
        %v2481 = vadd.f32 %v2141, %v2475
        %v2482 = vadd.f32 %v2142, %v2478
        %s2483 = scalar_lea.vmem %s14, 1
        %v2484 = vld [vmem:[%s2483] sm:$0x1]
        %s2485 = scalar_lea.vmem %s15, 1
        %v2486 = vld [vmem:[%s2485] sm:$0x1]
        %2487 = vadd.xlane.f32.xlu0 %v2481
        %v2488 = vpop.xlane.xlu0 %2487
        %2489 = vadd.xlane.f32.xlu0 %v2482
        %v2490 = vpop.xlane.xlu0 %2489
        %v2491 = vmul.f32 %v2488, %v1179
        %v2492 = vmul.f32 %v2490, %v1179
        %v2493 = vsub.f32 %v2481, %v2491
        %v2494 = vsub.f32 %v2482, %v2492
        %v2495 = vmul.f32 %v2493, %v2493
        %v2496 = vmul.f32 %v2494, %v2494
        %2497 = vadd.xlane.f32.xlu0 %v2495
        %v2498 = vpop.xlane.xlu0 %2497
        %2499 = vadd.xlane.f32.xlu0 %v2496
        %v2500 = vpop.xlane.xlu0 %2499
        %v2501 = vmul.f32 %v2498, %v1179
        %v2502 = vmul.f32 %v2500, %v1179
        %v2503 = vadd.f32 %v2501, 1e-05
        %v2504 = vadd.f32 %v2502, 1e-05
        %v2505 = vrsqrt.pop %v2503
        %v2506 = vrsqrt.pop %v2504
        %v2507 = vmul.f32 %v2493, %v2505
        %v2508 = vmul.f32 %v2494, %v2506
        %v2510 = vlaneseq
        %v2511 = vshrl.u32 %v2510, 7
        %v2512 = vsub.s32 0, %v2511
        %v2513 = vrot.slane %v2484, %v2512
        %v2515 = vmul.f32 %v2507, %v2513
        %v2516 = vmul.f32 %v2508, %v2513
        %v2518 = vlaneseq
        %v2519 = vshrl.u32 %v2518, 7
        %v2520 = vsub.s32 0, %v2519
        %v2521 = vrot.slane %v2486, %v2520
        %v2523 = vadd.f32 %v2515, %v2521
        %v2524 = vadd.f32 %v2516, %v2521
        %v2525 = vadd.f32 %v2523, %v2524
        %v2526 = vmul.f32 %v2525, 0.5
        %v2527 = vadd.f32 %v2526, %v611
        %2528 = vst [vmem:[%s584] sm:$0xff] %v2527
        %s2529 = sand.u32 %s387, 1
        %s2530 = scalar_lea.sflag [#allocation4], %s2529
        %s2531 = sand.u32 %s387, 1
        %s2532 = smul.addr %s2531, 8
        %s2533 = scalar_lea.vmem [#allocation10], %s2532
        // Predicated region
        $region101: #{tpu_custom_call.1} parent=83 // pred_check
          %p2534 = pneg %p397
        $region102: #{tpu_custom_call.1} parent=83 // pred_check_branch
          %2536 = sbr.rel (%p2534) target = $region104
        $region103: #{tpu_custom_call.1} parent=83 // pred_region
          %s2538 = ssub.s32 128, 128
          %2539 = vsyncadd %s2530, %s2538
          %s2540 = smul.addr %s33, 128
          %s2541 = scalar_lea.hbm %s16, %s2540
          %s2543 = sshll.u32 %s2533, 4
          %s2544 = int_to_ptr.vmem [resolvable:$true] %s2543
          %2546 = dma.vmem_to_hbm [thread:$0]  %s2544, 128, %s2541, %s2530
        $region104: #{tpu_custom_call.1} parent=83 // pred_fallthru
          _
      $region84: #{tpu_custom_call.1} parent=5 // pred_fallthru
        _
      %p2547 = scmp.le.s32.totalorder 2, %s28
      // Predicated region
      $region105: #{tpu_custom_call.1} parent=5 // pred_check
        %p2548 = pneg %p2547
      $region106: #{tpu_custom_call.1} parent=5 // pred_check_branch
        %2550 = sbr.rel (%p2548) target = $region108
      $region107: #{tpu_custom_call.1} parent=5 // pred_region
        %s2551 = ssub.s32 %s28, 2
        // Predicated region
        $region109: #{tpu_custom_call.1} parent=107 // pred_check
          %p2552 = pneg %p403
        $region110: #{tpu_custom_call.1} parent=107 // pred_check_branch
          %2554 = sbr.rel (%p2552) target = $region112
        $region111: #{tpu_custom_call.1} parent=107 // pred_region
          %s2555 = sand.u32 %s388, 1
          %s2556 = scalar_lea.sflag [#allocation4], %s2555
          %s2557 = sand.u32 %s388, 1
          %s2558 = smul.addr %s2557, 8
          %s2559 = scalar_lea.vmem [#allocation10], %s2558
          %2560 = dma.done %s2556, 128
        $region112: #{tpu_custom_call.1} parent=107 // pred_fallthru
          _
      $region108: #{tpu_custom_call.1} parent=5 // pred_fallthru
        _
    $region6: #{tpu_custom_call.1} parent=1 // loop_footer
      %s32 = sadd.s32 1, %s28
    $region7: #{tpu_custom_call.1} parent=1 // loop_footer_branch
      %27 = sbr.rel target = $region3
    $region8: #{tpu_custom_call.1} parent=1 // loop_exit
      _
    %2561 = vsyncpa [#allocation3], 1
    %s2562 = scalar_lea.sflag [#allocation3], 1
    %2563 = vsyncpa %s2562, 1
    %2564 = vsyncpa [#allocation6], 1
    %2565 = vsyncpa [#allocation9], 1
    %2566 = vsyncpa [#allocation4], 1
    %s2567 = scalar_lea.sflag [#allocation4], 1
    %2568 = vsyncpa %s2567, 1

</llo_original>
